<compile_context>
chip_gen: v6e
topology: v6e:2x2x1
jax: 0.10.0
libtpu: 0.0.40
codegen_flags: <defaults>
</compile_context>

<pallas_src>
import functools

import jax
import jax.numpy as jnp
import numpy as np
from jax.experimental import pallas as pl
from jax.experimental.pallas import tpu as pltpu


def _reorder_gates_ifgo_to_ifog(w):
    """Reorder the last (4H) axis from PyTorch (i, f, g, o) to (i, f, o, g)."""
    h4 = w.shape[-1]
    h = h4 // 4
    return jnp.concatenate(
        [w[..., : 2 * h], w[..., 3 * h:], w[..., 2 * h: 3 * h]], axis=-1)


# ----------------------------------------------------------------------------
# Fused 2-layer LSTM recurrence + fc/sigmoid head (one batch block per grid pt)
# ----------------------------------------------------------------------------
def fused_lstm_kernel(gx0_ref, h0_ref, c0_ref, whh0_ref, wih1_ref, whh1_ref,
                      b1_ref, wfc_ref, bfc_ref,
                      sig_ref, hn_ref, cn_ref,
                      hslab_scr, gx1_scr):
    """gx0_ref : (T, BB, 4H) precomputed layer-0 gate pre-activations (+bias),
                 gate columns ordered (i, f, o, g).
       h0/c0   : (2, BB, H) initial states per layer.
       whh0/wih1/whh1 : (H, 4H); b1 : (1, 4H); wfc : (1, H); bfc : (1, 1).
       Outputs : sig (BB, 1), h_n (2, BB, H), c_n (2, BB, H).
       Scratch : hslab (T*BB, H) layer-0 hidden slab, gx1 (T*BB, 4H)."""
    T, BB, G4 = gx0_ref.shape
    H = G4 // 4

    # Full-width activation: sigmoid on first 3H columns (i,f,o), tanh on last
    # H (g). Mask hoisted out of the time loops.
    sig_mask = jax.lax.broadcasted_iota(jnp.int32, (BB, G4), 1) < 3 * H

    def cell(gates, c):
        act = jnp.where(sig_mask, jax.nn.sigmoid(gates), jnp.tanh(gates))
        i_g = act[:, 0:H]
        f_g = act[:, H:2 * H]
        o_g = act[:, 2 * H:3 * H]
        g_g = act[:, 3 * H:4 * H]
        c_new = f_g * c + i_g * g_g
        h_new = o_g * jnp.tanh(c_new)
        return h_new, c_new

    # ---- layer 0: serial recurrence; only h @ W_hh^T per step --------------
    whh0 = whh0_ref[...]

    def body0(t, carry):
        h, c = carry
        gates = gx0_ref[t] + jnp.dot(h, whh0,
                                     preferred_element_type=jnp.float32)
        h_new, c_new = cell(gates, c)
        hslab_scr[pl.ds(t * BB, BB), :] = h_new
        return h_new, c_new

    h_l0, c_l0 = jax.lax.fori_loop(0, T, body0, (h0_ref[0], c0_ref[0]),
                                   unroll=True)
    hn_ref[0] = h_l0
    cn_ref[0] = c_l0

    # ---- layer 1 input projection: one big GEMM over all timesteps ---------
    gx1_scr[...] = (jnp.dot(hslab_scr[...], wih1_ref[...],
                            preferred_element_type=jnp.float32)
                    + b1_ref[...])

    # ---- layer 1: serial recurrence -----------------------------------------
    whh1 = whh1_ref[...]

    def body1(t, carry):
        h, c = carry
        gates = (gx1_scr[pl.ds(t * BB, BB), :]
                 + jnp.dot(h, whh1, preferred_element_type=jnp.float32))
        return cell(gates, c)

    h_l1, c_l1 = jax.lax.fori_loop(0, T, body1, (h0_ref[1], c0_ref[1]),
                                   unroll=True)
    hn_ref[1] = h_l1
    cn_ref[1] = c_l1

    # ---- fc + sigmoid on last hidden state (VPU multiply + lane reduce) ----
    logit = jnp.sum(h_l1 * wfc_ref[...], axis=-1, keepdims=True) + bfc_ref[...]
    sig_ref[...] = jax.nn.sigmoid(logit)


def fused_lstm_forward(gx0, h0, c0, whh0, wih1, whh1, b1, wfc, bfc, *,
                       block_b):
    T, B, G4 = gx0.shape
    H = G4 // 4
    L = h0.shape[0]
    assert L == 2, "fused kernel implements the 2-layer LSTM of SentimentRNN"
    assert B % block_b == 0

    grid_spec = pltpu.PrefetchScalarGridSpec(
        num_scalar_prefetch=0,
        grid=(B // block_b,),
        in_specs=[
            pl.BlockSpec((T, block_b, G4), lambda b: (0, b, 0)),   # gx0
            pl.BlockSpec((L, block_b, H), lambda b: (0, b, 0)),    # h0
            pl.BlockSpec((L, block_b, H), lambda b: (0, b, 0)),    # c0
            pl.BlockSpec((H, G4), lambda b: (0, 0)),               # W_hh0^T
            pl.BlockSpec((H, G4), lambda b: (0, 0)),               # W_ih1^T
            pl.BlockSpec((H, G4), lambda b: (0, 0)),               # W_hh1^T
            pl.BlockSpec((1, G4), lambda b: (0, 0)),               # b1
            pl.BlockSpec((1, H), lambda b: (0, 0)),                # w_fc row
            pl.BlockSpec((1, 1), lambda b: (0, 0)),                # b_fc
        ],
        out_specs=(
            pl.BlockSpec((block_b, 1), lambda b: (b, 0)),          # sig_out
            pl.BlockSpec((L, block_b, H), lambda b: (0, b, 0)),    # h_n
            pl.BlockSpec((L, block_b, H), lambda b: (0, b, 0)),    # c_n
        ),
        scratch_shapes=[
            pltpu.VMEM((T * block_b, H), jnp.float32),     # layer-0 h slab
            pltpu.VMEM((T * block_b, G4), jnp.float32),    # layer-1 gate preact
        ],
    )
    return pl.pallas_call(
        fused_lstm_kernel,
        out_shape=(
            jax.ShapeDtypeStruct((B, 1), jnp.float32),
            jax.ShapeDtypeStruct((L, B, H), jnp.float32),
            jax.ShapeDtypeStruct((L, B, H), jnp.float32),
        ),
        grid_spec=grid_spec,
        compiler_params=pltpu.CompilerParams(
            dimension_semantics=("parallel",),   # batch blocks -> v7x dual-TC
            vmem_limit_bytes=32 * 1024 * 1024,
        ),
    )(gx0, h0, c0, whh0, wih1, whh1, b1, wfc, bfc)


# ----------------------------------------------------------------------------
# SentimentRNN forward
# ----------------------------------------------------------------------------
@jax.jit
def sentiment_rnn_forward(x_tokens, hidden, params):
    """x_tokens: (B, T) int32; hidden: (h0, c0) each (n_layers, B, H)."""
    h0_all, c0_all = hidden
    B, T = x_tokens.shape

    # Embedding gather directly in time-major (T, B, E) order (transpose the
    # tiny int token matrix, not the embedded activations).
    embeds_tm = jnp.take(params["embedding"], x_tokens.T, axis=0)     # (T,B,E)

    # Gate-column reorder: PyTorch (i,f,g,o) -> kernel (i,f,o,g).
    w_ih0 = _reorder_gates_ifgo_to_ifog(params["w_ih_t"][0])
    b0 = _reorder_gates_ifgo_to_ifog(params["b"][0])
    whh0 = _reorder_gates_ifgo_to_ifog(params["w_hh_t"][0])
    wih1 = _reorder_gates_ifgo_to_ifog(params["w_ih_t"][1])
    whh1 = _reorder_gates_ifgo_to_ifog(params["w_hh_t"][1])
    b1 = _reorder_gates_ifgo_to_ifog(params["b"][1])

    # Layer-0 input projection hoisted out of the recurrence: one big GEMM over
    # all T*B rows (plain XLA; output is already time-major).
    gx0 = jnp.einsum("tbe,eg->tbg", embeds_tm, w_ih0) + b0            # (T,B,4H)

    block_b = 8 if B % 8 == 0 else B
    sig, h_n, c_n = fused_lstm_forward(
        gx0, h0_all, c0_all, whh0, wih1, whh1, b1,
        params["w_fc_row"], params["b_fc"], block_b=block_b)

    # TODO(synk): nn.LSTM inter-layer dropout (p=0.5) and nn.Dropout(0.3) are
    # identity in inference mode; training-mode dropout not implemented.
    return sig[:, 0], (h_n, c_n)


# ----------------------------------------------------------------------------
# Pure-JAX reference (PyTorch gate order) for the correctness assert
# ----------------------------------------------------------------------------
def reference_forward(x_tokens, hidden, params):
    h0_all, c0_all = hidden
    embeds = jnp.take(params["embedding"], x_tokens, axis=0)          # (B,T,E)
    x_seq = jnp.transpose(embeds, (1, 0, 2))                          # (T,B,E)
    n_layers = h0_all.shape[0]
    H = h0_all.shape[-1]
    layer_in = x_seq
    h_finals, c_finals = [], []
    for layer in range(n_layers):
        wih_t = params["w_ih_t"][layer]
        whh_t = params["w_hh_t"][layer]
        b = params["b"][layer]

        def step(carry, x_t, wih_t=wih_t, whh_t=whh_t, b=b):
            h, c = carry
            gates = x_t @ wih_t + h @ whh_t + b
            i = jax.nn.sigmoid(gates[:, 0:H])
            f = jax.nn.sigmoid(gates[:, H:2 * H])
            g = jnp.tanh(gates[:, 2 * H:3 * H])
            o = jax.nn.sigmoid(gates[:, 3 * H:4 * H])
            c_new = f * c + i * g
            h_new = o * jnp.tanh(c_new)
            return (h_new, c_new), h_new

        (h_n, c_n), outs = jax.lax.scan(step, (h0_all[layer], c0_all[layer]),
                                        layer_in)
        layer_in = outs
        h_finals.append(h_n)
        c_finals.append(c_n)
    h_last = layer_in[-1]
    sig_out = jax.nn.sigmoid(h_last @ params["w_fc_row"].T
                             + params["b_fc"])[:, 0]
    return sig_out, (jnp.stack(h_finals, 0), jnp.stack(c_finals, 0))


# ----------------------------------------------------------------------------
# Deterministic parameter init (matches nn.LSTM / nn.Linear shapes)
# ----------------------------------------------------------------------------
def init_params(key, vocab_size, embedding_dim, hidden_dim, n_layers):
    keys = jax.random.split(key, 3 + 5 * n_layers)
    k = iter(keys)
    bound = 1.0 / np.sqrt(hidden_dim)
    params = {
        "embedding": jax.random.normal(next(k), (vocab_size, embedding_dim),
                                       jnp.float32),
        "w_ih_t": [], "w_hh_t": [], "b": [],
    }
    for layer in range(n_layers):
        in_dim = embedding_dim if layer == 0 else hidden_dim
        w_ih = jax.random.uniform(next(k), (4 * hidden_dim, in_dim),
                                  jnp.float32, -bound, bound)
        w_hh = jax.random.uniform(next(k), (4 * hidden_dim, hidden_dim),
                                  jnp.float32, -bound, bound)
        b_ih = jax.random.uniform(next(k), (4 * hidden_dim,),
                                  jnp.float32, -bound, bound)
        b_hh = jax.random.uniform(next(k), (4 * hidden_dim,),
                                  jnp.float32, -bound, bound)
        params["w_ih_t"].append(w_ih.T)                        # (in, 4H)
        params["w_hh_t"].append(w_hh.T)                        # (H, 4H)
        params["b"].append((b_ih + b_hh)[None, :])             # (1, 4H)
    w_fc = jax.random.uniform(next(k), (1, hidden_dim), jnp.float32,
                              -bound, bound)
    b_fc = jax.random.uniform(next(k), (1,), jnp.float32, -bound, bound)
    params["w_fc_row"] = w_fc                                   # (1, H)
    params["b_fc"] = b_fc[None, :]                              # (1, 1)
    return params


if __name__ == "__main__":
    # Small shapes consistent with the module's forward.
    vocab_size = 100
    embedding_dim = 32
    hidden_dim = 32      # 4H == 128 -> the gate block is exactly one lane tile
    n_layers = 2
    batch = 16           # >= 8 so sublanes / MXU rows are occupied; 2 blocks of 8
    seq = 8

    key = jax.random.PRNGKey(0)
    k_params, k_tokens, k_h, k_c = jax.random.split(key, 4)
    params = init_params(k_params, vocab_size, embedding_dim, hidden_dim,
                         n_layers)

    x_tokens = jax.random.randint(k_tokens, (batch, seq), 1, vocab_size,
                                  dtype=jnp.int32)
    # init_hidden in the module is zeros; use small random states here to
    # exercise the h0/c0 wiring as well.
    h0 = 0.1 * jax.random.normal(k_h, (n_layers, batch, hidden_dim),
                                 jnp.float32)
    c0 = 0.1 * jax.random.normal(k_c, (n_layers, batch, hidden_dim),
                                 jnp.float32)

    sig_out, (h_n, c_n) = sentiment_rnn_forward(x_tokens, (h0, c0), params)
    jax.block_until_ready((sig_out, h_n, c_n))

    ref_out, (ref_h, ref_c) = reference_forward(x_tokens, (h0, c0), params)
    assert np.allclose(np.asarray(sig_out), np.asarray(ref_out), atol=1e-5)
    assert np.allclose(np.asarray(h_n), np.asarray(ref_h), atol=1e-5)
    assert np.allclose(np.asarray(c_n), np.asarray(ref_c), atol=1e-5)
    assert sig_out.shape == (batch,)
    assert h_n.shape == (n_layers, batch, hidden_dim)

    print("KERNEL_OK")
</pallas_src>

<mosaic_0001>
module attributes {stable_mosaic.version = 11 : i64} {
  func.func @fused_lstm_kernel(%arg0: i32, %arg1: memref<8x8x128xf32, #tpu.memory_space<vmem>>, %arg2: memref<2x8x32xf32, #tpu.memory_space<vmem>>, %arg3: memref<2x8x32xf32, #tpu.memory_space<vmem>>, %arg4: memref<32x128xf32, #tpu.memory_space<vmem>>, %arg5: memref<32x128xf32, #tpu.memory_space<vmem>>, %arg6: memref<32x128xf32, #tpu.memory_space<vmem>>, %arg7: memref<1x128xf32, #tpu.memory_space<vmem>>, %arg8: memref<1x32xf32, #tpu.memory_space<vmem>>, %arg9: memref<1x1xf32, #tpu.memory_space<vmem>>, %arg10: memref<8x1xf32, #tpu.memory_space<vmem>>, %arg11: memref<2x8x32xf32, #tpu.memory_space<vmem>>, %arg12: memref<2x8x32xf32, #tpu.memory_space<vmem>>, %arg13: memref<64x32xf32, #tpu.memory_space<vmem>>, %arg14: memref<64x128xf32, #tpu.memory_space<vmem>>) attributes {dimension_semantics = [#tpu.dimension_semantics<parallel>], iteration_bounds = array<i64: 2>, scalar_prefetch = 0 : i64, scratch_operands = 2 : i64, tpu.core_type = #tpu.core_type<tc>, window_params = [{transform_indices = @transform_0, window_bounds = array<i64: 8, 8, 128>}, {transform_indices = @transform_1, window_bounds = array<i64: 2, 8, 32>}, {transform_indices = @transform_2, window_bounds = array<i64: 2, 8, 32>}, {pipeline_mode = #tpu.pipeline_mode<synchronous>, transform_indices = @transform_3, window_bounds = array<i64: 32, 128>}, {pipeline_mode = #tpu.pipeline_mode<synchronous>, transform_indices = @transform_4, window_bounds = array<i64: 32, 128>}, {pipeline_mode = #tpu.pipeline_mode<synchronous>, transform_indices = @transform_5, window_bounds = array<i64: 32, 128>}, {pipeline_mode = #tpu.pipeline_mode<synchronous>, transform_indices = @transform_6, window_bounds = array<i64: 1, 128>}, {pipeline_mode = #tpu.pipeline_mode<synchronous>, transform_indices = @transform_7, window_bounds = array<i64: 1, 32>}, {pipeline_mode = #tpu.pipeline_mode<synchronous>, transform_indices = @transform_8, window_bounds = array<i64: 1, 1>}, {transform_indices = @transform_9, window_bounds = array<i64: 8, 1>}, {transform_indices = @transform_10, window_bounds = array<i64: 2, 8, 32>}, {transform_indices = @transform_11, window_bounds = array<i64: 2, 8, 32>}]} {
    %0 = tpu.iota {dimensions = array<i32: 1>} : vector<8x128xi32>
    %c96_i32 = arith.constant 96 : i32
    %1 = vector.broadcast %c96_i32 : i32 to vector<8x128xi32>
    %2 = arith.cmpi slt, %0, %1 : vector<8x128xi32>
    %c0 = arith.constant 0 : index
    %c0_0 = arith.constant 0 : index
    %3 = vector.load %arg4[%c0, %c0_0] : memref<32x128xf32, #tpu.memory_space<vmem>>, vector<32x128xf32>
    %c0_1 = arith.constant 0 : index
    %c0_2 = arith.constant 0 : index
    %c0_3 = arith.constant 0 : index
    %4 = vector.load %arg2[%c0_1, %c0_2, %c0_3] : memref<2x8x32xf32, #tpu.memory_space<vmem>>, vector<1x8x32xf32>
    %5 = vector.shape_cast %4 : vector<1x8x32xf32> to vector<8x32xf32>
    %c0_4 = arith.constant 0 : index
    %c0_5 = arith.constant 0 : index
    %c0_6 = arith.constant 0 : index
    %6 = vector.load %arg3[%c0_4, %c0_5, %c0_6] : memref<2x8x32xf32, #tpu.memory_space<vmem>>, vector<1x8x32xf32>
    %7 = vector.shape_cast %6 : vector<1x8x32xf32> to vector<8x32xf32>
    %c0_i32 = arith.constant 0 : i32
    %8 = arith.index_cast %c0_i32 : i32 to index
    %c0_7 = arith.constant 0 : index
    %c0_8 = arith.constant 0 : index
    %9 = vector.load %arg1[%8, %c0_7, %c0_8] : memref<8x8x128xf32, #tpu.memory_space<vmem>>, vector<1x8x128xf32>
    %10 = vector.shape_cast %9 : vector<1x8x128xf32> to vector<8x128xf32>
    %cst = arith.constant dense<0.000000e+00> : vector<8x128xf32>
    %11 = tpu.matmul %5, %3, %cst {dimension_numbers = #tpu.dot_dimension_numbers<[1], [0], [0], [1], [0, 0, 1, 1], [], []>} : vector<8x32xf32>, vector<32x128xf32>, vector<8x128xf32> -> vector<8x128xf32>
    %12 = arith.addf %10, %11 : vector<8x128xf32>
    %13 = arith.negf %12 : vector<8x128xf32>
    %14 = math.exp %13 : vector<8x128xf32>
    %cst_9 = arith.constant 1.000000e+00 : f32
    %15 = vector.broadcast %cst_9 : f32 to vector<8x128xf32>
    %16 = arith.addf %15, %14 : vector<8x128xf32>
    %17 = arith.divf %15, %16 : vector<8x128xf32>
    %18 = math.tanh %12 : vector<8x128xf32>
    %19 = arith.select %2, %17, %18 : vector<8x128xi1>, vector<8x128xf32>
    %20 = vector.extract_strided_slice %19 {offsets = [0, 0], sizes = [8, 32], strides = [1, 1]} : vector<8x128xf32> to vector<8x32xf32>
    %21 = vector.extract_strided_slice %19 {offsets = [0, 32], sizes = [8, 32], strides = [1, 1]} : vector<8x128xf32> to vector<8x32xf32>
    %22 = vector.extract_strided_slice %19 {offsets = [0, 64], sizes = [8, 32], strides = [1, 1]} : vector<8x128xf32> to vector<8x32xf32>
    %23 = vector.extract_strided_slice %19 {offsets = [0, 96], sizes = [8, 32], strides = [1, 1]} : vector<8x128xf32> to vector<8x32xf32>
    %24 = arith.mulf %21, %7 : vector<8x32xf32>
    %25 = arith.mulf %20, %23 : vector<8x32xf32>
    %26 = arith.addf %24, %25 : vector<8x32xf32>
    %27 = math.tanh %26 : vector<8x32xf32>
    %28 = arith.mulf %22, %27 : vector<8x32xf32>
    %c8_i32 = arith.constant 8 : i32
    %29 = arith.muli %c0_i32, %c8_i32 : i32
    %30 = arith.index_cast %29 : i32 to index
    %c0_10 = arith.constant 0 : index
    %31 = vector.load %arg13[%30, %c0_10] : memref<64x32xf32, #tpu.memory_space<vmem>>, vector<8x32xf32>
    tpu.vector_store %arg13[%30, %c0_10], %28 {strides = array<i32>} : memref<64x32xf32, #tpu.memory_space<vmem>>, vector<8x32xf32>,
    %c1_i32 = arith.constant 1 : i32
    %32 = arith.index_cast %c1_i32 : i32 to index
    %c0_11 = arith.constant 0 : index
    %c0_12 = arith.constant 0 : index
    %33 = vector.load %arg1[%32, %c0_11, %c0_12] : memref<8x8x128xf32, #tpu.memory_space<vmem>>, vector<1x8x128xf32>
    %34 = vector.shape_cast %33 : vector<1x8x128xf32> to vector<8x128xf32>
    %cst_13 = arith.constant dense<0.000000e+00> : vector<8x128xf32>
    %35 = tpu.matmul %28, %3, %cst_13 {dimension_numbers = #tpu.dot_dimension_numbers<[1], [0], [0], [1], [0, 0, 1, 1], [], []>} : vector<8x32xf32>, vector<32x128xf32>, vector<8x128xf32> -> vector<8x128xf32>
    %36 = arith.addf %34, %35 : vector<8x128xf32>
    %37 = arith.negf %36 : vector<8x128xf32>
    %38 = math.exp %37 : vector<8x128xf32>
    %cst_14 = arith.constant 1.000000e+00 : f32
    %39 = vector.broadcast %cst_14 : f32 to vector<8x128xf32>
    %40 = arith.addf %39, %38 : vector<8x128xf32>
    %41 = arith.divf %39, %40 : vector<8x128xf32>
    %42 = math.tanh %36 : vector<8x128xf32>
    %43 = arith.select %2, %41, %42 : vector<8x128xi1>, vector<8x128xf32>
    %44 = vector.extract_strided_slice %43 {offsets = [0, 0], sizes = [8, 32], strides = [1, 1]} : vector<8x128xf32> to vector<8x32xf32>
    %45 = vector.extract_strided_slice %43 {offsets = [0, 32], sizes = [8, 32], strides = [1, 1]} : vector<8x128xf32> to vector<8x32xf32>
    %46 = vector.extract_strided_slice %43 {offsets = [0, 64], sizes = [8, 32], strides = [1, 1]} : vector<8x128xf32> to vector<8x32xf32>
    %47 = vector.extract_strided_slice %43 {offsets = [0, 96], sizes = [8, 32], strides = [1, 1]} : vector<8x128xf32> to vector<8x32xf32>
    %48 = arith.mulf %45, %26 : vector<8x32xf32>
    %49 = arith.mulf %44, %47 : vector<8x32xf32>
    %50 = arith.addf %48, %49 : vector<8x32xf32>
    %51 = math.tanh %50 : vector<8x32xf32>
    %52 = arith.mulf %46, %51 : vector<8x32xf32>
    %c8_i32_15 = arith.constant 8 : i32
    %53 = arith.muli %c1_i32, %c8_i32_15 : i32
    %54 = arith.index_cast %53 : i32 to index
    %c0_16 = arith.constant 0 : index
    %55 = vector.load %arg13[%54, %c0_16] : memref<64x32xf32, #tpu.memory_space<vmem>>, vector<8x32xf32>
    tpu.vector_store %arg13[%54, %c0_16], %52 {strides = array<i32>} : memref<64x32xf32, #tpu.memory_space<vmem>>, vector<8x32xf32>,
    %c2_i32 = arith.constant 2 : i32
    %56 = arith.index_cast %c2_i32 : i32 to index
    %c0_17 = arith.constant 0 : index
    %c0_18 = arith.constant 0 : index
    %57 = vector.load %arg1[%56, %c0_17, %c0_18] : memref<8x8x128xf32, #tpu.memory_space<vmem>>, vector<1x8x128xf32>
    %58 = vector.shape_cast %57 : vector<1x8x128xf32> to vector<8x128xf32>
    %cst_19 = arith.constant dense<0.000000e+00> : vector<8x128xf32>
    %59 = tpu.matmul %52, %3, %cst_19 {dimension_numbers = #tpu.dot_dimension_numbers<[1], [0], [0], [1], [0, 0, 1, 1], [], []>} : vector<8x32xf32>, vector<32x128xf32>, vector<8x128xf32> -> vector<8x128xf32>
    %60 = arith.addf %58, %59 : vector<8x128xf32>
    %61 = arith.negf %60 : vector<8x128xf32>
    %62 = math.exp %61 : vector<8x128xf32>
    %cst_20 = arith.constant 1.000000e+00 : f32
    %63 = vector.broadcast %cst_20 : f32 to vector<8x128xf32>
    %64 = arith.addf %63, %62 : vector<8x128xf32>
    %65 = arith.divf %63, %64 : vector<8x128xf32>
    %66 = math.tanh %60 : vector<8x128xf32>
    %67 = arith.select %2, %65, %66 : vector<8x128xi1>, vector<8x128xf32>
    %68 = vector.extract_strided_slice %67 {offsets = [0, 0], sizes = [8, 32], strides = [1, 1]} : vector<8x128xf32> to vector<8x32xf32>
    %69 = vector.extract_strided_slice %67 {offsets = [0, 32], sizes = [8, 32], strides = [1, 1]} : vector<8x128xf32> to vector<8x32xf32>
    %70 = vector.extract_strided_slice %67 {offsets = [0, 64], sizes = [8, 32], strides = [1, 1]} : vector<8x128xf32> to vector<8x32xf32>
    %71 = vector.extract_strided_slice %67 {offsets = [0, 96], sizes = [8, 32], strides = [1, 1]} : vector<8x128xf32> to vector<8x32xf32>
    %72 = arith.mulf %69, %50 : vector<8x32xf32>
    %73 = arith.mulf %68, %71 : vector<8x32xf32>
    %74 = arith.addf %72, %73 : vector<8x32xf32>
    %75 = math.tanh %74 : vector<8x32xf32>
    %76 = arith.mulf %70, %75 : vector<8x32xf32>
    %c8_i32_21 = arith.constant 8 : i32
    %77 = arith.muli %c2_i32, %c8_i32_21 : i32
    %78 = arith.index_cast %77 : i32 to index
    %c0_22 = arith.constant 0 : index
    %79 = vector.load %arg13[%78, %c0_22] : memref<64x32xf32, #tpu.memory_space<vmem>>, vector<8x32xf32>
    tpu.vector_store %arg13[%78, %c0_22], %76 {strides = array<i32>} : memref<64x32xf32, #tpu.memory_space<vmem>>, vector<8x32xf32>,
    %c3_i32 = arith.constant 3 : i32
    %80 = arith.index_cast %c3_i32 : i32 to index
    %c0_23 = arith.constant 0 : index
    %c0_24 = arith.constant 0 : index
    %81 = vector.load %arg1[%80, %c0_23, %c0_24] : memref<8x8x128xf32, #tpu.memory_space<vmem>>, vector<1x8x128xf32>
    %82 = vector.shape_cast %81 : vector<1x8x128xf32> to vector<8x128xf32>
    %cst_25 = arith.constant dense<0.000000e+00> : vector<8x128xf32>
    %83 = tpu.matmul %76, %3, %cst_25 {dimension_numbers = #tpu.dot_dimension_numbers<[1], [0], [0], [1], [0, 0, 1, 1], [], []>} : vector<8x32xf32>, vector<32x128xf32>, vector<8x128xf32> -> vector<8x128xf32>
    %84 = arith.addf %82, %83 : vector<8x128xf32>
    %85 = arith.negf %84 : vector<8x128xf32>
    %86 = math.exp %85 : vector<8x128xf32>
    %cst_26 = arith.constant 1.000000e+00 : f32
    %87 = vector.broadcast %cst_26 : f32 to vector<8x128xf32>
    %88 = arith.addf %87, %86 : vector<8x128xf32>
    %89 = arith.divf %87, %88 : vector<8x128xf32>
    %90 = math.tanh %84 : vector<8x128xf32>
    %91 = arith.select %2, %89, %90 : vector<8x128xi1>, vector<8x128xf32>
    %92 = vector.extract_strided_slice %91 {offsets = [0, 0], sizes = [8, 32], strides = [1, 1]} : vector<8x128xf32> to vector<8x32xf32>
    %93 = vector.extract_strided_slice %91 {offsets = [0, 32], sizes = [8, 32], strides = [1, 1]} : vector<8x128xf32> to vector<8x32xf32>
    %94 = vector.extract_strided_slice %91 {offsets = [0, 64], sizes = [8, 32], strides = [1, 1]} : vector<8x128xf32> to vector<8x32xf32>
    %95 = vector.extract_strided_slice %91 {offsets = [0, 96], sizes = [8, 32], strides = [1, 1]} : vector<8x128xf32> to vector<8x32xf32>
    %96 = arith.mulf %93, %74 : vector<8x32xf32>
    %97 = arith.mulf %92, %95 : vector<8x32xf32>
    %98 = arith.addf %96, %97 : vector<8x32xf32>
    %99 = math.tanh %98 : vector<8x32xf32>
    %100 = arith.mulf %94, %99 : vector<8x32xf32>
    %c8_i32_27 = arith.constant 8 : i32
    %101 = arith.muli %c3_i32, %c8_i32_27 : i32
    %102 = arith.index_cast %101 : i32 to index
    %c0_28 = arith.constant 0 : index
    %103 = vector.load %arg13[%102, %c0_28] : memref<64x32xf32, #tpu.memory_space<vmem>>, vector<8x32xf32>
    tpu.vector_store %arg13[%102, %c0_28], %100 {strides = array<i32>} : memref<64x32xf32, #tpu.memory_space<vmem>>, vector<8x32xf32>,
    %c4_i32 = arith.constant 4 : i32
    %104 = arith.index_cast %c4_i32 : i32 to index
    %c0_29 = arith.constant 0 : index
    %c0_30 = arith.constant 0 : index
    %105 = vector.load %arg1[%104, %c0_29, %c0_30] : memref<8x8x128xf32, #tpu.memory_space<vmem>>, vector<1x8x128xf32>
    %106 = vector.shape_cast %105 : vector<1x8x128xf32> to vector<8x128xf32>
    %cst_31 = arith.constant dense<0.000000e+00> : vector<8x128xf32>
    %107 = tpu.matmul %100, %3, %cst_31 {dimension_numbers = #tpu.dot_dimension_numbers<[1], [0], [0], [1], [0, 0, 1, 1], [], []>} : vector<8x32xf32>, vector<32x128xf32>, vector<8x128xf32> -> vector<8x128xf32>
    %108 = arith.addf %106, %107 : vector<8x128xf32>
    %109 = arith.negf %108 : vector<8x128xf32>
    %110 = math.exp %109 : vector<8x128xf32>
    %cst_32 = arith.constant 1.000000e+00 : f32
    %111 = vector.broadcast %cst_32 : f32 to vector<8x128xf32>
    %112 = arith.addf %111, %110 : vector<8x128xf32>
    %113 = arith.divf %111, %112 : vector<8x128xf32>
    %114 = math.tanh %108 : vector<8x128xf32>
    %115 = arith.select %2, %113, %114 : vector<8x128xi1>, vector<8x128xf32>
    %116 = vector.extract_strided_slice %115 {offsets = [0, 0], sizes = [8, 32], strides = [1, 1]} : vector<8x128xf32> to vector<8x32xf32>
    %117 = vector.extract_strided_slice %115 {offsets = [0, 32], sizes = [8, 32], strides = [1, 1]} : vector<8x128xf32> to vector<8x32xf32>
    %118 = vector.extract_strided_slice %115 {offsets = [0, 64], sizes = [8, 32], strides = [1, 1]} : vector<8x128xf32> to vector<8x32xf32>
    %119 = vector.extract_strided_slice %115 {offsets = [0, 96], sizes = [8, 32], strides = [1, 1]} : vector<8x128xf32> to vector<8x32xf32>
    %120 = arith.mulf %117, %98 : vector<8x32xf32>
    %121 = arith.mulf %116, %119 : vector<8x32xf32>
    %122 = arith.addf %120, %121 : vector<8x32xf32>
    %123 = math.tanh %122 : vector<8x32xf32>
    %124 = arith.mulf %118, %123 : vector<8x32xf32>
    %c8_i32_33 = arith.constant 8 : i32
    %125 = arith.muli %c4_i32, %c8_i32_33 : i32
    %126 = arith.index_cast %125 : i32 to index
    %c0_34 = arith.constant 0 : index
    %127 = vector.load %arg13[%126, %c0_34] : memref<64x32xf32, #tpu.memory_space<vmem>>, vector<8x32xf32>
    tpu.vector_store %arg13[%126, %c0_34], %124 {strides = array<i32>} : memref<64x32xf32, #tpu.memory_space<vmem>>, vector<8x32xf32>,
    %c5_i32 = arith.constant 5 : i32
    %128 = arith.index_cast %c5_i32 : i32 to index
    %c0_35 = arith.constant 0 : index
    %c0_36 = arith.constant 0 : index
    %129 = vector.load %arg1[%128, %c0_35, %c0_36] : memref<8x8x128xf32, #tpu.memory_space<vmem>>, vector<1x8x128xf32>
    %130 = vector.shape_cast %129 : vector<1x8x128xf32> to vector<8x128xf32>
    %cst_37 = arith.constant dense<0.000000e+00> : vector<8x128xf32>
    %131 = tpu.matmul %124, %3, %cst_37 {dimension_numbers = #tpu.dot_dimension_numbers<[1], [0], [0], [1], [0, 0, 1, 1], [], []>} : vector<8x32xf32>, vector<32x128xf32>, vector<8x128xf32> -> vector<8x128xf32>
    %132 = arith.addf %130, %131 : vector<8x128xf32>
    %133 = arith.negf %132 : vector<8x128xf32>
    %134 = math.exp %133 : vector<8x128xf32>
    %cst_38 = arith.constant 1.000000e+00 : f32
    %135 = vector.broadcast %cst_38 : f32 to vector<8x128xf32>
    %136 = arith.addf %135, %134 : vector<8x128xf32>
    %137 = arith.divf %135, %136 : vector<8x128xf32>
    %138 = math.tanh %132 : vector<8x128xf32>
    %139 = arith.select %2, %137, %138 : vector<8x128xi1>, vector<8x128xf32>
    %140 = vector.extract_strided_slice %139 {offsets = [0, 0], sizes = [8, 32], strides = [1, 1]} : vector<8x128xf32> to vector<8x32xf32>
    %141 = vector.extract_strided_slice %139 {offsets = [0, 32], sizes = [8, 32], strides = [1, 1]} : vector<8x128xf32> to vector<8x32xf32>
    %142 = vector.extract_strided_slice %139 {offsets = [0, 64], sizes = [8, 32], strides = [1, 1]} : vector<8x128xf32> to vector<8x32xf32>
    %143 = vector.extract_strided_slice %139 {offsets = [0, 96], sizes = [8, 32], strides = [1, 1]} : vector<8x128xf32> to vector<8x32xf32>
    %144 = arith.mulf %141, %122 : vector<8x32xf32>
    %145 = arith.mulf %140, %143 : vector<8x32xf32>
    %146 = arith.addf %144, %145 : vector<8x32xf32>
    %147 = math.tanh %146 : vector<8x32xf32>
    %148 = arith.mulf %142, %147 : vector<8x32xf32>
    %c8_i32_39 = arith.constant 8 : i32
    %149 = arith.muli %c5_i32, %c8_i32_39 : i32
    %150 = arith.index_cast %149 : i32 to index
    %c0_40 = arith.constant 0 : index
    %151 = vector.load %arg13[%150, %c0_40] : memref<64x32xf32, #tpu.memory_space<vmem>>, vector<8x32xf32>
    tpu.vector_store %arg13[%150, %c0_40], %148 {strides = array<i32>} : memref<64x32xf32, #tpu.memory_space<vmem>>, vector<8x32xf32>,
    %c6_i32 = arith.constant 6 : i32
    %152 = arith.index_cast %c6_i32 : i32 to index
    %c0_41 = arith.constant 0 : index
    %c0_42 = arith.constant 0 : index
    %153 = vector.load %arg1[%152, %c0_41, %c0_42] : memref<8x8x128xf32, #tpu.memory_space<vmem>>, vector<1x8x128xf32>
    %154 = vector.shape_cast %153 : vector<1x8x128xf32> to vector<8x128xf32>
    %cst_43 = arith.constant dense<0.000000e+00> : vector<8x128xf32>
    %155 = tpu.matmul %148, %3, %cst_43 {dimension_numbers = #tpu.dot_dimension_numbers<[1], [0], [0], [1], [0, 0, 1, 1], [], []>} : vector<8x32xf32>, vector<32x128xf32>, vector<8x128xf32> -> vector<8x128xf32>
    %156 = arith.addf %154, %155 : vector<8x128xf32>
    %157 = arith.negf %156 : vector<8x128xf32>
    %158 = math.exp %157 : vector<8x128xf32>
    %cst_44 = arith.constant 1.000000e+00 : f32
    %159 = vector.broadcast %cst_44 : f32 to vector<8x128xf32>
    %160 = arith.addf %159, %158 : vector<8x128xf32>
    %161 = arith.divf %159, %160 : vector<8x128xf32>
    %162 = math.tanh %156 : vector<8x128xf32>
    %163 = arith.select %2, %161, %162 : vector<8x128xi1>, vector<8x128xf32>
    %164 = vector.extract_strided_slice %163 {offsets = [0, 0], sizes = [8, 32], strides = [1, 1]} : vector<8x128xf32> to vector<8x32xf32>
    %165 = vector.extract_strided_slice %163 {offsets = [0, 32], sizes = [8, 32], strides = [1, 1]} : vector<8x128xf32> to vector<8x32xf32>
    %166 = vector.extract_strided_slice %163 {offsets = [0, 64], sizes = [8, 32], strides = [1, 1]} : vector<8x128xf32> to vector<8x32xf32>
    %167 = vector.extract_strided_slice %163 {offsets = [0, 96], sizes = [8, 32], strides = [1, 1]} : vector<8x128xf32> to vector<8x32xf32>
    %168 = arith.mulf %165, %146 : vector<8x32xf32>
    %169 = arith.mulf %164, %167 : vector<8x32xf32>
    %170 = arith.addf %168, %169 : vector<8x32xf32>
    %171 = math.tanh %170 : vector<8x32xf32>
    %172 = arith.mulf %166, %171 : vector<8x32xf32>
    %c8_i32_45 = arith.constant 8 : i32
    %173 = arith.muli %c6_i32, %c8_i32_45 : i32
    %174 = arith.index_cast %173 : i32 to index
    %c0_46 = arith.constant 0 : index
    %175 = vector.load %arg13[%174, %c0_46] : memref<64x32xf32, #tpu.memory_space<vmem>>, vector<8x32xf32>
    tpu.vector_store %arg13[%174, %c0_46], %172 {strides = array<i32>} : memref<64x32xf32, #tpu.memory_space<vmem>>, vector<8x32xf32>,
    %c7_i32 = arith.constant 7 : i32
    %176 = arith.index_cast %c7_i32 : i32 to index
    %c0_47 = arith.constant 0 : index
    %c0_48 = arith.constant 0 : index
    %177 = vector.load %arg1[%176, %c0_47, %c0_48] : memref<8x8x128xf32, #tpu.memory_space<vmem>>, vector<1x8x128xf32>
    %178 = vector.shape_cast %177 : vector<1x8x128xf32> to vector<8x128xf32>
    %cst_49 = arith.constant dense<0.000000e+00> : vector<8x128xf32>
    %179 = tpu.matmul %172, %3, %cst_49 {dimension_numbers = #tpu.dot_dimension_numbers<[1], [0], [0], [1], [0, 0, 1, 1], [], []>} : vector<8x32xf32>, vector<32x128xf32>, vector<8x128xf32> -> vector<8x128xf32>
    %180 = arith.addf %178, %179 : vector<8x128xf32>
    %181 = arith.negf %180 : vector<8x128xf32>
    %182 = math.exp %181 : vector<8x128xf32>
    %cst_50 = arith.constant 1.000000e+00 : f32
    %183 = vector.broadcast %cst_50 : f32 to vector<8x128xf32>
    %184 = arith.addf %183, %182 : vector<8x128xf32>
    %185 = arith.divf %183, %184 : vector<8x128xf32>
    %186 = math.tanh %180 : vector<8x128xf32>
    %187 = arith.select %2, %185, %186 : vector<8x128xi1>, vector<8x128xf32>
    %188 = vector.extract_strided_slice %187 {offsets = [0, 0], sizes = [8, 32], strides = [1, 1]} : vector<8x128xf32> to vector<8x32xf32>
    %189 = vector.extract_strided_slice %187 {offsets = [0, 32], sizes = [8, 32], strides = [1, 1]} : vector<8x128xf32> to vector<8x32xf32>
    %190 = vector.extract_strided_slice %187 {offsets = [0, 64], sizes = [8, 32], strides = [1, 1]} : vector<8x128xf32> to vector<8x32xf32>
    %191 = vector.extract_strided_slice %187 {offsets = [0, 96], sizes = [8, 32], strides = [1, 1]} : vector<8x128xf32> to vector<8x32xf32>
    %192 = arith.mulf %189, %170 : vector<8x32xf32>
    %193 = arith.mulf %188, %191 : vector<8x32xf32>
    %194 = arith.addf %192, %193 : vector<8x32xf32>
    %195 = math.tanh %194 : vector<8x32xf32>
    %196 = arith.mulf %190, %195 : vector<8x32xf32>
    %c8_i32_51 = arith.constant 8 : i32
    %197 = arith.muli %c7_i32, %c8_i32_51 : i32
    %198 = arith.index_cast %197 : i32 to index
    %c0_52 = arith.constant 0 : index
    %199 = vector.load %arg13[%198, %c0_52] : memref<64x32xf32, #tpu.memory_space<vmem>>, vector<8x32xf32>
    tpu.vector_store %arg13[%198, %c0_52], %196 {strides = array<i32>} : memref<64x32xf32, #tpu.memory_space<vmem>>, vector<8x32xf32>,
    %c8_i32_53 = arith.constant 8 : i32
    %c0_54 = arith.constant 0 : index
    %c0_55 = arith.constant 0 : index
    %c0_56 = arith.constant 0 : index
    %200 = vector.load %arg11[%c0_54, %c0_55, %c0_56] : memref<2x8x32xf32, #tpu.memory_space<vmem>>, vector<1x8x32xf32>
    %201 = vector.shape_cast %200 : vector<1x8x32xf32> to vector<8x32xf32>
    %202 = vector.shape_cast %196 : vector<8x32xf32> to vector<1x8x32xf32>
    tpu.vector_store %arg11[%c0_54, %c0_55, %c0_56], %202 {strides = array<i32>} : memref<2x8x32xf32, #tpu.memory_space<vmem>>, vector<1x8x32xf32>,
    %c0_57 = arith.constant 0 : index
    %c0_58 = arith.constant 0 : index
    %c0_59 = arith.constant 0 : index
    %203 = vector.load %arg12[%c0_57, %c0_58, %c0_59] : memref<2x8x32xf32, #tpu.memory_space<vmem>>, vector<1x8x32xf32>
    %204 = vector.shape_cast %203 : vector<1x8x32xf32> to vector<8x32xf32>
    %205 = vector.shape_cast %194 : vector<8x32xf32> to vector<1x8x32xf32>
    tpu.vector_store %arg12[%c0_57, %c0_58, %c0_59], %205 {strides = array<i32>} : memref<2x8x32xf32, #tpu.memory_space<vmem>>, vector<1x8x32xf32>,
    %c0_60 = arith.constant 0 : index
    %c0_61 = arith.constant 0 : index
    %206 = vector.load %arg13[%c0_60, %c0_61] : memref<64x32xf32, #tpu.memory_space<vmem>>, vector<64x32xf32>
    %c0_62 = arith.constant 0 : index
    %c0_63 = arith.constant 0 : index
    %207 = vector.load %arg5[%c0_62, %c0_63] : memref<32x128xf32, #tpu.memory_space<vmem>>, vector<32x128xf32>
    %cst_64 = arith.constant dense<0.000000e+00> : vector<64x128xf32>
    %208 = tpu.matmul %206, %207, %cst_64 {dimension_numbers = #tpu.dot_dimension_numbers<[1], [0], [0], [1], [0, 0, 1, 1], [], []>} : vector<64x32xf32>, vector<32x128xf32>, vector<64x128xf32> -> vector<64x128xf32>
    %c0_65 = arith.constant 0 : index
    %c0_66 = arith.constant 0 : index
    %209 = vector.load %arg7[%c0_65, %c0_66] : memref<1x128xf32, #tpu.memory_space<vmem>>, vector<1x128xf32>
    %210 = vector.broadcast %209 : vector<1x128xf32> to vector<64x128xf32>
    %211 = arith.addf %208, %210 : vector<64x128xf32>
    %c0_67 = arith.constant 0 : index
    %c0_68 = arith.constant 0 : index
    %212 = vector.load %arg14[%c0_67, %c0_68] : memref<64x128xf32, #tpu.memory_space<vmem>>, vector<64x128xf32>
    tpu.vector_store %arg14[%c0_67, %c0_68], %211 {strides = array<i32>} : memref<64x128xf32, #tpu.memory_space<vmem>>, vector<64x128xf32>,
    %c0_69 = arith.constant 0 : index
    %c0_70 = arith.constant 0 : index
    %213 = vector.load %arg6[%c0_69, %c0_70] : memref<32x128xf32, #tpu.memory_space<vmem>>, vector<32x128xf32>
    %c1 = arith.constant 1 : index
    %c0_71 = arith.constant 0 : index
    %c0_72 = arith.constant 0 : index
    %214 = vector.load %arg2[%c1, %c0_71, %c0_72] : memref<2x8x32xf32, #tpu.memory_space<vmem>>, vector<1x8x32xf32>
    %215 = vector.shape_cast %214 : vector<1x8x32xf32> to vector<8x32xf32>
    %c1_73 = arith.constant 1 : index
    %c0_74 = arith.constant 0 : index
    %c0_75 = arith.constant 0 : index
    %216 = vector.load %arg3[%c1_73, %c0_74, %c0_75] : memref<2x8x32xf32, #tpu.memory_space<vmem>>, vector<1x8x32xf32>
    %217 = vector.shape_cast %216 : vector<1x8x32xf32> to vector<8x32xf32>
    %c0_i32_76 = arith.constant 0 : i32
    %c8_i32_77 = arith.constant 8 : i32
    %218 = arith.muli %c0_i32_76, %c8_i32_77 : i32
    %219 = arith.index_cast %218 : i32 to index
    %c0_78 = arith.constant 0 : index
    %220 = vector.load %arg14[%219, %c0_78] : memref<64x128xf32, #tpu.memory_space<vmem>>, vector<8x128xf32>
    %cst_79 = arith.constant dense<0.000000e+00> : vector<8x128xf32>
    %221 = tpu.matmul %215, %213, %cst_79 {dimension_numbers = #tpu.dot_dimension_numbers<[1], [0], [0], [1], [0, 0, 1, 1], [], []>} : vector<8x32xf32>, vector<32x128xf32>, vector<8x128xf32> -> vector<8x128xf32>
    %222 = arith.addf %220, %221 : vector<8x128xf32>
    %223 = arith.negf %222 : vector<8x128xf32>
    %224 = math.exp %223 : vector<8x128xf32>
    %cst_80 = arith.constant 1.000000e+00 : f32
    %225 = vector.broadcast %cst_80 : f32 to vector<8x128xf32>
    %226 = arith.addf %225, %224 : vector<8x128xf32>
    %227 = arith.divf %225, %226 : vector<8x128xf32>
    %228 = math.tanh %222 : vector<8x128xf32>
    %229 = arith.select %2, %227, %228 : vector<8x128xi1>, vector<8x128xf32>
    %230 = vector.extract_strided_slice %229 {offsets = [0, 0], sizes = [8, 32], strides = [1, 1]} : vector<8x128xf32> to vector<8x32xf32>
    %231 = vector.extract_strided_slice %229 {offsets = [0, 32], sizes = [8, 32], strides = [1, 1]} : vector<8x128xf32> to vector<8x32xf32>
    %232 = vector.extract_strided_slice %229 {offsets = [0, 64], sizes = [8, 32], strides = [1, 1]} : vector<8x128xf32> to vector<8x32xf32>
    %233 = vector.extract_strided_slice %229 {offsets = [0, 96], sizes = [8, 32], strides = [1, 1]} : vector<8x128xf32> to vector<8x32xf32>
    %234 = arith.mulf %231, %217 : vector<8x32xf32>
    %235 = arith.mulf %230, %233 : vector<8x32xf32>
    %236 = arith.addf %234, %235 : vector<8x32xf32>
    %237 = math.tanh %236 : vector<8x32xf32>
    %238 = arith.mulf %232, %237 : vector<8x32xf32>
    %c1_i32_81 = arith.constant 1 : i32
    %c8_i32_82 = arith.constant 8 : i32
    %239 = arith.muli %c1_i32_81, %c8_i32_82 : i32
    %240 = arith.index_cast %239 : i32 to index
    %c0_83 = arith.constant 0 : index
    %241 = vector.load %arg14[%240, %c0_83] : memref<64x128xf32, #tpu.memory_space<vmem>>, vector<8x128xf32>
    %cst_84 = arith.constant dense<0.000000e+00> : vector<8x128xf32>
    %242 = tpu.matmul %238, %213, %cst_84 {dimension_numbers = #tpu.dot_dimension_numbers<[1], [0], [0], [1], [0, 0, 1, 1], [], []>} : vector<8x32xf32>, vector<32x128xf32>, vector<8x128xf32> -> vector<8x128xf32>
    %243 = arith.addf %241, %242 : vector<8x128xf32>
    %244 = arith.negf %243 : vector<8x128xf32>
    %245 = math.exp %244 : vector<8x128xf32>
    %cst_85 = arith.constant 1.000000e+00 : f32
    %246 = vector.broadcast %cst_85 : f32 to vector<8x128xf32>
    %247 = arith.addf %246, %245 : vector<8x128xf32>
    %248 = arith.divf %246, %247 : vector<8x128xf32>
    %249 = math.tanh %243 : vector<8x128xf32>
    %250 = arith.select %2, %248, %249 : vector<8x128xi1>, vector<8x128xf32>
    %251 = vector.extract_strided_slice %250 {offsets = [0, 0], sizes = [8, 32], strides = [1, 1]} : vector<8x128xf32> to vector<8x32xf32>
    %252 = vector.extract_strided_slice %250 {offsets = [0, 32], sizes = [8, 32], strides = [1, 1]} : vector<8x128xf32> to vector<8x32xf32>
    %253 = vector.extract_strided_slice %250 {offsets = [0, 64], sizes = [8, 32], strides = [1, 1]} : vector<8x128xf32> to vector<8x32xf32>
    %254 = vector.extract_strided_slice %250 {offsets = [0, 96], sizes = [8, 32], strides = [1, 1]} : vector<8x128xf32> to vector<8x32xf32>
    %255 = arith.mulf %252, %236 : vector<8x32xf32>
    %256 = arith.mulf %251, %254 : vector<8x32xf32>
    %257 = arith.addf %255, %256 : vector<8x32xf32>
    %258 = math.tanh %257 : vector<8x32xf32>
    %259 = arith.mulf %253, %258 : vector<8x32xf32>
    %c2_i32_86 = arith.constant 2 : i32
    %c8_i32_87 = arith.constant 8 : i32
    %260 = arith.muli %c2_i32_86, %c8_i32_87 : i32
    %261 = arith.index_cast %260 : i32 to index
    %c0_88 = arith.constant 0 : index
    %262 = vector.load %arg14[%261, %c0_88] : memref<64x128xf32, #tpu.memory_space<vmem>>, vector<8x128xf32>
    %cst_89 = arith.constant dense<0.000000e+00> : vector<8x128xf32>
    %263 = tpu.matmul %259, %213, %cst_89 {dimension_numbers = #tpu.dot_dimension_numbers<[1], [0], [0], [1], [0, 0, 1, 1], [], []>} : vector<8x32xf32>, vector<32x128xf32>, vector<8x128xf32> -> vector<8x128xf32>
    %264 = arith.addf %262, %263 : vector<8x128xf32>
    %265 = arith.negf %264 : vector<8x128xf32>
    %266 = math.exp %265 : vector<8x128xf32>
    %cst_90 = arith.constant 1.000000e+00 : f32
    %267 = vector.broadcast %cst_90 : f32 to vector<8x128xf32>
    %268 = arith.addf %267, %266 : vector<8x128xf32>
    %269 = arith.divf %267, %268 : vector<8x128xf32>
    %270 = math.tanh %264 : vector<8x128xf32>
    %271 = arith.select %2, %269, %270 : vector<8x128xi1>, vector<8x128xf32>
    %272 = vector.extract_strided_slice %271 {offsets = [0, 0], sizes = [8, 32], strides = [1, 1]} : vector<8x128xf32> to vector<8x32xf32>
    %273 = vector.extract_strided_slice %271 {offsets = [0, 32], sizes = [8, 32], strides = [1, 1]} : vector<8x128xf32> to vector<8x32xf32>
    %274 = vector.extract_strided_slice %271 {offsets = [0, 64], sizes = [8, 32], strides = [1, 1]} : vector<8x128xf32> to vector<8x32xf32>
    %275 = vector.extract_strided_slice %271 {offsets = [0, 96], sizes = [8, 32], strides = [1, 1]} : vector<8x128xf32> to vector<8x32xf32>
    %276 = arith.mulf %273, %257 : vector<8x32xf32>
    %277 = arith.mulf %272, %275 : vector<8x32xf32>
    %278 = arith.addf %276, %277 : vector<8x32xf32>
    %279 = math.tanh %278 : vector<8x32xf32>
    %280 = arith.mulf %274, %279 : vector<8x32xf32>
    %c3_i32_91 = arith.constant 3 : i32
    %c8_i32_92 = arith.constant 8 : i32
    %281 = arith.muli %c3_i32_91, %c8_i32_92 : i32
    %282 = arith.index_cast %281 : i32 to index
    %c0_93 = arith.constant 0 : index
    %283 = vector.load %arg14[%282, %c0_93] : memref<64x128xf32, #tpu.memory_space<vmem>>, vector<8x128xf32>
    %cst_94 = arith.constant dense<0.000000e+00> : vector<8x128xf32>
    %284 = tpu.matmul %280, %213, %cst_94 {dimension_numbers = #tpu.dot_dimension_numbers<[1], [0], [0], [1], [0, 0, 1, 1], [], []>} : vector<8x32xf32>, vector<32x128xf32>, vector<8x128xf32> -> vector<8x128xf32>
    %285 = arith.addf %283, %284 : vector<8x128xf32>
    %286 = arith.negf %285 : vector<8x128xf32>
    %287 = math.exp %286 : vector<8x128xf32>
    %cst_95 = arith.constant 1.000000e+00 : f32
    %288 = vector.broadcast %cst_95 : f32 to vector<8x128xf32>
    %289 = arith.addf %288, %287 : vector<8x128xf32>
    %290 = arith.divf %288, %289 : vector<8x128xf32>
    %291 = math.tanh %285 : vector<8x128xf32>
    %292 = arith.select %2, %290, %291 : vector<8x128xi1>, vector<8x128xf32>
    %293 = vector.extract_strided_slice %292 {offsets = [0, 0], sizes = [8, 32], strides = [1, 1]} : vector<8x128xf32> to vector<8x32xf32>
    %294 = vector.extract_strided_slice %292 {offsets = [0, 32], sizes = [8, 32], strides = [1, 1]} : vector<8x128xf32> to vector<8x32xf32>
    %295 = vector.extract_strided_slice %292 {offsets = [0, 64], sizes = [8, 32], strides = [1, 1]} : vector<8x128xf32> to vector<8x32xf32>
    %296 = vector.extract_strided_slice %292 {offsets = [0, 96], sizes = [8, 32], strides = [1, 1]} : vector<8x128xf32> to vector<8x32xf32>
    %297 = arith.mulf %294, %278 : vector<8x32xf32>
    %298 = arith.mulf %293, %296 : vector<8x32xf32>
    %299 = arith.addf %297, %298 : vector<8x32xf32>
    %300 = math.tanh %299 : vector<8x32xf32>
    %301 = arith.mulf %295, %300 : vector<8x32xf32>
    %c4_i32_96 = arith.constant 4 : i32
    %c8_i32_97 = arith.constant 8 : i32
    %302 = arith.muli %c4_i32_96, %c8_i32_97 : i32
    %303 = arith.index_cast %302 : i32 to index
    %c0_98 = arith.constant 0 : index
    %304 = vector.load %arg14[%303, %c0_98] : memref<64x128xf32, #tpu.memory_space<vmem>>, vector<8x128xf32>
    %cst_99 = arith.constant dense<0.000000e+00> : vector<8x128xf32>
    %305 = tpu.matmul %301, %213, %cst_99 {dimension_numbers = #tpu.dot_dimension_numbers<[1], [0], [0], [1], [0, 0, 1, 1], [], []>} : vector<8x32xf32>, vector<32x128xf32>, vector<8x128xf32> -> vector<8x128xf32>
    %306 = arith.addf %304, %305 : vector<8x128xf32>
    %307 = arith.negf %306 : vector<8x128xf32>
    %308 = math.exp %307 : vector<8x128xf32>
    %cst_100 = arith.constant 1.000000e+00 : f32
    %309 = vector.broadcast %cst_100 : f32 to vector<8x128xf32>
    %310 = arith.addf %309, %308 : vector<8x128xf32>
    %311 = arith.divf %309, %310 : vector<8x128xf32>
    %312 = math.tanh %306 : vector<8x128xf32>
    %313 = arith.select %2, %311, %312 : vector<8x128xi1>, vector<8x128xf32>
    %314 = vector.extract_strided_slice %313 {offsets = [0, 0], sizes = [8, 32], strides = [1, 1]} : vector<8x128xf32> to vector<8x32xf32>
    %315 = vector.extract_strided_slice %313 {offsets = [0, 32], sizes = [8, 32], strides = [1, 1]} : vector<8x128xf32> to vector<8x32xf32>
    %316 = vector.extract_strided_slice %313 {offsets = [0, 64], sizes = [8, 32], strides = [1, 1]} : vector<8x128xf32> to vector<8x32xf32>
    %317 = vector.extract_strided_slice %313 {offsets = [0, 96], sizes = [8, 32], strides = [1, 1]} : vector<8x128xf32> to vector<8x32xf32>
    %318 = arith.mulf %315, %299 : vector<8x32xf32>
    %319 = arith.mulf %314, %317 : vector<8x32xf32>
    %320 = arith.addf %318, %319 : vector<8x32xf32>
    %321 = math.tanh %320 : vector<8x32xf32>
    %322 = arith.mulf %316, %321 : vector<8x32xf32>
    %c5_i32_101 = arith.constant 5 : i32
    %c8_i32_102 = arith.constant 8 : i32
    %323 = arith.muli %c5_i32_101, %c8_i32_102 : i32
    %324 = arith.index_cast %323 : i32 to index
    %c0_103 = arith.constant 0 : index
    %325 = vector.load %arg14[%324, %c0_103] : memref<64x128xf32, #tpu.memory_space<vmem>>, vector<8x128xf32>
    %cst_104 = arith.constant dense<0.000000e+00> : vector<8x128xf32>
    %326 = tpu.matmul %322, %213, %cst_104 {dimension_numbers = #tpu.dot_dimension_numbers<[1], [0], [0], [1], [0, 0, 1, 1], [], []>} : vector<8x32xf32>, vector<32x128xf32>, vector<8x128xf32> -> vector<8x128xf32>
    %327 = arith.addf %325, %326 : vector<8x128xf32>
    %328 = arith.negf %327 : vector<8x128xf32>
    %329 = math.exp %328 : vector<8x128xf32>
    %cst_105 = arith.constant 1.000000e+00 : f32
    %330 = vector.broadcast %cst_105 : f32 to vector<8x128xf32>
    %331 = arith.addf %330, %329 : vector<8x128xf32>
    %332 = arith.divf %330, %331 : vector<8x128xf32>
    %333 = math.tanh %327 : vector<8x128xf32>
    %334 = arith.select %2, %332, %333 : vector<8x128xi1>, vector<8x128xf32>
    %335 = vector.extract_strided_slice %334 {offsets = [0, 0], sizes = [8, 32], strides = [1, 1]} : vector<8x128xf32> to vector<8x32xf32>
    %336 = vector.extract_strided_slice %334 {offsets = [0, 32], sizes = [8, 32], strides = [1, 1]} : vector<8x128xf32> to vector<8x32xf32>
    %337 = vector.extract_strided_slice %334 {offsets = [0, 64], sizes = [8, 32], strides = [1, 1]} : vector<8x128xf32> to vector<8x32xf32>
    %338 = vector.extract_strided_slice %334 {offsets = [0, 96], sizes = [8, 32], strides = [1, 1]} : vector<8x128xf32> to vector<8x32xf32>
    %339 = arith.mulf %336, %320 : vector<8x32xf32>
    %340 = arith.mulf %335, %338 : vector<8x32xf32>
    %341 = arith.addf %339, %340 : vector<8x32xf32>
    %342 = math.tanh %341 : vector<8x32xf32>
    %343 = arith.mulf %337, %342 : vector<8x32xf32>
    %c6_i32_106 = arith.constant 6 : i32
    %c8_i32_107 = arith.constant 8 : i32
    %344 = arith.muli %c6_i32_106, %c8_i32_107 : i32
    %345 = arith.index_cast %344 : i32 to index
    %c0_108 = arith.constant 0 : index
    %346 = vector.load %arg14[%345, %c0_108] : memref<64x128xf32, #tpu.memory_space<vmem>>, vector<8x128xf32>
    %cst_109 = arith.constant dense<0.000000e+00> : vector<8x128xf32>
    %347 = tpu.matmul %343, %213, %cst_109 {dimension_numbers = #tpu.dot_dimension_numbers<[1], [0], [0], [1], [0, 0, 1, 1], [], []>} : vector<8x32xf32>, vector<32x128xf32>, vector<8x128xf32> -> vector<8x128xf32>
    %348 = arith.addf %346, %347 : vector<8x128xf32>
    %349 = arith.negf %348 : vector<8x128xf32>
    %350 = math.exp %349 : vector<8x128xf32>
    %cst_110 = arith.constant 1.000000e+00 : f32
    %351 = vector.broadcast %cst_110 : f32 to vector<8x128xf32>
    %352 = arith.addf %351, %350 : vector<8x128xf32>
    %353 = arith.divf %351, %352 : vector<8x128xf32>
    %354 = math.tanh %348 : vector<8x128xf32>
    %355 = arith.select %2, %353, %354 : vector<8x128xi1>, vector<8x128xf32>
    %356 = vector.extract_strided_slice %355 {offsets = [0, 0], sizes = [8, 32], strides = [1, 1]} : vector<8x128xf32> to vector<8x32xf32>
    %357 = vector.extract_strided_slice %355 {offsets = [0, 32], sizes = [8, 32], strides = [1, 1]} : vector<8x128xf32> to vector<8x32xf32>
    %358 = vector.extract_strided_slice %355 {offsets = [0, 64], sizes = [8, 32], strides = [1, 1]} : vector<8x128xf32> to vector<8x32xf32>
    %359 = vector.extract_strided_slice %355 {offsets = [0, 96], sizes = [8, 32], strides = [1, 1]} : vector<8x128xf32> to vector<8x32xf32>
    %360 = arith.mulf %357, %341 : vector<8x32xf32>
    %361 = arith.mulf %356, %359 : vector<8x32xf32>
    %362 = arith.addf %360, %361 : vector<8x32xf32>
    %363 = math.tanh %362 : vector<8x32xf32>
    %364 = arith.mulf %358, %363 : vector<8x32xf32>
    %c7_i32_111 = arith.constant 7 : i32
    %c8_i32_112 = arith.constant 8 : i32
    %365 = arith.muli %c7_i32_111, %c8_i32_112 : i32
    %366 = arith.index_cast %365 : i32 to index
    %c0_113 = arith.constant 0 : index
    %367 = vector.load %arg14[%366, %c0_113] : memref<64x128xf32, #tpu.memory_space<vmem>>, vector<8x128xf32>
    %cst_114 = arith.constant dense<0.000000e+00> : vector<8x128xf32>
    %368 = tpu.matmul %364, %213, %cst_114 {dimension_numbers = #tpu.dot_dimension_numbers<[1], [0], [0], [1], [0, 0, 1, 1], [], []>} : vector<8x32xf32>, vector<32x128xf32>, vector<8x128xf32> -> vector<8x128xf32>
    %369 = arith.addf %367, %368 : vector<8x128xf32>
    %370 = arith.negf %369 : vector<8x128xf32>
    %371 = math.exp %370 : vector<8x128xf32>
    %cst_115 = arith.constant 1.000000e+00 : f32
    %372 = vector.broadcast %cst_115 : f32 to vector<8x128xf32>
    %373 = arith.addf %372, %371 : vector<8x128xf32>
    %374 = arith.divf %372, %373 : vector<8x128xf32>
    %375 = math.tanh %369 : vector<8x128xf32>
    %376 = arith.select %2, %374, %375 : vector<8x128xi1>, vector<8x128xf32>
    %377 = vector.extract_strided_slice %376 {offsets = [0, 0], sizes = [8, 32], strides = [1, 1]} : vector<8x128xf32> to vector<8x32xf32>
    %378 = vector.extract_strided_slice %376 {offsets = [0, 32], sizes = [8, 32], strides = [1, 1]} : vector<8x128xf32> to vector<8x32xf32>
    %379 = vector.extract_strided_slice %376 {offsets = [0, 64], sizes = [8, 32], strides = [1, 1]} : vector<8x128xf32> to vector<8x32xf32>
    %380 = vector.extract_strided_slice %376 {offsets = [0, 96], sizes = [8, 32], strides = [1, 1]} : vector<8x128xf32> to vector<8x32xf32>
    %381 = arith.mulf %378, %362 : vector<8x32xf32>
    %382 = arith.mulf %377, %380 : vector<8x32xf32>
    %383 = arith.addf %381, %382 : vector<8x32xf32>
    %384 = math.tanh %383 : vector<8x32xf32>
    %385 = arith.mulf %379, %384 : vector<8x32xf32>
    %c8_i32_116 = arith.constant 8 : i32
    %c1_117 = arith.constant 1 : index
    %c0_118 = arith.constant 0 : index
    %c0_119 = arith.constant 0 : index
    %386 = vector.load %arg11[%c1_117, %c0_118, %c0_119] : memref<2x8x32xf32, #tpu.memory_space<vmem>>, vector<1x8x32xf32>
    %387 = vector.shape_cast %386 : vector<1x8x32xf32> to vector<8x32xf32>
    %388 = vector.shape_cast %385 : vector<8x32xf32> to vector<1x8x32xf32>
    tpu.vector_store %arg11[%c1_117, %c0_118, %c0_119], %388 {strides = array<i32>} : memref<2x8x32xf32, #tpu.memory_space<vmem>>, vector<1x8x32xf32>,
    %c1_120 = arith.constant 1 : index
    %c0_121 = arith.constant 0 : index
    %c0_122 = arith.constant 0 : index
    %389 = vector.load %arg12[%c1_120, %c0_121, %c0_122] : memref<2x8x32xf32, #tpu.memory_space<vmem>>, vector<1x8x32xf32>
    %390 = vector.shape_cast %389 : vector<1x8x32xf32> to vector<8x32xf32>
    %391 = vector.shape_cast %383 : vector<8x32xf32> to vector<1x8x32xf32>
    tpu.vector_store %arg12[%c1_120, %c0_121, %c0_122], %391 {strides = array<i32>} : memref<2x8x32xf32, #tpu.memory_space<vmem>>, vector<1x8x32xf32>,
    %c0_123 = arith.constant 0 : index
    %c0_124 = arith.constant 0 : index
    %392 = vector.load %arg8[%c0_123, %c0_124] : memref<1x32xf32, #tpu.memory_space<vmem>>, vector<1x32xf32>
    %393 = vector.broadcast %392 : vector<1x32xf32> to vector<8x32xf32>
    %394 = arith.mulf %385, %393 : vector<8x32xf32>
    %cst_125 = arith.constant dense<0.000000e+00> : vector<8xf32>
    %395 = vector.multi_reduction <add>, %394, %cst_125 [1] : vector<8x32xf32> to vector<8xf32>
    %396 = vector.shape_cast %395 : vector<8xf32> to vector<8x1xf32>
    %c0_126 = arith.constant 0 : index
    %c0_127 = arith.constant 0 : index
    %397 = vector.load %arg9[%c0_126, %c0_127] : memref<1x1xf32, #tpu.memory_space<vmem>>, vector<1x1xf32>
    %398 = vector.broadcast %397 : vector<1x1xf32> to vector<8x1xf32>
    %399 = arith.addf %396, %398 : vector<8x1xf32>
    %400 = arith.negf %399 : vector<8x1xf32>
    %401 = math.exp %400 : vector<8x1xf32>
    %cst_128 = arith.constant 1.000000e+00 : f32
    %402 = vector.broadcast %cst_128 : f32 to vector<8x1xf32>
    %403 = arith.addf %402, %401 : vector<8x1xf32>
    %404 = arith.divf %402, %403 : vector<8x1xf32>
    %c0_129 = arith.constant 0 : index
    %c0_130 = arith.constant 0 : index
    %405 = vector.load %arg10[%c0_129, %c0_130] : memref<8x1xf32, #tpu.memory_space<vmem>>, vector<8x1xf32>
    tpu.vector_store %arg10[%c0_129, %c0_130], %404 {strides = array<i32>} : memref<8x1xf32, #tpu.memory_space<vmem>>, vector<8x1xf32>,
    return
  }
  func.func @transform_0(%arg0: i32) -> (i32, i32, i32) {
    %c0_i32 = arith.constant 0 : i32
    %c0_i32_0 = arith.constant 0 : i32
    %c0_i32_1 = arith.constant 0 : i32
    return %c0_i32, %arg0, %c0_i32_0 : i32, i32, i32
  }
  func.func @transform_1(%arg0: i32) -> (i32, i32, i32) {
    %c0_i32 = arith.constant 0 : i32
    %c0_i32_0 = arith.constant 0 : i32
    %c0_i32_1 = arith.constant 0 : i32
    return %c0_i32, %arg0, %c0_i32_0 : i32, i32, i32
  }
  func.func @transform_2(%arg0: i32) -> (i32, i32, i32) {
    %c0_i32 = arith.constant 0 : i32
    %c0_i32_0 = arith.constant 0 : i32
    %c0_i32_1 = arith.constant 0 : i32
    return %c0_i32, %arg0, %c0_i32_0 : i32, i32, i32
  }
  func.func @transform_3(%arg0: i32) -> (i32, i32) {
    %c0_i32 = arith.constant 0 : i32
    %c0_i32_0 = arith.constant 0 : i32
    %c0_i32_1 = arith.constant 0 : i32
    return %c0_i32, %c0_i32_0 : i32, i32
  }
  func.func @transform_4(%arg0: i32) -> (i32, i32) {
    %c0_i32 = arith.constant 0 : i32
    %c0_i32_0 = arith.constant 0 : i32
    %c0_i32_1 = arith.constant 0 : i32
    return %c0_i32, %c0_i32_0 : i32, i32
  }
  func.func @transform_5(%arg0: i32) -> (i32, i32) {
    %c0_i32 = arith.constant 0 : i32
    %c0_i32_0 = arith.constant 0 : i32
    %c0_i32_1 = arith.constant 0 : i32
    return %c0_i32, %c0_i32_0 : i32, i32
  }
  func.func @transform_6(%arg0: i32) -> (i32, i32) {
    %c0_i32 = arith.constant 0 : i32
    %c0_i32_0 = arith.constant 0 : i32
    %c0_i32_1 = arith.constant 0 : i32
    return %c0_i32, %c0_i32_0 : i32, i32
  }
  func.func @transform_7(%arg0: i32) -> (i32, i32) {
    %c0_i32 = arith.constant 0 : i32
    %c0_i32_0 = arith.constant 0 : i32
    %c0_i32_1 = arith.constant 0 : i32
    return %c0_i32, %c0_i32_0 : i32, i32
  }
  func.func @transform_8(%arg0: i32) -> (i32, i32) {
    %c0_i32 = arith.constant 0 : i32
    %c0_i32_0 = arith.constant 0 : i32
    %c0_i32_1 = arith.constant 0 : i32
    return %c0_i32, %c0_i32_0 : i32, i32
  }
  func.func @transform_9(%arg0: i32) -> (i32, i32) {
    %c0_i32 = arith.constant 0 : i32
    %c0_i32_0 = arith.constant 0 : i32
    return %arg0, %c0_i32 : i32, i32
  }
  func.func @transform_10(%arg0: i32) -> (i32, i32, i32) {
    %c0_i32 = arith.constant 0 : i32
    %c0_i32_0 = arith.constant 0 : i32
    %c0_i32_1 = arith.constant 0 : i32
    return %c0_i32, %arg0, %c0_i32_0 : i32, i32, i32
  }
  func.func @transform_11(%arg0: i32) -> (i32, i32, i32) {
    %c0_i32 = arith.constant 0 : i32
    %c0_i32_0 = arith.constant 0 : i32
    %c0_i32_1 = arith.constant 0 : i32
    return %c0_i32, %arg0, %c0_i32_0 : i32, i32, i32
  }
}

</mosaic_0001>

<llo_original>
// kernel: sentiment_rnn_forward.1
$region0: #{sentiment_rnn_forward.1}
  #allocation0 [shape = 'u32[]', space=smem, size = 0x4, offset = 0x4, fixed_abs, tag = 'smem constant byte address 0x4 - core index']
  #allocation1 [shape = 'u32[144,128]{1,0:T(1,128)}', space=vmem, size = 0x12000, scoped, tag = 'internal scratch']
  #allocation2 [shape = 'f32[64,32]{1,0:T(8,128)}', space=vmem, size = 0x8000, scoped, tag = 'scratch operand']
  #allocation3 [shape = 'f32[64,128]{1,0:T(8,128)}', space=vmem, size = 0x8000, scoped, tag = 'scratch operand']
  #allocation4 [shape = 'f32[1,1]{1,0:T(1,128)S(1)}', space=vmem, size = 0x200, scoped, tag = 'scoped memory for sentiment_rnn_forward.1']
  %s0 = inlined_call_operand.vmem [shape: f32[8,16,128], index: 0, kind: input, shape index: {}]
  %s1 = inlined_call_operand.vmem [shape: f32[2,16,32], index: 1, kind: input, shape index: {}]
  %s2 = inlined_call_operand.vmem [shape: f32[2,16,32], index: 2, kind: input, shape index: {}]
  %s3 = inlined_call_operand.vmem [shape: f32[32,128], index: 3, kind: input, shape index: {}]
  %s4 = inlined_call_operand.vmem [shape: f32[32,128], index: 4, kind: input, shape index: {}]
  %s5 = inlined_call_operand.vmem [shape: f32[32,128], index: 5, kind: input, shape index: {}]
  %s6 = inlined_call_operand.vmem [shape: f32[1,128], index: 6, kind: input, shape index: {}]
  %s7 = inlined_call_operand.vmem [shape: f32[1,32], index: 7, kind: input, shape index: {}]
  %s8 = inlined_call_operand.<no memory space> [shape: f32[1,1], index: 8, kind: input, shape index: {}]
  %s9 = inlined_call_operand.vmem [shape: f32[16,1], index: 9, kind: output, shape index: {0}]
  %s10 = inlined_call_operand.hbm [shape: f32[2,16,32], index: 10, kind: output, shape index: {1}]
  %s11 = inlined_call_operand.hbm [shape: f32[2,16,32], index: 11, kind: output, shape index: {2}]
  %12 = xla_tuple %s9, %s10, %s11
  %s13 = sld [smem:[#allocation0]]
  $region199: #{sentiment_rnn_forward.1} parent=0
    _
  %s15 = ssub.s32 1, %s13
  %s16 = scalar_select 0, %s15, %s13
  %v17 = vstv %s8
  %18 = vst [vmem:[#allocation4] sm:$0x1] %v17
  $region1: #{sentiment_rnn_forward.1} parent=0
    #allocation5 [shape = 'u8[65536]{0}', space=vmem, size = 0x10000, scoped, tag = 'input window, operand 0']
    #allocation6 [shape = 'u8[16384]{0}', space=vmem, size = 0x4000, scoped, tag = 'input window, operand 1']
    #allocation7 [shape = 'u8[16384]{0}', space=vmem, size = 0x4000, scoped, tag = 'input window, operand 2']
    #allocation8 [shape = 'u8[16384]{0}', space=vmem, size = 0x4000, scoped, tag = 'output window, operand 1']
    #allocation9 [shape = 's32[2]{0}', space=sflag, size = 0x8, scoped, tag = 'scoped memory for sentiment_rnn_forward.1']
    #allocation10 [shape = 'u8[16384]{0}', space=vmem, size = 0x4000, scoped, tag = 'output window, operand 2']
    #allocation11 [shape = 's32[2]{0}', space=sflag, size = 0x8, scoped, tag = 'scoped memory for sentiment_rnn_forward.1']
    %19 = vsyncpa [#allocation9], 0
    %s20 = scalar_lea.sflag [#allocation9], 1
    %21 = vsyncpa %s20, 0
    %22 = vsyncpa [#allocation11], 0
    %s23 = scalar_lea.sflag [#allocation11], 1
    %24 = vsyncpa %s23, 0
    loop: start=0, step=1, limit=4
    $region2: #{sentiment_rnn_forward.1} parent=1 // loop_pre_header
      _
    $region3: #{sentiment_rnn_forward.1} parent=1 // loop_header
      %s26 = sphi 0, %s30
      %p27 = scmp.ge.s32.totalorder %s26, 4
      %s36 = sphi 0, %s38
      %s39 = sphi 0, %s36
      %s40 = sphi 0, %s39
      %s56 = sphi 0, %s40
      %s62 = sphi 0, %s64
      %s65 = sphi 0, %s62
      %s66 = sphi 0, %s65
      %s82 = sphi 0, %s66
      %s88 = sphi 0, %s90
      %s91 = sphi 0, %s88
      %s92 = sphi 0, %s91
      %s108 = sphi 0, %s92
      %s112 = sphi 0, %s112
      %s114 = sphi 0, %s112
      %s115 = sphi 0, %s114
      %s129 = sphi 0, %s115
      %s133 = sphi 0, %s133
      %s135 = sphi 0, %s133
      %s136 = sphi 0, %s135
      %s150 = sphi 0, %s136
      %s154 = sphi 0, %s154
      %s156 = sphi 0, %s154
      %s157 = sphi 0, %s156
      %s171 = sphi 0, %s157
      %s175 = sphi 0, %s175
      %s177 = sphi 0, %s175
      %s178 = sphi 0, %s177
      %s192 = sphi 0, %s178
      %s196 = sphi 0, %s196
      %s198 = sphi 0, %s196
      %s199 = sphi 0, %s198
      %s213 = sphi 0, %s199
      %s217 = sphi 0, %s217
      %s219 = sphi 0, %s217
      %s220 = sphi 0, %s219
      %s234 = sphi 0, %s220
      %s240 = sphi 0, %s242
      %s243 = sphi 0, %s240
      %s244 = sphi 0, %s243
      %s260 = sphi 0, %s244
      %s266 = sphi 0, %s268
      %s269 = sphi 0, %s266
      %s270 = sphi 0, %s269
      %s286 = sphi 0, %s270
      %s292 = sphi 0, %s294
      %s295 = sphi 0, %s292
      %s296 = sphi 0, %s295
      %s312 = sphi 0, %s296
    $region4: #{sentiment_rnn_forward.1} parent=1 // loop_header_branch
      %29 = sbr.rel (%p27) target = $region8
    $region5: #{sentiment_rnn_forward.1} parent=1 // loop_body
      %s31 = ssub.s32 %s26, 1
      %s32 = ssub.s32 %s26, 2
      %s33 = sadd.s32 %s26, 1
      %s34 = ssub.s32 %s26, %s33
      %p35 = scmp.eq.s32.totalorder %s34, 0
      %s37 = sadd.s32 %s36, 1
      %s38 = scalar_select %p35, %s36, %s37
      %p41 = pneg %p35
      %p42 = scmp.eq.s32.totalorder %s26, 1
      %p43 = por %p41, %p42
      %p44 = scmp.ne.s32.totalorder %s36, %s39
      %p45 = scmp.eq.s32.totalorder %s26, 0
      %p46 = por %p44, %p45
      %p47 = scmp.ne.s32.totalorder %s36, %s39
      %p48 = scmp.eq.s32.totalorder %s31, 1
      %p49 = por %p47, %p48
      %p50 = scmp.ne.s32.totalorder %s39, %s40
      %p51 = scmp.eq.s32.totalorder %s31, 0
      %p52 = por %p50, %p51
      %p53 = scmp.ne.s32.totalorder %s39, %s40
      %p54 = scmp.eq.s32.totalorder %s32, 1
      %p55 = por %p53, %p54
      %p57 = scmp.ne.s32.totalorder %s40, %s56
      %p58 = scmp.eq.s32.totalorder %s32, 0
      %p59 = por %p57, %p58
      %s60 = ssub.s32 %s26, %s33
      %p61 = scmp.eq.s32.totalorder %s60, 0
      %s63 = sadd.s32 %s62, 1
      %s64 = scalar_select %p61, %s62, %s63
      %p67 = pneg %p61
      %p68 = scmp.eq.s32.totalorder %s26, 1
      %p69 = por %p67, %p68
      %p70 = scmp.ne.s32.totalorder %s62, %s65
      %p71 = scmp.eq.s32.totalorder %s26, 0
      %p72 = por %p70, %p71
      %p73 = scmp.ne.s32.totalorder %s62, %s65
      %p74 = scmp.eq.s32.totalorder %s31, 1
      %p75 = por %p73, %p74
      %p76 = scmp.ne.s32.totalorder %s65, %s66
      %p77 = scmp.eq.s32.totalorder %s31, 0
      %p78 = por %p76, %p77
      %p79 = scmp.ne.s32.totalorder %s65, %s66
      %p80 = scmp.eq.s32.totalorder %s32, 1
      %p81 = por %p79, %p80
      %p83 = scmp.ne.s32.totalorder %s66, %s82
      %p84 = scmp.eq.s32.totalorder %s32, 0
      %p85 = por %p83, %p84
      %s86 = ssub.s32 %s26, %s33
      %p87 = scmp.eq.s32.totalorder %s86, 0
      %s89 = sadd.s32 %s88, 1
      %s90 = scalar_select %p87, %s88, %s89
      %p93 = pneg %p87
      %p94 = scmp.eq.s32.totalorder %s26, 1
      %p95 = por %p93, %p94
      %p96 = scmp.ne.s32.totalorder %s88, %s91
      %p97 = scmp.eq.s32.totalorder %s26, 0
      %p98 = por %p96, %p97
      %p99 = scmp.ne.s32.totalorder %s88, %s91
      %p100 = scmp.eq.s32.totalorder %s31, 1
      %p101 = por %p99, %p100
      %p102 = scmp.ne.s32.totalorder %s91, %s92
      %p103 = scmp.eq.s32.totalorder %s31, 0
      %p104 = por %p102, %p103
      %p105 = scmp.ne.s32.totalorder %s91, %s92
      %p106 = scmp.eq.s32.totalorder %s32, 1
      %p107 = por %p105, %p106
      %p109 = scmp.ne.s32.totalorder %s92, %s108
      %p110 = scmp.eq.s32.totalorder %s32, 0
      %p111 = por %p109, %p110
      %s113 = sadd.s32 %s112, 1
      %p116 = scmp.eq.s32.totalorder %s26, 1
      %p117 = scmp.ne.s32.totalorder %s112, %s114
      %p118 = scmp.eq.s32.totalorder %s26, 0
      %p119 = por %p117, %p118
      %p120 = scmp.ne.s32.totalorder %s112, %s114
      %p121 = scmp.eq.s32.totalorder %s31, 1
      %p122 = por %p120, %p121
      %p123 = scmp.ne.s32.totalorder %s114, %s115
      %p124 = scmp.eq.s32.totalorder %s31, 0
      %p125 = por %p123, %p124
      %p126 = scmp.ne.s32.totalorder %s114, %s115
      %p127 = scmp.eq.s32.totalorder %s32, 1
      %p128 = por %p126, %p127
      %p130 = scmp.ne.s32.totalorder %s115, %s129
      %p131 = scmp.eq.s32.totalorder %s32, 0
      %p132 = por %p130, %p131
      %s134 = sadd.s32 %s133, 1
      %p137 = scmp.eq.s32.totalorder %s26, 1
      %p138 = scmp.ne.s32.totalorder %s133, %s135
      %p139 = scmp.eq.s32.totalorder %s26, 0
      %p140 = por %p138, %p139
      %p141 = scmp.ne.s32.totalorder %s133, %s135
      %p142 = scmp.eq.s32.totalorder %s31, 1
      %p143 = por %p141, %p142
      %p144 = scmp.ne.s32.totalorder %s135, %s136
      %p145 = scmp.eq.s32.totalorder %s31, 0
      %p146 = por %p144, %p145
      %p147 = scmp.ne.s32.totalorder %s135, %s136
      %p148 = scmp.eq.s32.totalorder %s32, 1
      %p149 = por %p147, %p148
      %p151 = scmp.ne.s32.totalorder %s136, %s150
      %p152 = scmp.eq.s32.totalorder %s32, 0
      %p153 = por %p151, %p152
      %s155 = sadd.s32 %s154, 1
      %p158 = scmp.eq.s32.totalorder %s26, 1
      %p159 = scmp.ne.s32.totalorder %s154, %s156
      %p160 = scmp.eq.s32.totalorder %s26, 0
      %p161 = por %p159, %p160
      %p162 = scmp.ne.s32.totalorder %s154, %s156
      %p163 = scmp.eq.s32.totalorder %s31, 1
      %p164 = por %p162, %p163
      %p165 = scmp.ne.s32.totalorder %s156, %s157
      %p166 = scmp.eq.s32.totalorder %s31, 0
      %p167 = por %p165, %p166
      %p168 = scmp.ne.s32.totalorder %s156, %s157
      %p169 = scmp.eq.s32.totalorder %s32, 1
      %p170 = por %p168, %p169
      %p172 = scmp.ne.s32.totalorder %s157, %s171
      %p173 = scmp.eq.s32.totalorder %s32, 0
      %p174 = por %p172, %p173
      %s176 = sadd.s32 %s175, 1
      %p179 = scmp.eq.s32.totalorder %s26, 1
      %p180 = scmp.ne.s32.totalorder %s175, %s177
      %p181 = scmp.eq.s32.totalorder %s26, 0
      %p182 = por %p180, %p181
      %p183 = scmp.ne.s32.totalorder %s175, %s177
      %p184 = scmp.eq.s32.totalorder %s31, 1
      %p185 = por %p183, %p184
      %p186 = scmp.ne.s32.totalorder %s177, %s178
      %p187 = scmp.eq.s32.totalorder %s31, 0
      %p188 = por %p186, %p187
      %p189 = scmp.ne.s32.totalorder %s177, %s178
      %p190 = scmp.eq.s32.totalorder %s32, 1
      %p191 = por %p189, %p190
      %p193 = scmp.ne.s32.totalorder %s178, %s192
      %p194 = scmp.eq.s32.totalorder %s32, 0
      %p195 = por %p193, %p194
      %s197 = sadd.s32 %s196, 1
      %p200 = scmp.eq.s32.totalorder %s26, 1
      %p201 = scmp.ne.s32.totalorder %s196, %s198
      %p202 = scmp.eq.s32.totalorder %s26, 0
      %p203 = por %p201, %p202
      %p204 = scmp.ne.s32.totalorder %s196, %s198
      %p205 = scmp.eq.s32.totalorder %s31, 1
      %p206 = por %p204, %p205
      %p207 = scmp.ne.s32.totalorder %s198, %s199
      %p208 = scmp.eq.s32.totalorder %s31, 0
      %p209 = por %p207, %p208
      %p210 = scmp.ne.s32.totalorder %s198, %s199
      %p211 = scmp.eq.s32.totalorder %s32, 1
      %p212 = por %p210, %p211
      %p214 = scmp.ne.s32.totalorder %s199, %s213
      %p215 = scmp.eq.s32.totalorder %s32, 0
      %p216 = por %p214, %p215
      %s218 = sadd.s32 %s217, 1
      %p221 = scmp.eq.s32.totalorder %s26, 1
      %p222 = scmp.ne.s32.totalorder %s217, %s219
      %p223 = scmp.eq.s32.totalorder %s26, 0
      %p224 = por %p222, %p223
      %p225 = scmp.ne.s32.totalorder %s217, %s219
      %p226 = scmp.eq.s32.totalorder %s31, 1
      %p227 = por %p225, %p226
      %p228 = scmp.ne.s32.totalorder %s219, %s220
      %p229 = scmp.eq.s32.totalorder %s31, 0
      %p230 = por %p228, %p229
      %p231 = scmp.ne.s32.totalorder %s219, %s220
      %p232 = scmp.eq.s32.totalorder %s32, 1
      %p233 = por %p231, %p232
      %p235 = scmp.ne.s32.totalorder %s220, %s234
      %p236 = scmp.eq.s32.totalorder %s32, 0
      %p237 = por %p235, %p236
      %s238 = ssub.s32 %s26, %s33
      %p239 = scmp.eq.s32.totalorder %s238, 0
      %s241 = sadd.s32 %s240, 1
      %s242 = scalar_select %p239, %s240, %s241
      %p245 = pneg %p239
      %p246 = scmp.eq.s32.totalorder %s26, 1
      %p247 = por %p245, %p246
      %p248 = scmp.ne.s32.totalorder %s240, %s243
      %p249 = scmp.eq.s32.totalorder %s26, 0
      %p250 = por %p248, %p249
      %p251 = scmp.ne.s32.totalorder %s240, %s243
      %p252 = scmp.eq.s32.totalorder %s31, 1
      %p253 = por %p251, %p252
      %p254 = scmp.ne.s32.totalorder %s243, %s244
      %p255 = scmp.eq.s32.totalorder %s31, 0
      %p256 = por %p254, %p255
      %p257 = scmp.ne.s32.totalorder %s243, %s244
      %p258 = scmp.eq.s32.totalorder %s32, 1
      %p259 = por %p257, %p258
      %p261 = scmp.ne.s32.totalorder %s244, %s260
      %p262 = scmp.eq.s32.totalorder %s32, 0
      %p263 = por %p261, %p262
      %s264 = ssub.s32 %s26, %s33
      %p265 = scmp.eq.s32.totalorder %s264, 0
      %s267 = sadd.s32 %s266, 1
      %s268 = scalar_select %p265, %s266, %s267
      %p271 = pneg %p265
      %p272 = scmp.eq.s32.totalorder %s26, 1
      %p273 = por %p271, %p272
      %p274 = scmp.ne.s32.totalorder %s266, %s269
      %p275 = scmp.eq.s32.totalorder %s26, 0
      %p276 = por %p274, %p275
      %p277 = scmp.ne.s32.totalorder %s266, %s269
      %p278 = scmp.eq.s32.totalorder %s31, 1
      %p279 = por %p277, %p278
      %p280 = scmp.ne.s32.totalorder %s269, %s270
      %p281 = scmp.eq.s32.totalorder %s31, 0
      %p282 = por %p280, %p281
      %p283 = scmp.ne.s32.totalorder %s269, %s270
      %p284 = scmp.eq.s32.totalorder %s32, 1
      %p285 = por %p283, %p284
      %p287 = scmp.ne.s32.totalorder %s270, %s286
      %p288 = scmp.eq.s32.totalorder %s32, 0
      %p289 = por %p287, %p288
      %s290 = ssub.s32 %s26, %s33
      %p291 = scmp.eq.s32.totalorder %s290, 0
      %s293 = sadd.s32 %s292, 1
      %s294 = scalar_select %p291, %s292, %s293
      %p297 = pneg %p291
      %p298 = scmp.eq.s32.totalorder %s26, 1
      %p299 = por %p297, %p298
      %p300 = scmp.ne.s32.totalorder %s292, %s295
      %p301 = scmp.eq.s32.totalorder %s26, 0
      %p302 = por %p300, %p301
      %p303 = scmp.ne.s32.totalorder %s292, %s295
      %p304 = scmp.eq.s32.totalorder %s31, 1
      %p305 = por %p303, %p304
      %p306 = scmp.ne.s32.totalorder %s295, %s296
      %p307 = scmp.eq.s32.totalorder %s31, 0
      %p308 = por %p306, %p307
      %p309 = scmp.ne.s32.totalorder %s295, %s296
      %p310 = scmp.eq.s32.totalorder %s32, 1
      %p311 = por %p309, %p310
      %p313 = scmp.ne.s32.totalorder %s296, %s312
      %p314 = scmp.eq.s32.totalorder %s32, 0
      %p315 = por %p313, %p314
      %p316 = scmp.le.s32.totalorder 1, %s26
      %p317 = scmp.lt.s32.totalorder %s26, 3
      %p318 = pnand %p316, %p317
      %p319 = pneg %p318
      // Predicated region
      $region9: #{sentiment_rnn_forward.1} parent=5 // pred_check
        _
      $region10: #{sentiment_rnn_forward.1} parent=5 // pred_check_branch
        %321 = sbr.rel (%p318) target = $region12
      $region11: #{sentiment_rnn_forward.1} parent=5 // pred_region
        %s322 = ssub.s32 %s26, 1
        // Predicated region
        $region13: #{sentiment_rnn_forward.1} parent=11 // pred_check
          %p323 = pneg %p125
        $region14: #{sentiment_rnn_forward.1} parent=11 // pred_check_branch
          %325 = sbr.rel (%p323) target = $region16
        $region15: #{sentiment_rnn_forward.1} parent=11 // pred_region
          _
        $region16: #{sentiment_rnn_forward.1} parent=11 // pred_fallthru
          _
        // Predicated region
        $region17: #{sentiment_rnn_forward.1} parent=11 // pred_check
          %p326 = pneg %p146
        $region18: #{sentiment_rnn_forward.1} parent=11 // pred_check_branch
          %328 = sbr.rel (%p326) target = $region20
        $region19: #{sentiment_rnn_forward.1} parent=11 // pred_region
          _
        $region20: #{sentiment_rnn_forward.1} parent=11 // pred_fallthru
          _
        // Predicated region
        $region21: #{sentiment_rnn_forward.1} parent=11 // pred_check
          %p329 = pneg %p167
        $region22: #{sentiment_rnn_forward.1} parent=11 // pred_check_branch
          %331 = sbr.rel (%p329) target = $region24
        $region23: #{sentiment_rnn_forward.1} parent=11 // pred_region
          _
        $region24: #{sentiment_rnn_forward.1} parent=11 // pred_fallthru
          _
        // Predicated region
        $region25: #{sentiment_rnn_forward.1} parent=11 // pred_check
          %p332 = pneg %p188
        $region26: #{sentiment_rnn_forward.1} parent=11 // pred_check_branch
          %334 = sbr.rel (%p332) target = $region28
        $region27: #{sentiment_rnn_forward.1} parent=11 // pred_region
          _
        $region28: #{sentiment_rnn_forward.1} parent=11 // pred_fallthru
          _
        // Predicated region
        $region29: #{sentiment_rnn_forward.1} parent=11 // pred_check
          %p335 = pneg %p209
        $region30: #{sentiment_rnn_forward.1} parent=11 // pred_check_branch
          %337 = sbr.rel (%p335) target = $region32
        $region31: #{sentiment_rnn_forward.1} parent=11 // pred_region
          _
        $region32: #{sentiment_rnn_forward.1} parent=11 // pred_fallthru
          _
        // Predicated region
        $region33: #{sentiment_rnn_forward.1} parent=11 // pred_check
          %p338 = pneg %p230
        $region34: #{sentiment_rnn_forward.1} parent=11 // pred_check_branch
          %340 = sbr.rel (%p338) target = $region36
        $region35: #{sentiment_rnn_forward.1} parent=11 // pred_region
          _
        $region36: #{sentiment_rnn_forward.1} parent=11 // pred_fallthru
          _
      $region12: #{sentiment_rnn_forward.1} parent=5 // pred_fallthru
        _
      %p341 = scmp.lt.s32.totalorder %s26, 2
      // Predicated region
      $region37: #{sentiment_rnn_forward.1} parent=5 // pred_check
        %p342 = pneg %p341
      $region38: #{sentiment_rnn_forward.1} parent=5 // pred_check_branch
        %344 = sbr.rel (%p342) target = $region40
      $region39: #{sentiment_rnn_forward.1} parent=5 // pred_region
        // Predicated region
        $region41: #{sentiment_rnn_forward.1} parent=39 // pred_check
          %p345 = pneg %p46
        $region42: #{sentiment_rnn_forward.1} parent=39 // pred_check_branch
          %347 = sbr.rel (%p345) target = $region44
        $region43: #{sentiment_rnn_forward.1} parent=39 // pred_region
          %s348 = sand.u32 %s36, 1
          %s349 = sand.u32 %s36, 1
          %s350 = smul.addr %s349, 64
          %s351 = scalar_lea.vmem [#allocation5], %s350
          %s352 = smul.addr %s26, 8
          %s353 = scalar_lea.vmem %s0, %s352
          // Predicated region
          $region45: #{sentiment_rnn_forward.1} parent=43 // pred_check
            _
          $region46: #{sentiment_rnn_forward.1} parent=43 // pred_check_branch
            %355 = sbr.rel (0) target = $region48
          $region47: #{sentiment_rnn_forward.1} parent=43 // pred_region
            // Predicated region
            $region49: #{sentiment_rnn_forward.1} parent=47 // pred_check
              _
            $region50: #{sentiment_rnn_forward.1} parent=47 // pred_check_branch
              %357 = sbr.rel (0) target = $region52
            $region51: #{sentiment_rnn_forward.1} parent=47 // pred_region
              // Predicated region
              $region64: #{sentiment_rnn_forward.1} parent=51 // pred_check
                _
              $region65: #{sentiment_rnn_forward.1} parent=51 // pred_check_branch
                %387 = sbr.rel (0) target = $region67
              $region66: #{sentiment_rnn_forward.1} parent=51 // pred_region
                loop: start=0, step=1, limit=1
                $region68: #{sentiment_rnn_forward.1} parent=66 // loop_pre_header
                  _
                $region69: #{sentiment_rnn_forward.1} parent=66 // loop_header
                  %s389 = sphi 0, %s393
                  %p390 = scmp.ge.s32.totalorder %s389, 1
                  %s394 = sphi %s353, %s353
                  %s395 = sphi %s351, %s351
                $region70: #{sentiment_rnn_forward.1} parent=66 // loop_header_branch
                  %392 = sbr.rel (%p390) target = $region74
                $region71: #{sentiment_rnn_forward.1} parent=66 // loop_body
                  %v396 = vld [vmem:[%s394] sm:$0xff]
                  %397 = vst [vmem:[%s395] sm:$0xff] %v396
                  %v398 = vld [vmem:[%s394 + $0x10] sm:$0xff]
                  %399 = vst [vmem:[%s395 + $0x8] sm:$0xff] %v398
                  %v400 = vld [vmem:[%s394 + $0x20] sm:$0xff]
                  %401 = vst [vmem:[%s395 + $0x10] sm:$0xff] %v400
                  %v402 = vld [vmem:[%s394 + $0x30] sm:$0xff]
                  %403 = vst [vmem:[%s395 + $0x18] sm:$0xff] %v402
                  %v404 = vld [vmem:[%s394 + $0x40] sm:$0xff]
                  %405 = vst [vmem:[%s395 + $0x20] sm:$0xff] %v404
                  %v406 = vld [vmem:[%s394 + $0x50] sm:$0xff]
                  %407 = vst [vmem:[%s395 + $0x28] sm:$0xff] %v406
                  %v408 = vld [vmem:[%s394 + $0x60] sm:$0xff]
                  %409 = vst [vmem:[%s395 + $0x30] sm:$0xff] %v408
                  %v410 = vld [vmem:[%s394 + $0x70] sm:$0xff]
                  %411 = vst [vmem:[%s395 + $0x38] sm:$0xff] %v410
                $region72: #{sentiment_rnn_forward.1} parent=66 // loop_footer
                  %s393 = sadd.s32 1, %s389
                $region73: #{sentiment_rnn_forward.1} parent=66 // loop_footer_branch
                  %388 = sbr.rel target = $region69
                $region74: #{sentiment_rnn_forward.1} parent=66 // loop_exit
                  _
              $region67: #{sentiment_rnn_forward.1} parent=51 // pred_fallthru
                _
              // Predicated region
              $region75: #{sentiment_rnn_forward.1} parent=51 // pred_check
                _
              $region76: #{sentiment_rnn_forward.1} parent=51 // pred_check_branch
                %413 = sbr.rel target = $region78
              $region77: #{sentiment_rnn_forward.1} parent=51 // pred_region
                _
              $region78: #{sentiment_rnn_forward.1} parent=51 // pred_fallthru
                _
            $region52: #{sentiment_rnn_forward.1} parent=47 // pred_fallthru
              _
            // Predicated region
            $region53: #{sentiment_rnn_forward.1} parent=47 // pred_check
              _
            $region54: #{sentiment_rnn_forward.1} parent=47 // pred_check_branch
              %359 = sbr.rel target = $region56
            $region55: #{sentiment_rnn_forward.1} parent=47 // pred_region
              %s361 = ssub.s32 256, 1
              loop: start=0, step=1, limit=1
              $region57: #{sentiment_rnn_forward.1} parent=55 // loop_pre_header
                _
              $region58: #{sentiment_rnn_forward.1} parent=55 // loop_header
                %s363 = sphi 0, %s367
                %p364 = scmp.ge.s32.totalorder %s363, 1
                %s368 = sphi %s353, %s353
                %s369 = sphi %s351, %s351
              $region59: #{sentiment_rnn_forward.1} parent=55 // loop_header_branch
                %366 = sbr.rel (%p364) target = $region63
              $region60: #{sentiment_rnn_forward.1} parent=55 // loop_body
                %v370 = vld [vmem:[%s368] sm:%s361]
                %371 = vst [vmem:[%s369] sm:%s361] %v370
                %v372 = vld [vmem:[%s368 + $0x10] sm:%s361]
                %373 = vst [vmem:[%s369 + $0x8] sm:%s361] %v372
                %v374 = vld [vmem:[%s368 + $0x20] sm:%s361]
                %375 = vst [vmem:[%s369 + $0x10] sm:%s361] %v374
                %v376 = vld [vmem:[%s368 + $0x30] sm:%s361]
                %377 = vst [vmem:[%s369 + $0x18] sm:%s361] %v376
                %v378 = vld [vmem:[%s368 + $0x40] sm:%s361]
                %379 = vst [vmem:[%s369 + $0x20] sm:%s361] %v378
                %v380 = vld [vmem:[%s368 + $0x50] sm:%s361]
                %381 = vst [vmem:[%s369 + $0x28] sm:%s361] %v380
                %v382 = vld [vmem:[%s368 + $0x60] sm:%s361]
                %383 = vst [vmem:[%s369 + $0x30] sm:%s361] %v382
                %v384 = vld [vmem:[%s368 + $0x70] sm:%s361]
                %385 = vst [vmem:[%s369 + $0x38] sm:%s361] %v384
              $region61: #{sentiment_rnn_forward.1} parent=55 // loop_footer
                %s367 = sadd.s32 1, %s363
              $region62: #{sentiment_rnn_forward.1} parent=55 // loop_footer_branch
                %362 = sbr.rel target = $region58
              $region63: #{sentiment_rnn_forward.1} parent=55 // loop_exit
                _
            $region56: #{sentiment_rnn_forward.1} parent=47 // pred_fallthru
              _
          $region48: #{sentiment_rnn_forward.1} parent=43 // pred_fallthru
            _
          %414 = vnop
        $region44: #{sentiment_rnn_forward.1} parent=39 // pred_fallthru
          _
        // Predicated region
        $region79: #{sentiment_rnn_forward.1} parent=39 // pred_check
          %p415 = pneg %p72
        $region80: #{sentiment_rnn_forward.1} parent=39 // pred_check_branch
          %417 = sbr.rel (%p415) target = $region82
        $region81: #{sentiment_rnn_forward.1} parent=39 // pred_region
          %s418 = sand.u32 %s62, 1
          %s419 = sand.u32 %s62, 1
          %s420 = smul.addr %s419, 16
          %s421 = scalar_lea.vmem [#allocation6], %s420
          %s422 = smul.addr %s26, 8
          %s423 = scalar_lea.vmem %s1, %s422
          // Predicated region
          $region83: #{sentiment_rnn_forward.1} parent=81 // pred_check
            _
          $region84: #{sentiment_rnn_forward.1} parent=81 // pred_check_branch
            %425 = sbr.rel (0) target = $region86
          $region85: #{sentiment_rnn_forward.1} parent=81 // pred_region
            // Predicated region
            $region87: #{sentiment_rnn_forward.1} parent=85 // pred_check
              _
            $region88: #{sentiment_rnn_forward.1} parent=85 // pred_check_branch
              %427 = sbr.rel (0) target = $region90
            $region89: #{sentiment_rnn_forward.1} parent=85 // pred_region
              // Predicated region
              $region102: #{sentiment_rnn_forward.1} parent=89 // pred_check
                _
              $region103: #{sentiment_rnn_forward.1} parent=89 // pred_check_branch
                %445 = sbr.rel (0) target = $region105
              $region104: #{sentiment_rnn_forward.1} parent=89 // pred_region
                loop: start=0, step=1, limit=1
                $region106: #{sentiment_rnn_forward.1} parent=104 // loop_pre_header
                  _
                $region107: #{sentiment_rnn_forward.1} parent=104 // loop_header
                  %s447 = sphi 0, %s451
                  %p448 = scmp.ge.s32.totalorder %s447, 1
                  %s452 = sphi %s423, %s423
                  %s453 = sphi %s421, %s421
                $region108: #{sentiment_rnn_forward.1} parent=104 // loop_header_branch
                  %450 = sbr.rel (%p448) target = $region112
                $region109: #{sentiment_rnn_forward.1} parent=104 // loop_body
                  %v454 = vld [vmem:[%s452] sm:$0xff]
                  %455 = vst [vmem:[%s453] sm:$0xff] %v454
                  %v456 = vld [vmem:[%s452 + $0x10] sm:$0xff]
                  %457 = vst [vmem:[%s453 + $0x8] sm:$0xff] %v456
                $region110: #{sentiment_rnn_forward.1} parent=104 // loop_footer
                  %s451 = sadd.s32 1, %s447
                $region111: #{sentiment_rnn_forward.1} parent=104 // loop_footer_branch
                  %446 = sbr.rel target = $region107
                $region112: #{sentiment_rnn_forward.1} parent=104 // loop_exit
                  _
              $region105: #{sentiment_rnn_forward.1} parent=89 // pred_fallthru
                _
              // Predicated region
              $region113: #{sentiment_rnn_forward.1} parent=89 // pred_check
                _
              $region114: #{sentiment_rnn_forward.1} parent=89 // pred_check_branch
                %459 = sbr.rel target = $region116
              $region115: #{sentiment_rnn_forward.1} parent=89 // pred_region
                _
              $region116: #{sentiment_rnn_forward.1} parent=89 // pred_fallthru
                _
            $region90: #{sentiment_rnn_forward.1} parent=85 // pred_fallthru
              _
            // Predicated region
            $region91: #{sentiment_rnn_forward.1} parent=85 // pred_check
              _
            $region92: #{sentiment_rnn_forward.1} parent=85 // pred_check_branch
              %429 = sbr.rel target = $region94
            $region93: #{sentiment_rnn_forward.1} parent=85 // pred_region
              %s431 = ssub.s32 256, 1
              loop: start=0, step=1, limit=1
              $region95: #{sentiment_rnn_forward.1} parent=93 // loop_pre_header
                _
              $region96: #{sentiment_rnn_forward.1} parent=93 // loop_header
                %s433 = sphi 0, %s437
                %p434 = scmp.ge.s32.totalorder %s433, 1
                %s438 = sphi %s423, %s423
                %s439 = sphi %s421, %s421
              $region97: #{sentiment_rnn_forward.1} parent=93 // loop_header_branch
                %436 = sbr.rel (%p434) target = $region101
              $region98: #{sentiment_rnn_forward.1} parent=93 // loop_body
                %v440 = vld [vmem:[%s438] sm:%s431]
                %441 = vst [vmem:[%s439] sm:%s431] %v440
                %v442 = vld [vmem:[%s438 + $0x10] sm:%s431]
                %443 = vst [vmem:[%s439 + $0x8] sm:%s431] %v442
              $region99: #{sentiment_rnn_forward.1} parent=93 // loop_footer
                %s437 = sadd.s32 1, %s433
              $region100: #{sentiment_rnn_forward.1} parent=93 // loop_footer_branch
                %432 = sbr.rel target = $region96
              $region101: #{sentiment_rnn_forward.1} parent=93 // loop_exit
                _
            $region94: #{sentiment_rnn_forward.1} parent=85 // pred_fallthru
              _
          $region86: #{sentiment_rnn_forward.1} parent=81 // pred_fallthru
            _
          %460 = vnop
        $region82: #{sentiment_rnn_forward.1} parent=39 // pred_fallthru
          _
        // Predicated region
        $region117: #{sentiment_rnn_forward.1} parent=39 // pred_check
          %p461 = pneg %p98
        $region118: #{sentiment_rnn_forward.1} parent=39 // pred_check_branch
          %463 = sbr.rel (%p461) target = $region120
        $region119: #{sentiment_rnn_forward.1} parent=39 // pred_region
          %s464 = sand.u32 %s88, 1
          %s465 = sand.u32 %s88, 1
          %s466 = smul.addr %s465, 16
          %s467 = scalar_lea.vmem [#allocation7], %s466
          %s468 = smul.addr %s26, 8
          %s469 = scalar_lea.vmem %s2, %s468
          // Predicated region
          $region121: #{sentiment_rnn_forward.1} parent=119 // pred_check
            _
          $region122: #{sentiment_rnn_forward.1} parent=119 // pred_check_branch
            %471 = sbr.rel (0) target = $region124
          $region123: #{sentiment_rnn_forward.1} parent=119 // pred_region
            // Predicated region
            $region125: #{sentiment_rnn_forward.1} parent=123 // pred_check
              _
            $region126: #{sentiment_rnn_forward.1} parent=123 // pred_check_branch
              %473 = sbr.rel (0) target = $region128
            $region127: #{sentiment_rnn_forward.1} parent=123 // pred_region
              // Predicated region
              $region140: #{sentiment_rnn_forward.1} parent=127 // pred_check
                _
              $region141: #{sentiment_rnn_forward.1} parent=127 // pred_check_branch
                %491 = sbr.rel (0) target = $region143
              $region142: #{sentiment_rnn_forward.1} parent=127 // pred_region
                loop: start=0, step=1, limit=1
                $region144: #{sentiment_rnn_forward.1} parent=142 // loop_pre_header
                  _
                $region145: #{sentiment_rnn_forward.1} parent=142 // loop_header
                  %s493 = sphi 0, %s497
                  %p494 = scmp.ge.s32.totalorder %s493, 1
                  %s498 = sphi %s469, %s469
                  %s499 = sphi %s467, %s467
                $region146: #{sentiment_rnn_forward.1} parent=142 // loop_header_branch
                  %496 = sbr.rel (%p494) target = $region150
                $region147: #{sentiment_rnn_forward.1} parent=142 // loop_body
                  %v500 = vld [vmem:[%s498] sm:$0xff]
                  %501 = vst [vmem:[%s499] sm:$0xff] %v500
                  %v502 = vld [vmem:[%s498 + $0x10] sm:$0xff]
                  %503 = vst [vmem:[%s499 + $0x8] sm:$0xff] %v502
                $region148: #{sentiment_rnn_forward.1} parent=142 // loop_footer
                  %s497 = sadd.s32 1, %s493
                $region149: #{sentiment_rnn_forward.1} parent=142 // loop_footer_branch
                  %492 = sbr.rel target = $region145
                $region150: #{sentiment_rnn_forward.1} parent=142 // loop_exit
                  _
              $region143: #{sentiment_rnn_forward.1} parent=127 // pred_fallthru
                _
              // Predicated region
              $region151: #{sentiment_rnn_forward.1} parent=127 // pred_check
                _
              $region152: #{sentiment_rnn_forward.1} parent=127 // pred_check_branch
                %505 = sbr.rel target = $region154
              $region153: #{sentiment_rnn_forward.1} parent=127 // pred_region
                _
              $region154: #{sentiment_rnn_forward.1} parent=127 // pred_fallthru
                _
            $region128: #{sentiment_rnn_forward.1} parent=123 // pred_fallthru
              _
            // Predicated region
            $region129: #{sentiment_rnn_forward.1} parent=123 // pred_check
              _
            $region130: #{sentiment_rnn_forward.1} parent=123 // pred_check_branch
              %475 = sbr.rel target = $region132
            $region131: #{sentiment_rnn_forward.1} parent=123 // pred_region
              %s477 = ssub.s32 256, 1
              loop: start=0, step=1, limit=1
              $region133: #{sentiment_rnn_forward.1} parent=131 // loop_pre_header
                _
              $region134: #{sentiment_rnn_forward.1} parent=131 // loop_header
                %s479 = sphi 0, %s483
                %p480 = scmp.ge.s32.totalorder %s479, 1
                %s484 = sphi %s469, %s469
                %s485 = sphi %s467, %s467
              $region135: #{sentiment_rnn_forward.1} parent=131 // loop_header_branch
                %482 = sbr.rel (%p480) target = $region139
              $region136: #{sentiment_rnn_forward.1} parent=131 // loop_body
                %v486 = vld [vmem:[%s484] sm:%s477]
                %487 = vst [vmem:[%s485] sm:%s477] %v486
                %v488 = vld [vmem:[%s484 + $0x10] sm:%s477]
                %489 = vst [vmem:[%s485 + $0x8] sm:%s477] %v488
              $region137: #{sentiment_rnn_forward.1} parent=131 // loop_footer
                %s483 = sadd.s32 1, %s479
              $region138: #{sentiment_rnn_forward.1} parent=131 // loop_footer_branch
                %478 = sbr.rel target = $region134
              $region139: #{sentiment_rnn_forward.1} parent=131 // loop_exit
                _
            $region132: #{sentiment_rnn_forward.1} parent=123 // pred_fallthru
              _
          $region124: #{sentiment_rnn_forward.1} parent=119 // pred_fallthru
            _
          %506 = vnop
        $region120: #{sentiment_rnn_forward.1} parent=39 // pred_fallthru
          _
      $region40: #{sentiment_rnn_forward.1} parent=5 // pred_fallthru
        _
      %p507 = scmp.le.s32.totalorder 1, %s26
      %p508 = scmp.lt.s32.totalorder %s26, 3
      %p509 = pnand %p507, %p508
      %p510 = pneg %p509
      // Predicated region
      $region155: #{sentiment_rnn_forward.1} parent=5 // pred_check
        _
      $region156: #{sentiment_rnn_forward.1} parent=5 // pred_check_branch
        %512 = sbr.rel (%p509) target = $region158
      $region157: #{sentiment_rnn_forward.1} parent=5 // pred_region
        %s513 = ssub.s32 %s26, 1
        %s514 = sand.u32 %s39, 1
        %s515 = sand.u32 %s39, 1
        %s516 = smul.addr %s515, 64
        %s517 = scalar_lea.vmem [#allocation5], %s516
        // Predicated region
        $region159: #{sentiment_rnn_forward.1} parent=157 // pred_check
          %p518 = pneg %p52
        $region160: #{sentiment_rnn_forward.1} parent=157 // pred_check_branch
          %520 = sbr.rel (%p518) target = $region162
        $region161: #{sentiment_rnn_forward.1} parent=157 // pred_region
          _
        $region162: #{sentiment_rnn_forward.1} parent=157 // pred_fallthru
          _
        %s521 = sand.u32 %s65, 1
        %s522 = sand.u32 %s65, 1
        %s523 = smul.addr %s522, 16
        %s524 = scalar_lea.vmem [#allocation6], %s523
        // Predicated region
        $region163: #{sentiment_rnn_forward.1} parent=157 // pred_check
          %p525 = pneg %p78
        $region164: #{sentiment_rnn_forward.1} parent=157 // pred_check_branch
          %527 = sbr.rel (%p525) target = $region166
        $region165: #{sentiment_rnn_forward.1} parent=157 // pred_region
          _
        $region166: #{sentiment_rnn_forward.1} parent=157 // pred_fallthru
          _
        %s528 = sand.u32 %s91, 1
        %s529 = sand.u32 %s91, 1
        %s530 = smul.addr %s529, 16
        %s531 = scalar_lea.vmem [#allocation7], %s530
        // Predicated region
        $region167: #{sentiment_rnn_forward.1} parent=157 // pred_check
          %p532 = pneg %p104
        $region168: #{sentiment_rnn_forward.1} parent=157 // pred_check_branch
          %534 = sbr.rel (%p532) target = $region170
        $region169: #{sentiment_rnn_forward.1} parent=157 // pred_region
          _
        $region170: #{sentiment_rnn_forward.1} parent=157 // pred_fallthru
          _
        %s535 = sand.u32 %s39, 1
        %s536 = sand.u32 %s39, 1
        %s537 = smul.addr %s536, 64
        %s538 = scalar_lea.vmem [#allocation5], %s537
        %p539 = pneg %p52
        %p540 = pneg %p49
        %s541 = sand.u32 %s65, 1
        %s542 = sand.u32 %s65, 1
        %s543 = smul.addr %s542, 16
        %s544 = scalar_lea.vmem [#allocation6], %s543
        %p545 = pneg %p78
        %p546 = pneg %p75
        %s547 = sand.u32 %s91, 1
        %s548 = sand.u32 %s91, 1
        %s549 = smul.addr %s548, 16
        %s550 = scalar_lea.vmem [#allocation7], %s549
        %p551 = pneg %p104
        %p552 = pneg %p101
        %p553 = pneg %p125
        %p554 = pneg %p122
        %p555 = pneg %p146
        %p556 = pneg %p143
        %p557 = pneg %p167
        %p558 = pneg %p164
        %p559 = pneg %p188
        %p560 = pneg %p185
        %p561 = pneg %p209
        %p562 = pneg %p206
        %p563 = pneg %p230
        %p564 = pneg %p227
        %p565 = pneg %p256
        %p566 = pneg %p253
        %p567 = scmp.lt.s32.totalorder %s31, 1
        %s568 = scalar_select %p567, %s31, 1
        %s569 = smul.addr %s568, 8
        %s570 = scalar_lea.vmem %s9, %s569
        %p571 = pneg %p282
        %p572 = pneg %p279
        %s573 = sand.u32 %s269, 1
        %s574 = scalar_lea.sflag [#allocation9], %s573
        %s575 = sand.u32 %s269, 1
        %s576 = smul.addr %s575, 16
        %s577 = scalar_lea.vmem [#allocation8], %s576
        %p578 = pneg %p308
        %p579 = pneg %p305
        %s580 = sand.u32 %s295, 1
        %s581 = scalar_lea.sflag [#allocation11], %s580
        %s582 = sand.u32 %s295, 1
        %s583 = smul.addr %s582, 16
        %s584 = scalar_lea.vmem [#allocation10], %s583
        %p585 = scmp.lt.s32.totalorder %s31, 1
        %s586 = scalar_select %p585, %s31, 1
        %s587 = smul.addr %s586, 8
        %s588 = scalar_lea.vmem %s9, %s587
        %v589 = vlaneseq
        %v590 = vand.u32 %v589, 127
        %vm591 = vcmp.lt.s32.totalorder %v590, 96
        %v592 = vld [vmem:[%s3] sm:$0xff]
        %v593 = vld [vmem:[%s3 + $0x8] sm:$0xff]
        %v594 = vld [vmem:[%s3 + $0x10] sm:$0xff]
        %v595 = vld [vmem:[%s3 + $0x18] sm:$0xff]
        %v596 = vld [vmem:[%s524] sm:$0xff]
        %v597 = vld [vmem:[%s531] sm:$0xff]
        %v598 = vld [vmem:[%s517] sm:$0xff]
        %vm599 = vcmask 261120
        %v601 = vsel %vm599, %v596, 0
        %603 = vmatprep.subr.mxu0 0.0
        %604 = vmatpush1.msra.mxu0 0.0
        %605 = vmatprep.subr.mxu0 0.0
        %606 = vmatpush1.msra.mxu0 0.0
        %607 = vmatprep.subr.mxu0 0.0
        %608 = vmatpush1.msra.mxu0 0.0
        %609 = vmatprep.subr.mxu0 0.0
        %610 = vmatpush1.msra.mxu0 0.0
        %611 = vmatprep.subr.mxu0 0.0
        %612 = vmatpush1.msra.mxu0 0.0
        %613 = vmatprep.subr.mxu0 0.0
        %614 = vmatpush1.msra.mxu0 0.0
        %615 = vmatprep.subr.mxu0 0.0
        %616 = vmatpush1.msra.mxu0 0.0
        %617 = vmatprep.subr.mxu0 0.0
        %618 = vmatpush1.msra.mxu0 0.0
        %619 = vmatprep.subr.mxu0 0.0
        %620 = vmatpush1.msra.mxu0 0.0
        %621 = vmatprep.subr.mxu0 0.0
        %622 = vmatpush1.msra.mxu0 0.0
        %623 = vmatprep.subr.mxu0 0.0
        %624 = vmatpush1.msra.mxu0 0.0
        %625 = vmatprep.subr.mxu0 0.0
        %626 = vmatpush1.msra.mxu0 0.0
        %627 = vmatprep.subr.mxu0 0.0
        %628 = vmatpush1.msra.mxu0 %v595
        %629 = vmatprep.subr.mxu0 0.0
        %630 = vmatpush1.msra.mxu0 %v594
        %631 = vmatprep.subr.mxu0 0.0
        %632 = vmatpush1.msra.mxu0 %v593
        %633 = vmatprep.subr.mxu0 0.0
        %634 = vmatpush1.msra.mxu0 %v592
        %635 = vmatprep.subr.mxu0 0.0
        %636 = vmatpush2.msra.mxu0 0.0
        %637 = vmatprep.subr.mxu0 0.0
        %638 = vmatpush2.msra.mxu0 0.0
        %639 = vmatprep.subr.mxu0 0.0
        %640 = vmatpush2.msra.mxu0 0.0
        %641 = vmatprep.subr.mxu0 0.0
        %642 = vmatpush2.msra.mxu0 0.0
        %643 = vmatprep.subr.mxu0 0.0
        %644 = vmatpush2.msra.mxu0 0.0
        %645 = vmatprep.subr.mxu0 0.0
        %646 = vmatpush2.msra.mxu0 0.0
        %647 = vmatprep.subr.mxu0 0.0
        %648 = vmatpush2.msra.mxu0 0.0
        %649 = vmatprep.subr.mxu0 0.0
        %650 = vmatpush2.msra.mxu0 0.0
        %651 = vmatprep.subr.mxu0 0.0
        %652 = vmatpush2.msra.mxu0 0.0
        %653 = vmatprep.subr.mxu0 0.0
        %654 = vmatpush2.msra.mxu0 0.0
        %655 = vmatprep.subr.mxu0 0.0
        %656 = vmatpush2.msra.mxu0 0.0
        %657 = vmatprep.subr.mxu0 0.0
        %658 = vmatpush2.msra.mxu0 0.0
        %659 = vmatprep.subr.mxu0 0.0
        %660 = vmatpush2.msra.mxu0 0.0
        %661 = vmatprep.subr.mxu0 0.0
        %662 = vmatpush2.msra.mxu0 0.0
        %663 = vmatprep.subr.mxu0 0.0
        %664 = vmatpush2.msra.mxu0 0.0
        %665 = vmatprep.subr.mxu0 0.0
        %666 = vmatpush2.msra.mxu0 0.0
        %667 = vmatprep.mubr.f32.mxu0 0.0
        %668 = vmatmul.mubr.f32.gmra.mxu0 %v601
        %v669 = vpop.f32.mrf.mxu0
        %v670 = vadd.f32 0.0, %v669
        %v671 = vpop.f32.mrf.mxu0
        %672 = vdwg.mxu0
        %v673 = vadd.f32 %v598, %v670
        %v674 = vxor.u32 %v673, 2147483648
        %v675 = vmul.f32 %v674, 1.442695
        %v676 = vpow.pop %v675
        %v677 = vadd.f32 %v676, 1.0
        %v678 = vrcp.pop %v677
        %v679 = vmul.f32 1.0, %v678
        %v680 = vtanh.pop %v673
        %v681 = vsel %vm591, %v679, %v680
        %683 = vrot.lane.b32.xlu0 %v597, 32
        %v684 = vpop.permute.xlu0 %683
        %v686 = vmul.f32 %v681, %v684
        %688 = vrot.lane.b32.xlu0 %v681, 32
        %v689 = vpop.permute.xlu0 %688
        %v691 = vmul.f32 %v681, %v689
        %693 = vrot.lane.b32.xlu0 %v691, 32
        %v694 = vpop.permute.xlu0 %693
        %v696 = vadd.f32 %v686, %v694
        %v697 = vtanh.pop %v696
        %699 = vrot.lane.b32.xlu0 %v697, 32
        %v700 = vpop.permute.xlu0 %699
        %v702 = vmul.f32 %v681, %v700
        %704 = vrot.lane.b32.xlu0 %v702, 64
        %v705 = vpop.permute.xlu0 %704
        %707 = vst.msk [vmem:[#allocation2] sm:$0xff] %vm599, %v705
        %s708 = scalar_lea.vmem %s517, 8 [#allocation5]
        %v709 = vld [vmem:[%s708] sm:$0xff]
        %v710 = vsel %vm599, %v705, 0
        %712 = vmatprep.subr.mxu0 0.0
        %713 = vmatpush1.msra.mxu0 0.0
        %714 = vmatprep.subr.mxu0 0.0
        %715 = vmatpush1.msra.mxu0 0.0
        %716 = vmatprep.subr.mxu0 0.0
        %717 = vmatpush1.msra.mxu0 0.0
        %718 = vmatprep.subr.mxu0 0.0
        %719 = vmatpush1.msra.mxu0 0.0
        %720 = vmatprep.subr.mxu0 0.0
        %721 = vmatpush1.msra.mxu0 0.0
        %722 = vmatprep.subr.mxu0 0.0
        %723 = vmatpush1.msra.mxu0 0.0
        %724 = vmatprep.subr.mxu0 0.0
        %725 = vmatpush1.msra.mxu0 0.0
        %726 = vmatprep.subr.mxu0 0.0
        %727 = vmatpush1.msra.mxu0 0.0
        %728 = vmatprep.subr.mxu0 0.0
        %729 = vmatpush1.msra.mxu0 0.0
        %730 = vmatprep.subr.mxu0 0.0
        %731 = vmatpush1.msra.mxu0 0.0
        %732 = vmatprep.subr.mxu0 0.0
        %733 = vmatpush1.msra.mxu0 0.0
        %734 = vmatprep.subr.mxu0 0.0
        %735 = vmatpush1.msra.mxu0 0.0
        %736 = vmatprep.subr.mxu0 0.0
        %737 = vmatpush1.msra.mxu0 %v595
        %738 = vmatprep.subr.mxu0 0.0
        %739 = vmatpush1.msra.mxu0 %v594
        %740 = vmatprep.subr.mxu0 0.0
        %741 = vmatpush1.msra.mxu0 %v593
        %742 = vmatprep.subr.mxu0 0.0
        %743 = vmatpush1.msra.mxu0 %v592
        %744 = vmatprep.subr.mxu0 0.0
        %745 = vmatpush2.msra.mxu0 0.0
        %746 = vmatprep.subr.mxu0 0.0
        %747 = vmatpush2.msra.mxu0 0.0
        %748 = vmatprep.subr.mxu0 0.0
        %749 = vmatpush2.msra.mxu0 0.0
        %750 = vmatprep.subr.mxu0 0.0
        %751 = vmatpush2.msra.mxu0 0.0
        %752 = vmatprep.subr.mxu0 0.0
        %753 = vmatpush2.msra.mxu0 0.0
        %754 = vmatprep.subr.mxu0 0.0
        %755 = vmatpush2.msra.mxu0 0.0
        %756 = vmatprep.subr.mxu0 0.0
        %757 = vmatpush2.msra.mxu0 0.0
        %758 = vmatprep.subr.mxu0 0.0
        %759 = vmatpush2.msra.mxu0 0.0
        %760 = vmatprep.subr.mxu0 0.0
        %761 = vmatpush2.msra.mxu0 0.0
        %762 = vmatprep.subr.mxu0 0.0
        %763 = vmatpush2.msra.mxu0 0.0
        %764 = vmatprep.subr.mxu0 0.0
        %765 = vmatpush2.msra.mxu0 0.0
        %766 = vmatprep.subr.mxu0 0.0
        %767 = vmatpush2.msra.mxu0 0.0
        %768 = vmatprep.subr.mxu0 0.0
        %769 = vmatpush2.msra.mxu0 0.0
        %770 = vmatprep.subr.mxu0 0.0
        %771 = vmatpush2.msra.mxu0 0.0
        %772 = vmatprep.subr.mxu0 0.0
        %773 = vmatpush2.msra.mxu0 0.0
        %774 = vmatprep.subr.mxu0 0.0
        %775 = vmatpush2.msra.mxu0 0.0
        %776 = vmatprep.mubr.f32.mxu0 0.0
        %777 = vmatmul.mubr.f32.gmra.mxu0 %v710
        %v778 = vpop.f32.mrf.mxu0
        %v779 = vadd.f32 0.0, %v778
        %v780 = vpop.f32.mrf.mxu0
        %781 = vdwg.mxu0
        %v782 = vadd.f32 %v709, %v779
        %v783 = vxor.u32 %v782, 2147483648
        %v784 = vmul.f32 %v783, 1.442695
        %v785 = vpow.pop %v784
        %v786 = vadd.f32 %v785, 1.0
        %v787 = vrcp.pop %v786
        %v788 = vmul.f32 1.0, %v787
        %v789 = vtanh.pop %v782
        %v790 = vsel %vm591, %v788, %v789
        %v791 = vmul.f32 %v790, %v696
        %793 = vrot.lane.b32.xlu0 %v790, 32
        %v794 = vpop.permute.xlu0 %793
        %v796 = vmul.f32 %v790, %v794
        %798 = vrot.lane.b32.xlu0 %v796, 32
        %v799 = vpop.permute.xlu0 %798
        %v801 = vadd.f32 %v791, %v799
        %v802 = vtanh.pop %v801
        %804 = vrot.lane.b32.xlu0 %v802, 32
        %v805 = vpop.permute.xlu0 %804
        %v807 = vmul.f32 %v790, %v805
        %809 = vrot.lane.b32.xlu0 %v807, 64
        %v810 = vpop.permute.xlu0 %809
        %812 = vst.msk [vmem:[#allocation2 + $0x8] sm:$0xff] %vm599, %v810
        %s813 = scalar_lea.vmem %s517, 16 [#allocation5]
        %v814 = vld [vmem:[%s813] sm:$0xff]
        %v815 = vsel %vm599, %v810, 0
        %817 = vmatprep.subr.mxu0 0.0
        %818 = vmatpush1.msra.mxu0 0.0
        %819 = vmatprep.subr.mxu0 0.0
        %820 = vmatpush1.msra.mxu0 0.0
        %821 = vmatprep.subr.mxu0 0.0
        %822 = vmatpush1.msra.mxu0 0.0
        %823 = vmatprep.subr.mxu0 0.0
        %824 = vmatpush1.msra.mxu0 0.0
        %825 = vmatprep.subr.mxu0 0.0
        %826 = vmatpush1.msra.mxu0 0.0
        %827 = vmatprep.subr.mxu0 0.0
        %828 = vmatpush1.msra.mxu0 0.0
        %829 = vmatprep.subr.mxu0 0.0
        %830 = vmatpush1.msra.mxu0 0.0
        %831 = vmatprep.subr.mxu0 0.0
        %832 = vmatpush1.msra.mxu0 0.0
        %833 = vmatprep.subr.mxu0 0.0
        %834 = vmatpush1.msra.mxu0 0.0
        %835 = vmatprep.subr.mxu0 0.0
        %836 = vmatpush1.msra.mxu0 0.0
        %837 = vmatprep.subr.mxu0 0.0
        %838 = vmatpush1.msra.mxu0 0.0
        %839 = vmatprep.subr.mxu0 0.0
        %840 = vmatpush1.msra.mxu0 0.0
        %841 = vmatprep.subr.mxu0 0.0
        %842 = vmatpush1.msra.mxu0 %v595
        %843 = vmatprep.subr.mxu0 0.0
        %844 = vmatpush1.msra.mxu0 %v594
        %845 = vmatprep.subr.mxu0 0.0
        %846 = vmatpush1.msra.mxu0 %v593
        %847 = vmatprep.subr.mxu0 0.0
        %848 = vmatpush1.msra.mxu0 %v592
        %849 = vmatprep.subr.mxu0 0.0
        %850 = vmatpush2.msra.mxu0 0.0
        %851 = vmatprep.subr.mxu0 0.0
        %852 = vmatpush2.msra.mxu0 0.0
        %853 = vmatprep.subr.mxu0 0.0
        %854 = vmatpush2.msra.mxu0 0.0
        %855 = vmatprep.subr.mxu0 0.0
        %856 = vmatpush2.msra.mxu0 0.0
        %857 = vmatprep.subr.mxu0 0.0
        %858 = vmatpush2.msra.mxu0 0.0
        %859 = vmatprep.subr.mxu0 0.0
        %860 = vmatpush2.msra.mxu0 0.0
        %861 = vmatprep.subr.mxu0 0.0
        %862 = vmatpush2.msra.mxu0 0.0
        %863 = vmatprep.subr.mxu0 0.0
        %864 = vmatpush2.msra.mxu0 0.0
        %865 = vmatprep.subr.mxu0 0.0
        %866 = vmatpush2.msra.mxu0 0.0
        %867 = vmatprep.subr.mxu0 0.0
        %868 = vmatpush2.msra.mxu0 0.0
        %869 = vmatprep.subr.mxu0 0.0
        %870 = vmatpush2.msra.mxu0 0.0
        %871 = vmatprep.subr.mxu0 0.0
        %872 = vmatpush2.msra.mxu0 0.0
        %873 = vmatprep.subr.mxu0 0.0
        %874 = vmatpush2.msra.mxu0 0.0
        %875 = vmatprep.subr.mxu0 0.0
        %876 = vmatpush2.msra.mxu0 0.0
        %877 = vmatprep.subr.mxu0 0.0
        %878 = vmatpush2.msra.mxu0 0.0
        %879 = vmatprep.subr.mxu0 0.0
        %880 = vmatpush2.msra.mxu0 0.0
        %881 = vmatprep.mubr.f32.mxu0 0.0
        %882 = vmatmul.mubr.f32.gmra.mxu0 %v815
        %v883 = vpop.f32.mrf.mxu0
        %v884 = vadd.f32 0.0, %v883
        %v885 = vpop.f32.mrf.mxu0
        %886 = vdwg.mxu0
        %v887 = vadd.f32 %v814, %v884
        %v888 = vxor.u32 %v887, 2147483648
        %v889 = vmul.f32 %v888, 1.442695
        %v890 = vpow.pop %v889
        %v891 = vadd.f32 %v890, 1.0
        %v892 = vrcp.pop %v891
        %v893 = vmul.f32 1.0, %v892
        %v894 = vtanh.pop %v887
        %v895 = vsel %vm591, %v893, %v894
        %v896 = vmul.f32 %v895, %v801
        %898 = vrot.lane.b32.xlu0 %v895, 32
        %v899 = vpop.permute.xlu0 %898
        %v901 = vmul.f32 %v895, %v899
        %903 = vrot.lane.b32.xlu0 %v901, 32
        %v904 = vpop.permute.xlu0 %903
        %v906 = vadd.f32 %v896, %v904
        %v907 = vtanh.pop %v906
        %909 = vrot.lane.b32.xlu0 %v907, 32
        %v910 = vpop.permute.xlu0 %909
        %v912 = vmul.f32 %v895, %v910
        %914 = vrot.lane.b32.xlu0 %v912, 64
        %v915 = vpop.permute.xlu0 %914
        %917 = vst.msk [vmem:[#allocation2 + $0x10] sm:$0xff] %vm599, %v915
        %s918 = scalar_lea.vmem %s517, 24 [#allocation5]
        %v919 = vld [vmem:[%s918] sm:$0xff]
        %v920 = vsel %vm599, %v915, 0
        %922 = vmatprep.subr.mxu0 0.0
        %923 = vmatpush1.msra.mxu0 0.0
        %924 = vmatprep.subr.mxu0 0.0
        %925 = vmatpush1.msra.mxu0 0.0
        %926 = vmatprep.subr.mxu0 0.0
        %927 = vmatpush1.msra.mxu0 0.0
        %928 = vmatprep.subr.mxu0 0.0
        %929 = vmatpush1.msra.mxu0 0.0
        %930 = vmatprep.subr.mxu0 0.0
        %931 = vmatpush1.msra.mxu0 0.0
        %932 = vmatprep.subr.mxu0 0.0
        %933 = vmatpush1.msra.mxu0 0.0
        %934 = vmatprep.subr.mxu0 0.0
        %935 = vmatpush1.msra.mxu0 0.0
        %936 = vmatprep.subr.mxu0 0.0
        %937 = vmatpush1.msra.mxu0 0.0
        %938 = vmatprep.subr.mxu0 0.0
        %939 = vmatpush1.msra.mxu0 0.0
        %940 = vmatprep.subr.mxu0 0.0
        %941 = vmatpush1.msra.mxu0 0.0
        %942 = vmatprep.subr.mxu0 0.0
        %943 = vmatpush1.msra.mxu0 0.0
        %944 = vmatprep.subr.mxu0 0.0
        %945 = vmatpush1.msra.mxu0 0.0
        %946 = vmatprep.subr.mxu0 0.0
        %947 = vmatpush1.msra.mxu0 %v595
        %948 = vmatprep.subr.mxu0 0.0
        %949 = vmatpush1.msra.mxu0 %v594
        %950 = vmatprep.subr.mxu0 0.0
        %951 = vmatpush1.msra.mxu0 %v593
        %952 = vmatprep.subr.mxu0 0.0
        %953 = vmatpush1.msra.mxu0 %v592
        %954 = vmatprep.subr.mxu0 0.0
        %955 = vmatpush2.msra.mxu0 0.0
        %956 = vmatprep.subr.mxu0 0.0
        %957 = vmatpush2.msra.mxu0 0.0
        %958 = vmatprep.subr.mxu0 0.0
        %959 = vmatpush2.msra.mxu0 0.0
        %960 = vmatprep.subr.mxu0 0.0
        %961 = vmatpush2.msra.mxu0 0.0
        %962 = vmatprep.subr.mxu0 0.0
        %963 = vmatpush2.msra.mxu0 0.0
        %964 = vmatprep.subr.mxu0 0.0
        %965 = vmatpush2.msra.mxu0 0.0
        %966 = vmatprep.subr.mxu0 0.0
        %967 = vmatpush2.msra.mxu0 0.0
        %968 = vmatprep.subr.mxu0 0.0
        %969 = vmatpush2.msra.mxu0 0.0
        %970 = vmatprep.subr.mxu0 0.0
        %971 = vmatpush2.msra.mxu0 0.0
        %972 = vmatprep.subr.mxu0 0.0
        %973 = vmatpush2.msra.mxu0 0.0
        %974 = vmatprep.subr.mxu0 0.0
        %975 = vmatpush2.msra.mxu0 0.0
        %976 = vmatprep.subr.mxu0 0.0
        %977 = vmatpush2.msra.mxu0 0.0
        %978 = vmatprep.subr.mxu0 0.0
        %979 = vmatpush2.msra.mxu0 0.0
        %980 = vmatprep.subr.mxu0 0.0
        %981 = vmatpush2.msra.mxu0 0.0
        %982 = vmatprep.subr.mxu0 0.0
        %983 = vmatpush2.msra.mxu0 0.0
        %984 = vmatprep.subr.mxu0 0.0
        %985 = vmatpush2.msra.mxu0 0.0
        %986 = vmatprep.mubr.f32.mxu0 0.0
        %987 = vmatmul.mubr.f32.gmra.mxu0 %v920
        %v988 = vpop.f32.mrf.mxu0
        %v989 = vadd.f32 0.0, %v988
        %v990 = vpop.f32.mrf.mxu0
        %991 = vdwg.mxu0
        %v992 = vadd.f32 %v919, %v989
        %v993 = vxor.u32 %v992, 2147483648
        %v994 = vmul.f32 %v993, 1.442695
        %v995 = vpow.pop %v994
        %v996 = vadd.f32 %v995, 1.0
        %v997 = vrcp.pop %v996
        %v998 = vmul.f32 1.0, %v997
        %v999 = vtanh.pop %v992
        %v1000 = vsel %vm591, %v998, %v999
        %v1001 = vmul.f32 %v1000, %v906
        %1003 = vrot.lane.b32.xlu0 %v1000, 32
        %v1004 = vpop.permute.xlu0 %1003
        %v1006 = vmul.f32 %v1000, %v1004
        %1008 = vrot.lane.b32.xlu0 %v1006, 32
        %v1009 = vpop.permute.xlu0 %1008
        %v1011 = vadd.f32 %v1001, %v1009
        %v1012 = vtanh.pop %v1011
        %1014 = vrot.lane.b32.xlu0 %v1012, 32
        %v1015 = vpop.permute.xlu0 %1014
        %v1017 = vmul.f32 %v1000, %v1015
        %1019 = vrot.lane.b32.xlu0 %v1017, 64
        %v1020 = vpop.permute.xlu0 %1019
        %1022 = vst.msk [vmem:[#allocation2 + $0x18] sm:$0xff] %vm599, %v1020
        %s1023 = scalar_lea.vmem %s517, 32 [#allocation5]
        %v1024 = vld [vmem:[%s1023] sm:$0xff]
        %v1025 = vsel %vm599, %v1020, 0
        %1027 = vmatprep.subr.mxu0 0.0
        %1028 = vmatpush1.msra.mxu0 0.0
        %1029 = vmatprep.subr.mxu0 0.0
        %1030 = vmatpush1.msra.mxu0 0.0
        %1031 = vmatprep.subr.mxu0 0.0
        %1032 = vmatpush1.msra.mxu0 0.0
        %1033 = vmatprep.subr.mxu0 0.0
        %1034 = vmatpush1.msra.mxu0 0.0
        %1035 = vmatprep.subr.mxu0 0.0
        %1036 = vmatpush1.msra.mxu0 0.0
        %1037 = vmatprep.subr.mxu0 0.0
        %1038 = vmatpush1.msra.mxu0 0.0
        %1039 = vmatprep.subr.mxu0 0.0
        %1040 = vmatpush1.msra.mxu0 0.0
        %1041 = vmatprep.subr.mxu0 0.0
        %1042 = vmatpush1.msra.mxu0 0.0
        %1043 = vmatprep.subr.mxu0 0.0
        %1044 = vmatpush1.msra.mxu0 0.0
        %1045 = vmatprep.subr.mxu0 0.0
        %1046 = vmatpush1.msra.mxu0 0.0
        %1047 = vmatprep.subr.mxu0 0.0
        %1048 = vmatpush1.msra.mxu0 0.0
        %1049 = vmatprep.subr.mxu0 0.0
        %1050 = vmatpush1.msra.mxu0 0.0
        %1051 = vmatprep.subr.mxu0 0.0
        %1052 = vmatpush1.msra.mxu0 %v595
        %1053 = vmatprep.subr.mxu0 0.0
        %1054 = vmatpush1.msra.mxu0 %v594
        %1055 = vmatprep.subr.mxu0 0.0
        %1056 = vmatpush1.msra.mxu0 %v593
        %1057 = vmatprep.subr.mxu0 0.0
        %1058 = vmatpush1.msra.mxu0 %v592
        %1059 = vmatprep.subr.mxu0 0.0
        %1060 = vmatpush2.msra.mxu0 0.0
        %1061 = vmatprep.subr.mxu0 0.0
        %1062 = vmatpush2.msra.mxu0 0.0
        %1063 = vmatprep.subr.mxu0 0.0
        %1064 = vmatpush2.msra.mxu0 0.0
        %1065 = vmatprep.subr.mxu0 0.0
        %1066 = vmatpush2.msra.mxu0 0.0
        %1067 = vmatprep.subr.mxu0 0.0
        %1068 = vmatpush2.msra.mxu0 0.0
        %1069 = vmatprep.subr.mxu0 0.0
        %1070 = vmatpush2.msra.mxu0 0.0
        %1071 = vmatprep.subr.mxu0 0.0
        %1072 = vmatpush2.msra.mxu0 0.0
        %1073 = vmatprep.subr.mxu0 0.0
        %1074 = vmatpush2.msra.mxu0 0.0
        %1075 = vmatprep.subr.mxu0 0.0
        %1076 = vmatpush2.msra.mxu0 0.0
        %1077 = vmatprep.subr.mxu0 0.0
        %1078 = vmatpush2.msra.mxu0 0.0
        %1079 = vmatprep.subr.mxu0 0.0
        %1080 = vmatpush2.msra.mxu0 0.0
        %1081 = vmatprep.subr.mxu0 0.0
        %1082 = vmatpush2.msra.mxu0 0.0
        %1083 = vmatprep.subr.mxu0 0.0
        %1084 = vmatpush2.msra.mxu0 0.0
        %1085 = vmatprep.subr.mxu0 0.0
        %1086 = vmatpush2.msra.mxu0 0.0
        %1087 = vmatprep.subr.mxu0 0.0
        %1088 = vmatpush2.msra.mxu0 0.0
        %1089 = vmatprep.subr.mxu0 0.0
        %1090 = vmatpush2.msra.mxu0 0.0
        %1091 = vmatprep.mubr.f32.mxu0 0.0
        %1092 = vmatmul.mubr.f32.gmra.mxu0 %v1025
        %v1093 = vpop.f32.mrf.mxu0
        %v1094 = vadd.f32 0.0, %v1093
        %v1095 = vpop.f32.mrf.mxu0
        %1096 = vdwg.mxu0
        %v1097 = vadd.f32 %v1024, %v1094
        %v1098 = vxor.u32 %v1097, 2147483648
        %v1099 = vmul.f32 %v1098, 1.442695
        %v1100 = vpow.pop %v1099
        %v1101 = vadd.f32 %v1100, 1.0
        %v1102 = vrcp.pop %v1101
        %v1103 = vmul.f32 1.0, %v1102
        %v1104 = vtanh.pop %v1097
        %v1105 = vsel %vm591, %v1103, %v1104
        %v1106 = vmul.f32 %v1105, %v1011
        %1108 = vrot.lane.b32.xlu0 %v1105, 32
        %v1109 = vpop.permute.xlu0 %1108
        %v1111 = vmul.f32 %v1105, %v1109
        %1113 = vrot.lane.b32.xlu0 %v1111, 32
        %v1114 = vpop.permute.xlu0 %1113
        %v1116 = vadd.f32 %v1106, %v1114
        %v1117 = vtanh.pop %v1116
        %1119 = vrot.lane.b32.xlu0 %v1117, 32
        %v1120 = vpop.permute.xlu0 %1119
        %v1122 = vmul.f32 %v1105, %v1120
        %1124 = vrot.lane.b32.xlu0 %v1122, 64
        %v1125 = vpop.permute.xlu0 %1124
        %1127 = vst.msk [vmem:[#allocation2 + $0x20] sm:$0xff] %vm599, %v1125
        %s1128 = scalar_lea.vmem %s517, 40 [#allocation5]
        %v1129 = vld [vmem:[%s1128] sm:$0xff]
        %v1130 = vsel %vm599, %v1125, 0
        %1132 = vmatprep.subr.mxu0 0.0
        %1133 = vmatpush1.msra.mxu0 0.0
        %1134 = vmatprep.subr.mxu0 0.0
        %1135 = vmatpush1.msra.mxu0 0.0
        %1136 = vmatprep.subr.mxu0 0.0
        %1137 = vmatpush1.msra.mxu0 0.0
        %1138 = vmatprep.subr.mxu0 0.0
        %1139 = vmatpush1.msra.mxu0 0.0
        %1140 = vmatprep.subr.mxu0 0.0
        %1141 = vmatpush1.msra.mxu0 0.0
        %1142 = vmatprep.subr.mxu0 0.0
        %1143 = vmatpush1.msra.mxu0 0.0
        %1144 = vmatprep.subr.mxu0 0.0
        %1145 = vmatpush1.msra.mxu0 0.0
        %1146 = vmatprep.subr.mxu0 0.0
        %1147 = vmatpush1.msra.mxu0 0.0
        %1148 = vmatprep.subr.mxu0 0.0
        %1149 = vmatpush1.msra.mxu0 0.0
        %1150 = vmatprep.subr.mxu0 0.0
        %1151 = vmatpush1.msra.mxu0 0.0
        %1152 = vmatprep.subr.mxu0 0.0
        %1153 = vmatpush1.msra.mxu0 0.0
        %1154 = vmatprep.subr.mxu0 0.0
        %1155 = vmatpush1.msra.mxu0 0.0
        %1156 = vmatprep.subr.mxu0 0.0
        %1157 = vmatpush1.msra.mxu0 %v595
        %1158 = vmatprep.subr.mxu0 0.0
        %1159 = vmatpush1.msra.mxu0 %v594
        %1160 = vmatprep.subr.mxu0 0.0
        %1161 = vmatpush1.msra.mxu0 %v593
        %1162 = vmatprep.subr.mxu0 0.0
        %1163 = vmatpush1.msra.mxu0 %v592
        %1164 = vmatprep.subr.mxu0 0.0
        %1165 = vmatpush2.msra.mxu0 0.0
        %1166 = vmatprep.subr.mxu0 0.0
        %1167 = vmatpush2.msra.mxu0 0.0
        %1168 = vmatprep.subr.mxu0 0.0
        %1169 = vmatpush2.msra.mxu0 0.0
        %1170 = vmatprep.subr.mxu0 0.0
        %1171 = vmatpush2.msra.mxu0 0.0
        %1172 = vmatprep.subr.mxu0 0.0
        %1173 = vmatpush2.msra.mxu0 0.0
        %1174 = vmatprep.subr.mxu0 0.0
        %1175 = vmatpush2.msra.mxu0 0.0
        %1176 = vmatprep.subr.mxu0 0.0
        %1177 = vmatpush2.msra.mxu0 0.0
        %1178 = vmatprep.subr.mxu0 0.0
        %1179 = vmatpush2.msra.mxu0 0.0
        %1180 = vmatprep.subr.mxu0 0.0
        %1181 = vmatpush2.msra.mxu0 0.0
        %1182 = vmatprep.subr.mxu0 0.0
        %1183 = vmatpush2.msra.mxu0 0.0
        %1184 = vmatprep.subr.mxu0 0.0
        %1185 = vmatpush2.msra.mxu0 0.0
        %1186 = vmatprep.subr.mxu0 0.0
        %1187 = vmatpush2.msra.mxu0 0.0
        %1188 = vmatprep.subr.mxu0 0.0
        %1189 = vmatpush2.msra.mxu0 0.0
        %1190 = vmatprep.subr.mxu0 0.0
        %1191 = vmatpush2.msra.mxu0 0.0
        %1192 = vmatprep.subr.mxu0 0.0
        %1193 = vmatpush2.msra.mxu0 0.0
        %1194 = vmatprep.subr.mxu0 0.0
        %1195 = vmatpush2.msra.mxu0 0.0
        %1196 = vmatprep.mubr.f32.mxu0 0.0
        %1197 = vmatmul.mubr.f32.gmra.mxu0 %v1130
        %v1198 = vpop.f32.mrf.mxu0
        %v1199 = vadd.f32 0.0, %v1198
        %v1200 = vpop.f32.mrf.mxu0
        %1201 = vdwg.mxu0
        %v1202 = vadd.f32 %v1129, %v1199
        %v1203 = vxor.u32 %v1202, 2147483648
        %v1204 = vmul.f32 %v1203, 1.442695
        %v1205 = vpow.pop %v1204
        %v1206 = vadd.f32 %v1205, 1.0
        %v1207 = vrcp.pop %v1206
        %v1208 = vmul.f32 1.0, %v1207
        %v1209 = vtanh.pop %v1202
        %v1210 = vsel %vm591, %v1208, %v1209
        %v1211 = vmul.f32 %v1210, %v1116
        %1213 = vrot.lane.b32.xlu0 %v1210, 32
        %v1214 = vpop.permute.xlu0 %1213
        %v1216 = vmul.f32 %v1210, %v1214
        %1218 = vrot.lane.b32.xlu0 %v1216, 32
        %v1219 = vpop.permute.xlu0 %1218
        %v1221 = vadd.f32 %v1211, %v1219
        %v1222 = vtanh.pop %v1221
        %1224 = vrot.lane.b32.xlu0 %v1222, 32
        %v1225 = vpop.permute.xlu0 %1224
        %v1227 = vmul.f32 %v1210, %v1225
        %1229 = vrot.lane.b32.xlu0 %v1227, 64
        %v1230 = vpop.permute.xlu0 %1229
        %1232 = vst.msk [vmem:[#allocation2 + $0x28] sm:$0xff] %vm599, %v1230
        %s1233 = scalar_lea.vmem %s517, 48 [#allocation5]
        %v1234 = vld [vmem:[%s1233] sm:$0xff]
        %v1235 = vsel %vm599, %v1230, 0
        %1237 = vmatprep.subr.mxu0 0.0
        %1238 = vmatpush1.msra.mxu0 0.0
        %1239 = vmatprep.subr.mxu0 0.0
        %1240 = vmatpush1.msra.mxu0 0.0
        %1241 = vmatprep.subr.mxu0 0.0
        %1242 = vmatpush1.msra.mxu0 0.0
        %1243 = vmatprep.subr.mxu0 0.0
        %1244 = vmatpush1.msra.mxu0 0.0
        %1245 = vmatprep.subr.mxu0 0.0
        %1246 = vmatpush1.msra.mxu0 0.0
        %1247 = vmatprep.subr.mxu0 0.0
        %1248 = vmatpush1.msra.mxu0 0.0
        %1249 = vmatprep.subr.mxu0 0.0
        %1250 = vmatpush1.msra.mxu0 0.0
        %1251 = vmatprep.subr.mxu0 0.0
        %1252 = vmatpush1.msra.mxu0 0.0
        %1253 = vmatprep.subr.mxu0 0.0
        %1254 = vmatpush1.msra.mxu0 0.0
        %1255 = vmatprep.subr.mxu0 0.0
        %1256 = vmatpush1.msra.mxu0 0.0
        %1257 = vmatprep.subr.mxu0 0.0
        %1258 = vmatpush1.msra.mxu0 0.0
        %1259 = vmatprep.subr.mxu0 0.0
        %1260 = vmatpush1.msra.mxu0 0.0
        %1261 = vmatprep.subr.mxu0 0.0
        %1262 = vmatpush1.msra.mxu0 %v595
        %1263 = vmatprep.subr.mxu0 0.0
        %1264 = vmatpush1.msra.mxu0 %v594
        %1265 = vmatprep.subr.mxu0 0.0
        %1266 = vmatpush1.msra.mxu0 %v593
        %1267 = vmatprep.subr.mxu0 0.0
        %1268 = vmatpush1.msra.mxu0 %v592
        %1269 = vmatprep.subr.mxu0 0.0
        %1270 = vmatpush2.msra.mxu0 0.0
        %1271 = vmatprep.subr.mxu0 0.0
        %1272 = vmatpush2.msra.mxu0 0.0
        %1273 = vmatprep.subr.mxu0 0.0
        %1274 = vmatpush2.msra.mxu0 0.0
        %1275 = vmatprep.subr.mxu0 0.0
        %1276 = vmatpush2.msra.mxu0 0.0
        %1277 = vmatprep.subr.mxu0 0.0
        %1278 = vmatpush2.msra.mxu0 0.0
        %1279 = vmatprep.subr.mxu0 0.0
        %1280 = vmatpush2.msra.mxu0 0.0
        %1281 = vmatprep.subr.mxu0 0.0
        %1282 = vmatpush2.msra.mxu0 0.0
        %1283 = vmatprep.subr.mxu0 0.0
        %1284 = vmatpush2.msra.mxu0 0.0
        %1285 = vmatprep.subr.mxu0 0.0
        %1286 = vmatpush2.msra.mxu0 0.0
        %1287 = vmatprep.subr.mxu0 0.0
        %1288 = vmatpush2.msra.mxu0 0.0
        %1289 = vmatprep.subr.mxu0 0.0
        %1290 = vmatpush2.msra.mxu0 0.0
        %1291 = vmatprep.subr.mxu0 0.0
        %1292 = vmatpush2.msra.mxu0 0.0
        %1293 = vmatprep.subr.mxu0 0.0
        %1294 = vmatpush2.msra.mxu0 0.0
        %1295 = vmatprep.subr.mxu0 0.0
        %1296 = vmatpush2.msra.mxu0 0.0
        %1297 = vmatprep.subr.mxu0 0.0
        %1298 = vmatpush2.msra.mxu0 0.0
        %1299 = vmatprep.subr.mxu0 0.0
        %1300 = vmatpush2.msra.mxu0 0.0
        %1301 = vmatprep.mubr.f32.mxu0 0.0
        %1302 = vmatmul.mubr.f32.gmra.mxu0 %v1235
        %v1303 = vpop.f32.mrf.mxu0
        %v1304 = vadd.f32 0.0, %v1303
        %v1305 = vpop.f32.mrf.mxu0
        %1306 = vdwg.mxu0
        %v1307 = vadd.f32 %v1234, %v1304
        %v1308 = vxor.u32 %v1307, 2147483648
        %v1309 = vmul.f32 %v1308, 1.442695
        %v1310 = vpow.pop %v1309
        %v1311 = vadd.f32 %v1310, 1.0
        %v1312 = vrcp.pop %v1311
        %v1313 = vmul.f32 1.0, %v1312
        %v1314 = vtanh.pop %v1307
        %v1315 = vsel %vm591, %v1313, %v1314
        %v1316 = vmul.f32 %v1315, %v1221
        %1318 = vrot.lane.b32.xlu0 %v1315, 32
        %v1319 = vpop.permute.xlu0 %1318
        %v1321 = vmul.f32 %v1315, %v1319
        %1323 = vrot.lane.b32.xlu0 %v1321, 32
        %v1324 = vpop.permute.xlu0 %1323
        %v1326 = vadd.f32 %v1316, %v1324
        %v1327 = vtanh.pop %v1326
        %1329 = vrot.lane.b32.xlu0 %v1327, 32
        %v1330 = vpop.permute.xlu0 %1329
        %v1332 = vmul.f32 %v1315, %v1330
        %1334 = vrot.lane.b32.xlu0 %v1332, 64
        %v1335 = vpop.permute.xlu0 %1334
        %1337 = vst.msk [vmem:[#allocation2 + $0x30] sm:$0xff] %vm599, %v1335
        %s1338 = scalar_lea.vmem %s517, 56 [#allocation5]
        %v1339 = vld [vmem:[%s1338] sm:$0xff]
        %v1340 = vsel %vm599, %v1335, 0
        %1342 = vmatprep.subr.mxu0 0.0
        %1343 = vmatpush1.msra.mxu0 0.0
        %1344 = vmatprep.subr.mxu0 0.0
        %1345 = vmatpush1.msra.mxu0 0.0
        %1346 = vmatprep.subr.mxu0 0.0
        %1347 = vmatpush1.msra.mxu0 0.0
        %1348 = vmatprep.subr.mxu0 0.0
        %1349 = vmatpush1.msra.mxu0 0.0
        %1350 = vmatprep.subr.mxu0 0.0
        %1351 = vmatpush1.msra.mxu0 0.0
        %1352 = vmatprep.subr.mxu0 0.0
        %1353 = vmatpush1.msra.mxu0 0.0
        %1354 = vmatprep.subr.mxu0 0.0
        %1355 = vmatpush1.msra.mxu0 0.0
        %1356 = vmatprep.subr.mxu0 0.0
        %1357 = vmatpush1.msra.mxu0 0.0
        %1358 = vmatprep.subr.mxu0 0.0
        %1359 = vmatpush1.msra.mxu0 0.0
        %1360 = vmatprep.subr.mxu0 0.0
        %1361 = vmatpush1.msra.mxu0 0.0
        %1362 = vmatprep.subr.mxu0 0.0
        %1363 = vmatpush1.msra.mxu0 0.0
        %1364 = vmatprep.subr.mxu0 0.0
        %1365 = vmatpush1.msra.mxu0 0.0
        %1366 = vmatprep.subr.mxu0 0.0
        %1367 = vmatpush1.msra.mxu0 %v595
        %1368 = vmatprep.subr.mxu0 0.0
        %1369 = vmatpush1.msra.mxu0 %v594
        %1370 = vmatprep.subr.mxu0 0.0
        %1371 = vmatpush1.msra.mxu0 %v593
        %1372 = vmatprep.subr.mxu0 0.0
        %1373 = vmatpush1.msra.mxu0 %v592
        %1374 = vmatprep.subr.mxu0 0.0
        %1375 = vmatpush2.msra.mxu0 0.0
        %1376 = vmatprep.subr.mxu0 0.0
        %1377 = vmatpush2.msra.mxu0 0.0
        %1378 = vmatprep.subr.mxu0 0.0
        %1379 = vmatpush2.msra.mxu0 0.0
        %1380 = vmatprep.subr.mxu0 0.0
        %1381 = vmatpush2.msra.mxu0 0.0
        %1382 = vmatprep.subr.mxu0 0.0
        %1383 = vmatpush2.msra.mxu0 0.0
        %1384 = vmatprep.subr.mxu0 0.0
        %1385 = vmatpush2.msra.mxu0 0.0
        %1386 = vmatprep.subr.mxu0 0.0
        %1387 = vmatpush2.msra.mxu0 0.0
        %1388 = vmatprep.subr.mxu0 0.0
        %1389 = vmatpush2.msra.mxu0 0.0
        %1390 = vmatprep.subr.mxu0 0.0
        %1391 = vmatpush2.msra.mxu0 0.0
        %1392 = vmatprep.subr.mxu0 0.0
        %1393 = vmatpush2.msra.mxu0 0.0
        %1394 = vmatprep.subr.mxu0 0.0
        %1395 = vmatpush2.msra.mxu0 0.0
        %1396 = vmatprep.subr.mxu0 0.0
        %1397 = vmatpush2.msra.mxu0 0.0
        %1398 = vmatprep.subr.mxu0 0.0
        %1399 = vmatpush2.msra.mxu0 0.0
        %1400 = vmatprep.subr.mxu0 0.0
        %1401 = vmatpush2.msra.mxu0 0.0
        %1402 = vmatprep.subr.mxu0 0.0
        %1403 = vmatpush2.msra.mxu0 0.0
        %1404 = vmatprep.subr.mxu0 0.0
        %1405 = vmatpush2.msra.mxu0 0.0
        %1406 = vmatprep.mubr.f32.mxu0 0.0
        %1407 = vmatmul.mubr.f32.gmra.mxu0 %v1340
        %v1408 = vpop.f32.mrf.mxu0
        %v1409 = vadd.f32 0.0, %v1408
        %v1410 = vpop.f32.mrf.mxu0
        %1411 = vdwg.mxu0
        %v1412 = vadd.f32 %v1339, %v1409
        %v1413 = vxor.u32 %v1412, 2147483648
        %v1414 = vmul.f32 %v1413, 1.442695
        %v1415 = vpow.pop %v1414
        %v1416 = vadd.f32 %v1415, 1.0
        %v1417 = vrcp.pop %v1416
        %v1418 = vmul.f32 1.0, %v1417
        %v1419 = vtanh.pop %v1412
        %v1420 = vsel %vm591, %v1418, %v1419
        %v1421 = vmul.f32 %v1420, %v1326
        %1423 = vrot.lane.b32.xlu0 %v1420, 32
        %v1424 = vpop.permute.xlu0 %1423
        %v1426 = vmul.f32 %v1420, %v1424
        %1428 = vrot.lane.b32.xlu0 %v1426, 32
        %v1429 = vpop.permute.xlu0 %1428
        %v1431 = vadd.f32 %v1421, %v1429
        %v1432 = vtanh.pop %v1431
        %1434 = vrot.lane.b32.xlu0 %v1432, 32
        %v1435 = vpop.permute.xlu0 %1434
        %v1437 = vmul.f32 %v1420, %v1435
        %1439 = vrot.lane.b32.xlu0 %v1437, 64
        %v1440 = vpop.permute.xlu0 %1439
        %1442 = vst.msk [vmem:[#allocation2 + $0x38] sm:$0xff] %vm599, %v1440
        %1443 = vst.msk [vmem:[%s577] sm:$0xff] %vm599, %v1440
        %1445 = vrot.lane.b32.xlu0 %v1431, 96
        %v1446 = vpop.permute.xlu0 %1445
        %1448 = vst.msk [vmem:[%s584] sm:$0xff] %vm599, %v1446
        %v1449 = vld [vmem:[#allocation2] sm:$0xff]
        %v1450 = vld [vmem:[#allocation2 + $0x8] sm:$0xff]
        %v1451 = vld [vmem:[#allocation2 + $0x10] sm:$0xff]
        %v1452 = vld [vmem:[#allocation2 + $0x18] sm:$0xff]
        %v1453 = vld [vmem:[#allocation2 + $0x20] sm:$0xff]
        %v1454 = vld [vmem:[#allocation2 + $0x28] sm:$0xff]
        %v1455 = vld [vmem:[#allocation2 + $0x30] sm:$0xff]
        %v1456 = vld [vmem:[#allocation2 + $0x38] sm:$0xff]
        %v1457 = vld [vmem:[%s4] sm:$0xff]
        %v1458 = vld [vmem:[%s4 + $0x8] sm:$0xff]
        %v1459 = vld [vmem:[%s4 + $0x10] sm:$0xff]
        %v1460 = vld [vmem:[%s4 + $0x18] sm:$0xff]
        %v1461 = vld [vmem:[%s6] sm:$0x1]
        %v1463 = vlaneseq
        %v1464 = vshrl.u32 %v1463, 7
        %v1465 = vsub.s32 0, %v1464
        %v1466 = vrot.slane %v1461, %v1465
        %v1469 = vsel %vm599, %v1449, 0
        %v1472 = vsel %vm599, %v1450, 0
        %v1475 = vsel %vm599, %v1451, 0
        %v1478 = vsel %vm599, %v1452, 0
        %v1481 = vsel %vm599, %v1453, 0
        %v1484 = vsel %vm599, %v1454, 0
        %v1487 = vsel %vm599, %v1455, 0
        %v1490 = vsel %vm599, %v1456, 0
        %1492 = vmatprep.subr.mxu0 0.0
        %1493 = vmatpush1.msra.mxu0 0.0
        %1494 = vmatprep.subr.mxu0 0.0
        %1495 = vmatpush1.msra.mxu0 0.0
        %1496 = vmatprep.subr.mxu0 0.0
        %1497 = vmatpush1.msra.mxu0 0.0
        %1498 = vmatprep.subr.mxu0 0.0
        %1499 = vmatpush1.msra.mxu0 0.0
        %1500 = vmatprep.subr.mxu0 0.0
        %1501 = vmatpush1.msra.mxu0 0.0
        %1502 = vmatprep.subr.mxu0 0.0
        %1503 = vmatpush1.msra.mxu0 0.0
        %1504 = vmatprep.subr.mxu0 0.0
        %1505 = vmatpush1.msra.mxu0 0.0
        %1506 = vmatprep.subr.mxu0 0.0
        %1507 = vmatpush1.msra.mxu0 0.0
        %1508 = vmatprep.subr.mxu0 0.0
        %1509 = vmatpush1.msra.mxu0 0.0
        %1510 = vmatprep.subr.mxu0 0.0
        %1511 = vmatpush1.msra.mxu0 0.0
        %1512 = vmatprep.subr.mxu0 0.0
        %1513 = vmatpush1.msra.mxu0 0.0
        %1514 = vmatprep.subr.mxu0 0.0
        %1515 = vmatpush1.msra.mxu0 0.0
        %1516 = vmatprep.subr.mxu0 0.0
        %1517 = vmatpush1.msra.mxu0 %v1460
        %1518 = vmatprep.subr.mxu0 0.0
        %1519 = vmatpush1.msra.mxu0 %v1459
        %1520 = vmatprep.subr.mxu0 0.0
        %1521 = vmatpush1.msra.mxu0 %v1458
        %1522 = vmatprep.subr.mxu0 0.0
        %1523 = vmatpush1.msra.mxu0 %v1457
        %1524 = vmatprep.subr.mxu0 0.0
        %1525 = vmatpush2.msra.mxu0 0.0
        %1526 = vmatprep.subr.mxu0 0.0
        %1527 = vmatpush2.msra.mxu0 0.0
        %1528 = vmatprep.subr.mxu0 0.0
        %1529 = vmatpush2.msra.mxu0 0.0
        %1530 = vmatprep.subr.mxu0 0.0
        %1531 = vmatpush2.msra.mxu0 0.0
        %1532 = vmatprep.subr.mxu0 0.0
        %1533 = vmatpush2.msra.mxu0 0.0
        %1534 = vmatprep.subr.mxu0 0.0
        %1535 = vmatpush2.msra.mxu0 0.0
        %1536 = vmatprep.subr.mxu0 0.0
        %1537 = vmatpush2.msra.mxu0 0.0
        %1538 = vmatprep.subr.mxu0 0.0
        %1539 = vmatpush2.msra.mxu0 0.0
        %1540 = vmatprep.subr.mxu0 0.0
        %1541 = vmatpush2.msra.mxu0 0.0
        %1542 = vmatprep.subr.mxu0 0.0
        %1543 = vmatpush2.msra.mxu0 0.0
        %1544 = vmatprep.subr.mxu0 0.0
        %1545 = vmatpush2.msra.mxu0 0.0
        %1546 = vmatprep.subr.mxu0 0.0
        %1547 = vmatpush2.msra.mxu0 0.0
        %1548 = vmatprep.subr.mxu0 0.0
        %1549 = vmatpush2.msra.mxu0 0.0
        %1550 = vmatprep.subr.mxu0 0.0
        %1551 = vmatpush2.msra.mxu0 0.0
        %1552 = vmatprep.subr.mxu0 0.0
        %1553 = vmatpush2.msra.mxu0 0.0
        %1554 = vmatprep.subr.mxu0 0.0
        %1555 = vmatpush2.msra.mxu0 0.0
        %1556 = vmatprep.mubr.f32.mxu0 0.0
        %1557 = vmatmul.mubr.f32.gmra.mxu0 %v1469
        %v1558 = vpop.f32.mrf.mxu0
        %v1559 = vadd.f32 %v1466, %v1558
        %v1560 = vpop.f32.mrf.mxu0
        %1561 = vmatprep.mubr.f32.mxu0 0.0
        %1562 = vmatmul.mubr.f32.gmra.mxu0 %v1472
        %v1563 = vpop.f32.mrf.mxu0
        %v1564 = vadd.f32 %v1466, %v1563
        %v1565 = vpop.f32.mrf.mxu0
        %1566 = vmatprep.mubr.f32.mxu0 0.0
        %1567 = vmatmul.mubr.f32.gmra.mxu0 %v1475
        %v1568 = vpop.f32.mrf.mxu0
        %v1569 = vadd.f32 %v1466, %v1568
        %v1570 = vpop.f32.mrf.mxu0
        %1571 = vmatprep.mubr.f32.mxu0 0.0
        %1572 = vmatmul.mubr.f32.gmra.mxu0 %v1478
        %v1573 = vpop.f32.mrf.mxu0
        %v1574 = vadd.f32 %v1466, %v1573
        %v1575 = vpop.f32.mrf.mxu0
        %1576 = vmatprep.mubr.f32.mxu0 0.0
        %1577 = vmatmul.mubr.f32.gmra.mxu0 %v1481
        %v1578 = vpop.f32.mrf.mxu0
        %v1579 = vadd.f32 %v1466, %v1578
        %v1580 = vpop.f32.mrf.mxu0
        %1581 = vmatprep.mubr.f32.mxu0 0.0
        %1582 = vmatmul.mubr.f32.gmra.mxu0 %v1484
        %v1583 = vpop.f32.mrf.mxu0
        %v1584 = vadd.f32 %v1466, %v1583
        %v1585 = vpop.f32.mrf.mxu0
        %1586 = vmatprep.mubr.f32.mxu0 0.0
        %1587 = vmatmul.mubr.f32.gmra.mxu0 %v1487
        %v1588 = vpop.f32.mrf.mxu0
        %v1589 = vadd.f32 %v1466, %v1588
        %v1590 = vpop.f32.mrf.mxu0
        %1591 = vmatprep.mubr.f32.mxu0 0.0
        %1592 = vmatmul.mubr.f32.gmra.mxu0 %v1490
        %v1593 = vpop.f32.mrf.mxu0
        %v1594 = vadd.f32 %v1466, %v1593
        %v1595 = vpop.f32.mrf.mxu0
        %1596 = vdwg.mxu0
        %1597 = vst [vmem:[#allocation3] sm:$0xff] %v1559
        %1598 = vst [vmem:[#allocation3 + $0x8] sm:$0xff] %v1564
        %1599 = vst [vmem:[#allocation3 + $0x10] sm:$0xff] %v1569
        %1600 = vst [vmem:[#allocation3 + $0x18] sm:$0xff] %v1574
        %1601 = vst [vmem:[#allocation3 + $0x20] sm:$0xff] %v1579
        %1602 = vst [vmem:[#allocation3 + $0x28] sm:$0xff] %v1584
        %1603 = vst [vmem:[#allocation3 + $0x30] sm:$0xff] %v1589
        %1604 = vst [vmem:[#allocation3 + $0x38] sm:$0xff] %v1594
        %v1605 = vld [vmem:[%s5] sm:$0xff]
        %v1606 = vld [vmem:[%s5 + $0x8] sm:$0xff]
        %v1607 = vld [vmem:[%s5 + $0x10] sm:$0xff]
        %v1608 = vld [vmem:[%s5 + $0x18] sm:$0xff]
        %s1609 = scalar_lea.vmem %s524, 8 [#allocation6]
        %v1610 = vld [vmem:[%s1609] sm:$0xff]
        %s1611 = scalar_lea.vmem %s531, 8 [#allocation7]
        %v1612 = vld [vmem:[%s1611] sm:$0xff]
        %v1613 = vld [vmem:[#allocation3] sm:$0xff]
        %v1615 = vsel %vm599, %v1610, 0
        %1617 = vmatprep.subr.mxu0 0.0
        %1618 = vmatpush1.msra.mxu0 0.0
        %1619 = vmatprep.subr.mxu0 0.0
        %1620 = vmatpush1.msra.mxu0 0.0
        %1621 = vmatprep.subr.mxu0 0.0
        %1622 = vmatpush1.msra.mxu0 0.0
        %1623 = vmatprep.subr.mxu0 0.0
        %1624 = vmatpush1.msra.mxu0 0.0
        %1625 = vmatprep.subr.mxu0 0.0
        %1626 = vmatpush1.msra.mxu0 0.0
        %1627 = vmatprep.subr.mxu0 0.0
        %1628 = vmatpush1.msra.mxu0 0.0
        %1629 = vmatprep.subr.mxu0 0.0
        %1630 = vmatpush1.msra.mxu0 0.0
        %1631 = vmatprep.subr.mxu0 0.0
        %1632 = vmatpush1.msra.mxu0 0.0
        %1633 = vmatprep.subr.mxu0 0.0
        %1634 = vmatpush1.msra.mxu0 0.0
        %1635 = vmatprep.subr.mxu0 0.0
        %1636 = vmatpush1.msra.mxu0 0.0
        %1637 = vmatprep.subr.mxu0 0.0
        %1638 = vmatpush1.msra.mxu0 0.0
        %1639 = vmatprep.subr.mxu0 0.0
        %1640 = vmatpush1.msra.mxu0 0.0
        %1641 = vmatprep.subr.mxu0 0.0
        %1642 = vmatpush1.msra.mxu0 %v1608
        %1643 = vmatprep.subr.mxu0 0.0
        %1644 = vmatpush1.msra.mxu0 %v1607
        %1645 = vmatprep.subr.mxu0 0.0
        %1646 = vmatpush1.msra.mxu0 %v1606
        %1647 = vmatprep.subr.mxu0 0.0
        %1648 = vmatpush1.msra.mxu0 %v1605
        %1649 = vmatprep.subr.mxu0 0.0
        %1650 = vmatpush2.msra.mxu0 0.0
        %1651 = vmatprep.subr.mxu0 0.0
        %1652 = vmatpush2.msra.mxu0 0.0
        %1653 = vmatprep.subr.mxu0 0.0
        %1654 = vmatpush2.msra.mxu0 0.0
        %1655 = vmatprep.subr.mxu0 0.0
        %1656 = vmatpush2.msra.mxu0 0.0
        %1657 = vmatprep.subr.mxu0 0.0
        %1658 = vmatpush2.msra.mxu0 0.0
        %1659 = vmatprep.subr.mxu0 0.0
        %1660 = vmatpush2.msra.mxu0 0.0
        %1661 = vmatprep.subr.mxu0 0.0
        %1662 = vmatpush2.msra.mxu0 0.0
        %1663 = vmatprep.subr.mxu0 0.0
        %1664 = vmatpush2.msra.mxu0 0.0
        %1665 = vmatprep.subr.mxu0 0.0
        %1666 = vmatpush2.msra.mxu0 0.0
        %1667 = vmatprep.subr.mxu0 0.0
        %1668 = vmatpush2.msra.mxu0 0.0
        %1669 = vmatprep.subr.mxu0 0.0
        %1670 = vmatpush2.msra.mxu0 0.0
        %1671 = vmatprep.subr.mxu0 0.0
        %1672 = vmatpush2.msra.mxu0 0.0
        %1673 = vmatprep.subr.mxu0 0.0
        %1674 = vmatpush2.msra.mxu0 0.0
        %1675 = vmatprep.subr.mxu0 0.0
        %1676 = vmatpush2.msra.mxu0 0.0
        %1677 = vmatprep.subr.mxu0 0.0
        %1678 = vmatpush2.msra.mxu0 0.0
        %1679 = vmatprep.subr.mxu0 0.0
        %1680 = vmatpush2.msra.mxu0 0.0
        %1681 = vmatprep.mubr.f32.mxu0 0.0
        %1682 = vmatmul.mubr.f32.gmra.mxu0 %v1615
        %v1683 = vpop.f32.mrf.mxu0
        %v1684 = vadd.f32 0.0, %v1683
        %v1685 = vpop.f32.mrf.mxu0
        %1686 = vdwg.mxu0
        %v1687 = vadd.f32 %v1613, %v1684
        %v1688 = vxor.u32 %v1687, 2147483648
        %v1689 = vmul.f32 %v1688, 1.442695
        %v1690 = vpow.pop %v1689
        %v1691 = vadd.f32 %v1690, 1.0
        %v1692 = vrcp.pop %v1691
        %v1693 = vmul.f32 1.0, %v1692
        %v1694 = vtanh.pop %v1687
        %v1695 = vsel %vm591, %v1693, %v1694
        %1697 = vrot.lane.b32.xlu0 %v1612, 32
        %v1698 = vpop.permute.xlu0 %1697
        %v1700 = vmul.f32 %v1695, %v1698
        %1702 = vrot.lane.b32.xlu0 %v1695, 32
        %v1703 = vpop.permute.xlu0 %1702
        %v1705 = vmul.f32 %v1695, %v1703
        %1707 = vrot.lane.b32.xlu0 %v1705, 32
        %v1708 = vpop.permute.xlu0 %1707
        %v1710 = vadd.f32 %v1700, %v1708
        %v1711 = vtanh.pop %v1710
        %1713 = vrot.lane.b32.xlu0 %v1711, 32
        %v1714 = vpop.permute.xlu0 %1713
        %v1716 = vmul.f32 %v1695, %v1714
        %v1717 = vld [vmem:[#allocation3 + $0x8] sm:$0xff]
        %1719 = vrot.lane.b32.xlu0 %v1716, 64
        %v1720 = vpop.permute.xlu0 %1719
        %v1721 = vsel %vm599, %v1720, 0
        %1723 = vmatprep.subr.mxu0 0.0
        %1724 = vmatpush1.msra.mxu0 0.0
        %1725 = vmatprep.subr.mxu0 0.0
        %1726 = vmatpush1.msra.mxu0 0.0
        %1727 = vmatprep.subr.mxu0 0.0
        %1728 = vmatpush1.msra.mxu0 0.0
        %1729 = vmatprep.subr.mxu0 0.0
        %1730 = vmatpush1.msra.mxu0 0.0
        %1731 = vmatprep.subr.mxu0 0.0
        %1732 = vmatpush1.msra.mxu0 0.0
        %1733 = vmatprep.subr.mxu0 0.0
        %1734 = vmatpush1.msra.mxu0 0.0
        %1735 = vmatprep.subr.mxu0 0.0
        %1736 = vmatpush1.msra.mxu0 0.0
        %1737 = vmatprep.subr.mxu0 0.0
        %1738 = vmatpush1.msra.mxu0 0.0
        %1739 = vmatprep.subr.mxu0 0.0
        %1740 = vmatpush1.msra.mxu0 0.0
        %1741 = vmatprep.subr.mxu0 0.0
        %1742 = vmatpush1.msra.mxu0 0.0
        %1743 = vmatprep.subr.mxu0 0.0
        %1744 = vmatpush1.msra.mxu0 0.0
        %1745 = vmatprep.subr.mxu0 0.0
        %1746 = vmatpush1.msra.mxu0 0.0
        %1747 = vmatprep.subr.mxu0 0.0
        %1748 = vmatpush1.msra.mxu0 %v1608
        %1749 = vmatprep.subr.mxu0 0.0
        %1750 = vmatpush1.msra.mxu0 %v1607
        %1751 = vmatprep.subr.mxu0 0.0
        %1752 = vmatpush1.msra.mxu0 %v1606
        %1753 = vmatprep.subr.mxu0 0.0
        %1754 = vmatpush1.msra.mxu0 %v1605
        %1755 = vmatprep.subr.mxu0 0.0
        %1756 = vmatpush2.msra.mxu0 0.0
        %1757 = vmatprep.subr.mxu0 0.0
        %1758 = vmatpush2.msra.mxu0 0.0
        %1759 = vmatprep.subr.mxu0 0.0
        %1760 = vmatpush2.msra.mxu0 0.0
        %1761 = vmatprep.subr.mxu0 0.0
        %1762 = vmatpush2.msra.mxu0 0.0
        %1763 = vmatprep.subr.mxu0 0.0
        %1764 = vmatpush2.msra.mxu0 0.0
        %1765 = vmatprep.subr.mxu0 0.0
        %1766 = vmatpush2.msra.mxu0 0.0
        %1767 = vmatprep.subr.mxu0 0.0
        %1768 = vmatpush2.msra.mxu0 0.0
        %1769 = vmatprep.subr.mxu0 0.0
        %1770 = vmatpush2.msra.mxu0 0.0
        %1771 = vmatprep.subr.mxu0 0.0
        %1772 = vmatpush2.msra.mxu0 0.0
        %1773 = vmatprep.subr.mxu0 0.0
        %1774 = vmatpush2.msra.mxu0 0.0
        %1775 = vmatprep.subr.mxu0 0.0
        %1776 = vmatpush2.msra.mxu0 0.0
        %1777 = vmatprep.subr.mxu0 0.0
        %1778 = vmatpush2.msra.mxu0 0.0
        %1779 = vmatprep.subr.mxu0 0.0
        %1780 = vmatpush2.msra.mxu0 0.0
        %1781 = vmatprep.subr.mxu0 0.0
        %1782 = vmatpush2.msra.mxu0 0.0
        %1783 = vmatprep.subr.mxu0 0.0
        %1784 = vmatpush2.msra.mxu0 0.0
        %1785 = vmatprep.subr.mxu0 0.0
        %1786 = vmatpush2.msra.mxu0 0.0
        %1787 = vmatprep.mubr.f32.mxu0 0.0
        %1788 = vmatmul.mubr.f32.gmra.mxu0 %v1721
        %v1789 = vpop.f32.mrf.mxu0
        %v1790 = vadd.f32 0.0, %v1789
        %v1791 = vpop.f32.mrf.mxu0
        %1792 = vdwg.mxu0
        %v1793 = vadd.f32 %v1717, %v1790
        %v1794 = vxor.u32 %v1793, 2147483648
        %v1795 = vmul.f32 %v1794, 1.442695
        %v1796 = vpow.pop %v1795
        %v1797 = vadd.f32 %v1796, 1.0
        %v1798 = vrcp.pop %v1797
        %v1799 = vmul.f32 1.0, %v1798
        %v1800 = vtanh.pop %v1793
        %v1801 = vsel %vm591, %v1799, %v1800
        %v1802 = vmul.f32 %v1801, %v1710
        %1804 = vrot.lane.b32.xlu0 %v1801, 32
        %v1805 = vpop.permute.xlu0 %1804
        %v1807 = vmul.f32 %v1801, %v1805
        %1809 = vrot.lane.b32.xlu0 %v1807, 32
        %v1810 = vpop.permute.xlu0 %1809
        %v1812 = vadd.f32 %v1802, %v1810
        %v1813 = vtanh.pop %v1812
        %1815 = vrot.lane.b32.xlu0 %v1813, 32
        %v1816 = vpop.permute.xlu0 %1815
        %v1818 = vmul.f32 %v1801, %v1816
        %v1819 = vld [vmem:[#allocation3 + $0x10] sm:$0xff]
        %1821 = vrot.lane.b32.xlu0 %v1818, 64
        %v1822 = vpop.permute.xlu0 %1821
        %v1823 = vsel %vm599, %v1822, 0
        %1825 = vmatprep.subr.mxu0 0.0
        %1826 = vmatpush1.msra.mxu0 0.0
        %1827 = vmatprep.subr.mxu0 0.0
        %1828 = vmatpush1.msra.mxu0 0.0
        %1829 = vmatprep.subr.mxu0 0.0
        %1830 = vmatpush1.msra.mxu0 0.0
        %1831 = vmatprep.subr.mxu0 0.0
        %1832 = vmatpush1.msra.mxu0 0.0
        %1833 = vmatprep.subr.mxu0 0.0
        %1834 = vmatpush1.msra.mxu0 0.0
        %1835 = vmatprep.subr.mxu0 0.0
        %1836 = vmatpush1.msra.mxu0 0.0
        %1837 = vmatprep.subr.mxu0 0.0
        %1838 = vmatpush1.msra.mxu0 0.0
        %1839 = vmatprep.subr.mxu0 0.0
        %1840 = vmatpush1.msra.mxu0 0.0
        %1841 = vmatprep.subr.mxu0 0.0
        %1842 = vmatpush1.msra.mxu0 0.0
        %1843 = vmatprep.subr.mxu0 0.0
        %1844 = vmatpush1.msra.mxu0 0.0
        %1845 = vmatprep.subr.mxu0 0.0
        %1846 = vmatpush1.msra.mxu0 0.0
        %1847 = vmatprep.subr.mxu0 0.0
        %1848 = vmatpush1.msra.mxu0 0.0
        %1849 = vmatprep.subr.mxu0 0.0
        %1850 = vmatpush1.msra.mxu0 %v1608
        %1851 = vmatprep.subr.mxu0 0.0
        %1852 = vmatpush1.msra.mxu0 %v1607
        %1853 = vmatprep.subr.mxu0 0.0
        %1854 = vmatpush1.msra.mxu0 %v1606
        %1855 = vmatprep.subr.mxu0 0.0
        %1856 = vmatpush1.msra.mxu0 %v1605
        %1857 = vmatprep.subr.mxu0 0.0
        %1858 = vmatpush2.msra.mxu0 0.0
        %1859 = vmatprep.subr.mxu0 0.0
        %1860 = vmatpush2.msra.mxu0 0.0
        %1861 = vmatprep.subr.mxu0 0.0
        %1862 = vmatpush2.msra.mxu0 0.0
        %1863 = vmatprep.subr.mxu0 0.0
        %1864 = vmatpush2.msra.mxu0 0.0
        %1865 = vmatprep.subr.mxu0 0.0
        %1866 = vmatpush2.msra.mxu0 0.0
        %1867 = vmatprep.subr.mxu0 0.0
        %1868 = vmatpush2.msra.mxu0 0.0
        %1869 = vmatprep.subr.mxu0 0.0
        %1870 = vmatpush2.msra.mxu0 0.0
        %1871 = vmatprep.subr.mxu0 0.0
        %1872 = vmatpush2.msra.mxu0 0.0
        %1873 = vmatprep.subr.mxu0 0.0
        %1874 = vmatpush2.msra.mxu0 0.0
        %1875 = vmatprep.subr.mxu0 0.0
        %1876 = vmatpush2.msra.mxu0 0.0
        %1877 = vmatprep.subr.mxu0 0.0
        %1878 = vmatpush2.msra.mxu0 0.0
        %1879 = vmatprep.subr.mxu0 0.0
        %1880 = vmatpush2.msra.mxu0 0.0
        %1881 = vmatprep.subr.mxu0 0.0
        %1882 = vmatpush2.msra.mxu0 0.0
        %1883 = vmatprep.subr.mxu0 0.0
        %1884 = vmatpush2.msra.mxu0 0.0
        %1885 = vmatprep.subr.mxu0 0.0
        %1886 = vmatpush2.msra.mxu0 0.0
        %1887 = vmatprep.subr.mxu0 0.0
        %1888 = vmatpush2.msra.mxu0 0.0
        %1889 = vmatprep.mubr.f32.mxu0 0.0
        %1890 = vmatmul.mubr.f32.gmra.mxu0 %v1823
        %v1891 = vpop.f32.mrf.mxu0
        %v1892 = vadd.f32 0.0, %v1891
        %v1893 = vpop.f32.mrf.mxu0
        %1894 = vdwg.mxu0
        %v1895 = vadd.f32 %v1819, %v1892
        %v1896 = vxor.u32 %v1895, 2147483648
        %v1897 = vmul.f32 %v1896, 1.442695
        %v1898 = vpow.pop %v1897
        %v1899 = vadd.f32 %v1898, 1.0
        %v1900 = vrcp.pop %v1899
        %v1901 = vmul.f32 1.0, %v1900
        %v1902 = vtanh.pop %v1895
        %v1903 = vsel %vm591, %v1901, %v1902
        %v1904 = vmul.f32 %v1903, %v1812
        %1906 = vrot.lane.b32.xlu0 %v1903, 32
        %v1907 = vpop.permute.xlu0 %1906
        %v1909 = vmul.f32 %v1903, %v1907
        %1911 = vrot.lane.b32.xlu0 %v1909, 32
        %v1912 = vpop.permute.xlu0 %1911
        %v1914 = vadd.f32 %v1904, %v1912
        %v1915 = vtanh.pop %v1914
        %1917 = vrot.lane.b32.xlu0 %v1915, 32
        %v1918 = vpop.permute.xlu0 %1917
        %v1920 = vmul.f32 %v1903, %v1918
        %v1921 = vld [vmem:[#allocation3 + $0x18] sm:$0xff]
        %1923 = vrot.lane.b32.xlu0 %v1920, 64
        %v1924 = vpop.permute.xlu0 %1923
        %v1925 = vsel %vm599, %v1924, 0
        %1927 = vmatprep.subr.mxu0 0.0
        %1928 = vmatpush1.msra.mxu0 0.0
        %1929 = vmatprep.subr.mxu0 0.0
        %1930 = vmatpush1.msra.mxu0 0.0
        %1931 = vmatprep.subr.mxu0 0.0
        %1932 = vmatpush1.msra.mxu0 0.0
        %1933 = vmatprep.subr.mxu0 0.0
        %1934 = vmatpush1.msra.mxu0 0.0
        %1935 = vmatprep.subr.mxu0 0.0
        %1936 = vmatpush1.msra.mxu0 0.0
        %1937 = vmatprep.subr.mxu0 0.0
        %1938 = vmatpush1.msra.mxu0 0.0
        %1939 = vmatprep.subr.mxu0 0.0
        %1940 = vmatpush1.msra.mxu0 0.0
        %1941 = vmatprep.subr.mxu0 0.0
        %1942 = vmatpush1.msra.mxu0 0.0
        %1943 = vmatprep.subr.mxu0 0.0
        %1944 = vmatpush1.msra.mxu0 0.0
        %1945 = vmatprep.subr.mxu0 0.0
        %1946 = vmatpush1.msra.mxu0 0.0
        %1947 = vmatprep.subr.mxu0 0.0
        %1948 = vmatpush1.msra.mxu0 0.0
        %1949 = vmatprep.subr.mxu0 0.0
        %1950 = vmatpush1.msra.mxu0 0.0
        %1951 = vmatprep.subr.mxu0 0.0
        %1952 = vmatpush1.msra.mxu0 %v1608
        %1953 = vmatprep.subr.mxu0 0.0
        %1954 = vmatpush1.msra.mxu0 %v1607
        %1955 = vmatprep.subr.mxu0 0.0
        %1956 = vmatpush1.msra.mxu0 %v1606
        %1957 = vmatprep.subr.mxu0 0.0
        %1958 = vmatpush1.msra.mxu0 %v1605
        %1959 = vmatprep.subr.mxu0 0.0
        %1960 = vmatpush2.msra.mxu0 0.0
        %1961 = vmatprep.subr.mxu0 0.0
        %1962 = vmatpush2.msra.mxu0 0.0
        %1963 = vmatprep.subr.mxu0 0.0
        %1964 = vmatpush2.msra.mxu0 0.0
        %1965 = vmatprep.subr.mxu0 0.0
        %1966 = vmatpush2.msra.mxu0 0.0
        %1967 = vmatprep.subr.mxu0 0.0
        %1968 = vmatpush2.msra.mxu0 0.0
        %1969 = vmatprep.subr.mxu0 0.0
        %1970 = vmatpush2.msra.mxu0 0.0
        %1971 = vmatprep.subr.mxu0 0.0
        %1972 = vmatpush2.msra.mxu0 0.0
        %1973 = vmatprep.subr.mxu0 0.0
        %1974 = vmatpush2.msra.mxu0 0.0
        %1975 = vmatprep.subr.mxu0 0.0
        %1976 = vmatpush2.msra.mxu0 0.0
        %1977 = vmatprep.subr.mxu0 0.0
        %1978 = vmatpush2.msra.mxu0 0.0
        %1979 = vmatprep.subr.mxu0 0.0
        %1980 = vmatpush2.msra.mxu0 0.0
        %1981 = vmatprep.subr.mxu0 0.0
        %1982 = vmatpush2.msra.mxu0 0.0
        %1983 = vmatprep.subr.mxu0 0.0
        %1984 = vmatpush2.msra.mxu0 0.0
        %1985 = vmatprep.subr.mxu0 0.0
        %1986 = vmatpush2.msra.mxu0 0.0
        %1987 = vmatprep.subr.mxu0 0.0
        %1988 = vmatpush2.msra.mxu0 0.0
        %1989 = vmatprep.subr.mxu0 0.0
        %1990 = vmatpush2.msra.mxu0 0.0
        %1991 = vmatprep.mubr.f32.mxu0 0.0
        %1992 = vmatmul.mubr.f32.gmra.mxu0 %v1925
        %v1993 = vpop.f32.mrf.mxu0
        %v1994 = vadd.f32 0.0, %v1993
        %v1995 = vpop.f32.mrf.mxu0
        %1996 = vdwg.mxu0
        %v1997 = vadd.f32 %v1921, %v1994
        %v1998 = vxor.u32 %v1997, 2147483648
        %v1999 = vmul.f32 %v1998, 1.442695
        %v2000 = vpow.pop %v1999
        %v2001 = vadd.f32 %v2000, 1.0
        %v2002 = vrcp.pop %v2001
        %v2003 = vmul.f32 1.0, %v2002
        %v2004 = vtanh.pop %v1997
        %v2005 = vsel %vm591, %v2003, %v2004
        %v2006 = vmul.f32 %v2005, %v1914
        %2008 = vrot.lane.b32.xlu0 %v2005, 32
        %v2009 = vpop.permute.xlu0 %2008
        %v2011 = vmul.f32 %v2005, %v2009
        %2013 = vrot.lane.b32.xlu0 %v2011, 32
        %v2014 = vpop.permute.xlu0 %2013
        %v2016 = vadd.f32 %v2006, %v2014
        %v2017 = vtanh.pop %v2016
        %2019 = vrot.lane.b32.xlu0 %v2017, 32
        %v2020 = vpop.permute.xlu0 %2019
        %v2022 = vmul.f32 %v2005, %v2020
        %v2023 = vld [vmem:[#allocation3 + $0x20] sm:$0xff]
        %2025 = vrot.lane.b32.xlu0 %v2022, 64
        %v2026 = vpop.permute.xlu0 %2025
        %v2027 = vsel %vm599, %v2026, 0
        %2029 = vmatprep.subr.mxu0 0.0
        %2030 = vmatpush1.msra.mxu0 0.0
        %2031 = vmatprep.subr.mxu0 0.0
        %2032 = vmatpush1.msra.mxu0 0.0
        %2033 = vmatprep.subr.mxu0 0.0
        %2034 = vmatpush1.msra.mxu0 0.0
        %2035 = vmatprep.subr.mxu0 0.0
        %2036 = vmatpush1.msra.mxu0 0.0
        %2037 = vmatprep.subr.mxu0 0.0
        %2038 = vmatpush1.msra.mxu0 0.0
        %2039 = vmatprep.subr.mxu0 0.0
        %2040 = vmatpush1.msra.mxu0 0.0
        %2041 = vmatprep.subr.mxu0 0.0
        %2042 = vmatpush1.msra.mxu0 0.0
        %2043 = vmatprep.subr.mxu0 0.0
        %2044 = vmatpush1.msra.mxu0 0.0
        %2045 = vmatprep.subr.mxu0 0.0
        %2046 = vmatpush1.msra.mxu0 0.0
        %2047 = vmatprep.subr.mxu0 0.0
        %2048 = vmatpush1.msra.mxu0 0.0
        %2049 = vmatprep.subr.mxu0 0.0
        %2050 = vmatpush1.msra.mxu0 0.0
        %2051 = vmatprep.subr.mxu0 0.0
        %2052 = vmatpush1.msra.mxu0 0.0
        %2053 = vmatprep.subr.mxu0 0.0
        %2054 = vmatpush1.msra.mxu0 %v1608
        %2055 = vmatprep.subr.mxu0 0.0
        %2056 = vmatpush1.msra.mxu0 %v1607
        %2057 = vmatprep.subr.mxu0 0.0
        %2058 = vmatpush1.msra.mxu0 %v1606
        %2059 = vmatprep.subr.mxu0 0.0
        %2060 = vmatpush1.msra.mxu0 %v1605
        %2061 = vmatprep.subr.mxu0 0.0
        %2062 = vmatpush2.msra.mxu0 0.0
        %2063 = vmatprep.subr.mxu0 0.0
        %2064 = vmatpush2.msra.mxu0 0.0
        %2065 = vmatprep.subr.mxu0 0.0
        %2066 = vmatpush2.msra.mxu0 0.0
        %2067 = vmatprep.subr.mxu0 0.0
        %2068 = vmatpush2.msra.mxu0 0.0
        %2069 = vmatprep.subr.mxu0 0.0
        %2070 = vmatpush2.msra.mxu0 0.0
        %2071 = vmatprep.subr.mxu0 0.0
        %2072 = vmatpush2.msra.mxu0 0.0
        %2073 = vmatprep.subr.mxu0 0.0
        %2074 = vmatpush2.msra.mxu0 0.0
        %2075 = vmatprep.subr.mxu0 0.0
        %2076 = vmatpush2.msra.mxu0 0.0
        %2077 = vmatprep.subr.mxu0 0.0
        %2078 = vmatpush2.msra.mxu0 0.0
        %2079 = vmatprep.subr.mxu0 0.0
        %2080 = vmatpush2.msra.mxu0 0.0
        %2081 = vmatprep.subr.mxu0 0.0
        %2082 = vmatpush2.msra.mxu0 0.0
        %2083 = vmatprep.subr.mxu0 0.0
        %2084 = vmatpush2.msra.mxu0 0.0
        %2085 = vmatprep.subr.mxu0 0.0
        %2086 = vmatpush2.msra.mxu0 0.0
        %2087 = vmatprep.subr.mxu0 0.0
        %2088 = vmatpush2.msra.mxu0 0.0
        %2089 = vmatprep.subr.mxu0 0.0
        %2090 = vmatpush2.msra.mxu0 0.0
        %2091 = vmatprep.subr.mxu0 0.0
        %2092 = vmatpush2.msra.mxu0 0.0
        %2093 = vmatprep.mubr.f32.mxu0 0.0
        %2094 = vmatmul.mubr.f32.gmra.mxu0 %v2027
        %v2095 = vpop.f32.mrf.mxu0
        %v2096 = vadd.f32 0.0, %v2095
        %v2097 = vpop.f32.mrf.mxu0
        %2098 = vdwg.mxu0
        %v2099 = vadd.f32 %v2023, %v2096
        %v2100 = vxor.u32 %v2099, 2147483648
        %v2101 = vmul.f32 %v2100, 1.442695
        %v2102 = vpow.pop %v2101
        %v2103 = vadd.f32 %v2102, 1.0
        %v2104 = vrcp.pop %v2103
        %v2105 = vmul.f32 1.0, %v2104
        %v2106 = vtanh.pop %v2099
        %v2107 = vsel %vm591, %v2105, %v2106
        %v2108 = vmul.f32 %v2107, %v2016
        %2110 = vrot.lane.b32.xlu0 %v2107, 32
        %v2111 = vpop.permute.xlu0 %2110
        %v2113 = vmul.f32 %v2107, %v2111
        %2115 = vrot.lane.b32.xlu0 %v2113, 32
        %v2116 = vpop.permute.xlu0 %2115
        %v2118 = vadd.f32 %v2108, %v2116
        %v2119 = vtanh.pop %v2118
        %2121 = vrot.lane.b32.xlu0 %v2119, 32
        %v2122 = vpop.permute.xlu0 %2121
        %v2124 = vmul.f32 %v2107, %v2122
        %v2125 = vld [vmem:[#allocation3 + $0x28] sm:$0xff]
        %2127 = vrot.lane.b32.xlu0 %v2124, 64
        %v2128 = vpop.permute.xlu0 %2127
        %v2129 = vsel %vm599, %v2128, 0
        %2131 = vmatprep.subr.mxu0 0.0
        %2132 = vmatpush1.msra.mxu0 0.0
        %2133 = vmatprep.subr.mxu0 0.0
        %2134 = vmatpush1.msra.mxu0 0.0
        %2135 = vmatprep.subr.mxu0 0.0
        %2136 = vmatpush1.msra.mxu0 0.0
        %2137 = vmatprep.subr.mxu0 0.0
        %2138 = vmatpush1.msra.mxu0 0.0
        %2139 = vmatprep.subr.mxu0 0.0
        %2140 = vmatpush1.msra.mxu0 0.0
        %2141 = vmatprep.subr.mxu0 0.0
        %2142 = vmatpush1.msra.mxu0 0.0
        %2143 = vmatprep.subr.mxu0 0.0
        %2144 = vmatpush1.msra.mxu0 0.0
        %2145 = vmatprep.subr.mxu0 0.0
        %2146 = vmatpush1.msra.mxu0 0.0
        %2147 = vmatprep.subr.mxu0 0.0
        %2148 = vmatpush1.msra.mxu0 0.0
        %2149 = vmatprep.subr.mxu0 0.0
        %2150 = vmatpush1.msra.mxu0 0.0
        %2151 = vmatprep.subr.mxu0 0.0
        %2152 = vmatpush1.msra.mxu0 0.0
        %2153 = vmatprep.subr.mxu0 0.0
        %2154 = vmatpush1.msra.mxu0 0.0
        %2155 = vmatprep.subr.mxu0 0.0
        %2156 = vmatpush1.msra.mxu0 %v1608
        %2157 = vmatprep.subr.mxu0 0.0
        %2158 = vmatpush1.msra.mxu0 %v1607
        %2159 = vmatprep.subr.mxu0 0.0
        %2160 = vmatpush1.msra.mxu0 %v1606
        %2161 = vmatprep.subr.mxu0 0.0
        %2162 = vmatpush1.msra.mxu0 %v1605
        %2163 = vmatprep.subr.mxu0 0.0
        %2164 = vmatpush2.msra.mxu0 0.0
        %2165 = vmatprep.subr.mxu0 0.0
        %2166 = vmatpush2.msra.mxu0 0.0
        %2167 = vmatprep.subr.mxu0 0.0
        %2168 = vmatpush2.msra.mxu0 0.0
        %2169 = vmatprep.subr.mxu0 0.0
        %2170 = vmatpush2.msra.mxu0 0.0
        %2171 = vmatprep.subr.mxu0 0.0
        %2172 = vmatpush2.msra.mxu0 0.0
        %2173 = vmatprep.subr.mxu0 0.0
        %2174 = vmatpush2.msra.mxu0 0.0
        %2175 = vmatprep.subr.mxu0 0.0
        %2176 = vmatpush2.msra.mxu0 0.0
        %2177 = vmatprep.subr.mxu0 0.0
        %2178 = vmatpush2.msra.mxu0 0.0
        %2179 = vmatprep.subr.mxu0 0.0
        %2180 = vmatpush2.msra.mxu0 0.0
        %2181 = vmatprep.subr.mxu0 0.0
        %2182 = vmatpush2.msra.mxu0 0.0
        %2183 = vmatprep.subr.mxu0 0.0
        %2184 = vmatpush2.msra.mxu0 0.0
        %2185 = vmatprep.subr.mxu0 0.0
        %2186 = vmatpush2.msra.mxu0 0.0
        %2187 = vmatprep.subr.mxu0 0.0
        %2188 = vmatpush2.msra.mxu0 0.0
        %2189 = vmatprep.subr.mxu0 0.0
        %2190 = vmatpush2.msra.mxu0 0.0
        %2191 = vmatprep.subr.mxu0 0.0
        %2192 = vmatpush2.msra.mxu0 0.0
        %2193 = vmatprep.subr.mxu0 0.0
        %2194 = vmatpush2.msra.mxu0 0.0
        %2195 = vmatprep.mubr.f32.mxu0 0.0
        %2196 = vmatmul.mubr.f32.gmra.mxu0 %v2129
        %v2197 = vpop.f32.mrf.mxu0
        %v2198 = vadd.f32 0.0, %v2197
        %v2199 = vpop.f32.mrf.mxu0
        %2200 = vdwg.mxu0
        %v2201 = vadd.f32 %v2125, %v2198
        %v2202 = vxor.u32 %v2201, 2147483648
        %v2203 = vmul.f32 %v2202, 1.442695
        %v2204 = vpow.pop %v2203
        %v2205 = vadd.f32 %v2204, 1.0
        %v2206 = vrcp.pop %v2205
        %v2207 = vmul.f32 1.0, %v2206
        %v2208 = vtanh.pop %v2201
        %v2209 = vsel %vm591, %v2207, %v2208
        %v2210 = vmul.f32 %v2209, %v2118
        %2212 = vrot.lane.b32.xlu0 %v2209, 32
        %v2213 = vpop.permute.xlu0 %2212
        %v2215 = vmul.f32 %v2209, %v2213
        %2217 = vrot.lane.b32.xlu0 %v2215, 32
        %v2218 = vpop.permute.xlu0 %2217
        %v2220 = vadd.f32 %v2210, %v2218
        %v2221 = vtanh.pop %v2220
        %2223 = vrot.lane.b32.xlu0 %v2221, 32
        %v2224 = vpop.permute.xlu0 %2223
        %v2226 = vmul.f32 %v2209, %v2224
        %v2227 = vld [vmem:[#allocation3 + $0x30] sm:$0xff]
        %2229 = vrot.lane.b32.xlu0 %v2226, 64
        %v2230 = vpop.permute.xlu0 %2229
        %v2231 = vsel %vm599, %v2230, 0
        %2233 = vmatprep.subr.mxu0 0.0
        %2234 = vmatpush1.msra.mxu0 0.0
        %2235 = vmatprep.subr.mxu0 0.0
        %2236 = vmatpush1.msra.mxu0 0.0
        %2237 = vmatprep.subr.mxu0 0.0
        %2238 = vmatpush1.msra.mxu0 0.0
        %2239 = vmatprep.subr.mxu0 0.0
        %2240 = vmatpush1.msra.mxu0 0.0
        %2241 = vmatprep.subr.mxu0 0.0
        %2242 = vmatpush1.msra.mxu0 0.0
        %2243 = vmatprep.subr.mxu0 0.0
        %2244 = vmatpush1.msra.mxu0 0.0
        %2245 = vmatprep.subr.mxu0 0.0
        %2246 = vmatpush1.msra.mxu0 0.0
        %2247 = vmatprep.subr.mxu0 0.0
        %2248 = vmatpush1.msra.mxu0 0.0
        %2249 = vmatprep.subr.mxu0 0.0
        %2250 = vmatpush1.msra.mxu0 0.0
        %2251 = vmatprep.subr.mxu0 0.0
        %2252 = vmatpush1.msra.mxu0 0.0
        %2253 = vmatprep.subr.mxu0 0.0
        %2254 = vmatpush1.msra.mxu0 0.0
        %2255 = vmatprep.subr.mxu0 0.0
        %2256 = vmatpush1.msra.mxu0 0.0
        %2257 = vmatprep.subr.mxu0 0.0
        %2258 = vmatpush1.msra.mxu0 %v1608
        %2259 = vmatprep.subr.mxu0 0.0
        %2260 = vmatpush1.msra.mxu0 %v1607
        %2261 = vmatprep.subr.mxu0 0.0
        %2262 = vmatpush1.msra.mxu0 %v1606
        %2263 = vmatprep.subr.mxu0 0.0
        %2264 = vmatpush1.msra.mxu0 %v1605
        %2265 = vmatprep.subr.mxu0 0.0
        %2266 = vmatpush2.msra.mxu0 0.0
        %2267 = vmatprep.subr.mxu0 0.0
        %2268 = vmatpush2.msra.mxu0 0.0
        %2269 = vmatprep.subr.mxu0 0.0
        %2270 = vmatpush2.msra.mxu0 0.0
        %2271 = vmatprep.subr.mxu0 0.0
        %2272 = vmatpush2.msra.mxu0 0.0
        %2273 = vmatprep.subr.mxu0 0.0
        %2274 = vmatpush2.msra.mxu0 0.0
        %2275 = vmatprep.subr.mxu0 0.0
        %2276 = vmatpush2.msra.mxu0 0.0
        %2277 = vmatprep.subr.mxu0 0.0
        %2278 = vmatpush2.msra.mxu0 0.0
        %2279 = vmatprep.subr.mxu0 0.0
        %2280 = vmatpush2.msra.mxu0 0.0
        %2281 = vmatprep.subr.mxu0 0.0
        %2282 = vmatpush2.msra.mxu0 0.0
        %2283 = vmatprep.subr.mxu0 0.0
        %2284 = vmatpush2.msra.mxu0 0.0
        %2285 = vmatprep.subr.mxu0 0.0
        %2286 = vmatpush2.msra.mxu0 0.0
        %2287 = vmatprep.subr.mxu0 0.0
        %2288 = vmatpush2.msra.mxu0 0.0
        %2289 = vmatprep.subr.mxu0 0.0
        %2290 = vmatpush2.msra.mxu0 0.0
        %2291 = vmatprep.subr.mxu0 0.0
        %2292 = vmatpush2.msra.mxu0 0.0
        %2293 = vmatprep.subr.mxu0 0.0
        %2294 = vmatpush2.msra.mxu0 0.0
        %2295 = vmatprep.subr.mxu0 0.0
        %2296 = vmatpush2.msra.mxu0 0.0
        %2297 = vmatprep.mubr.f32.mxu0 0.0
        %2298 = vmatmul.mubr.f32.gmra.mxu0 %v2231
        %v2299 = vpop.f32.mrf.mxu0
        %v2300 = vadd.f32 0.0, %v2299
        %v2301 = vpop.f32.mrf.mxu0
        %2302 = vdwg.mxu0
        %v2303 = vadd.f32 %v2227, %v2300
        %v2304 = vxor.u32 %v2303, 2147483648
        %v2305 = vmul.f32 %v2304, 1.442695
        %v2306 = vpow.pop %v2305
        %v2307 = vadd.f32 %v2306, 1.0
        %v2308 = vrcp.pop %v2307
        %v2309 = vmul.f32 1.0, %v2308
        %v2310 = vtanh.pop %v2303
        %v2311 = vsel %vm591, %v2309, %v2310
        %v2312 = vmul.f32 %v2311, %v2220
        %2314 = vrot.lane.b32.xlu0 %v2311, 32
        %v2315 = vpop.permute.xlu0 %2314
        %v2317 = vmul.f32 %v2311, %v2315
        %2319 = vrot.lane.b32.xlu0 %v2317, 32
        %v2320 = vpop.permute.xlu0 %2319
        %v2322 = vadd.f32 %v2312, %v2320
        %v2323 = vtanh.pop %v2322
        %2325 = vrot.lane.b32.xlu0 %v2323, 32
        %v2326 = vpop.permute.xlu0 %2325
        %v2328 = vmul.f32 %v2311, %v2326
        %v2329 = vld [vmem:[#allocation3 + $0x38] sm:$0xff]
        %2331 = vrot.lane.b32.xlu0 %v2328, 64
        %v2332 = vpop.permute.xlu0 %2331
        %v2333 = vsel %vm599, %v2332, 0
        %2335 = vmatprep.subr.mxu0 0.0
        %2336 = vmatpush1.msra.mxu0 0.0
        %2337 = vmatprep.subr.mxu0 0.0
        %2338 = vmatpush1.msra.mxu0 0.0
        %2339 = vmatprep.subr.mxu0 0.0
        %2340 = vmatpush1.msra.mxu0 0.0
        %2341 = vmatprep.subr.mxu0 0.0
        %2342 = vmatpush1.msra.mxu0 0.0
        %2343 = vmatprep.subr.mxu0 0.0
        %2344 = vmatpush1.msra.mxu0 0.0
        %2345 = vmatprep.subr.mxu0 0.0
        %2346 = vmatpush1.msra.mxu0 0.0
        %2347 = vmatprep.subr.mxu0 0.0
        %2348 = vmatpush1.msra.mxu0 0.0
        %2349 = vmatprep.subr.mxu0 0.0
        %2350 = vmatpush1.msra.mxu0 0.0
        %2351 = vmatprep.subr.mxu0 0.0
        %2352 = vmatpush1.msra.mxu0 0.0
        %2353 = vmatprep.subr.mxu0 0.0
        %2354 = vmatpush1.msra.mxu0 0.0
        %2355 = vmatprep.subr.mxu0 0.0
        %2356 = vmatpush1.msra.mxu0 0.0
        %2357 = vmatprep.subr.mxu0 0.0
        %2358 = vmatpush1.msra.mxu0 0.0
        %2359 = vmatprep.subr.mxu0 0.0
        %2360 = vmatpush1.msra.mxu0 %v1608
        %2361 = vmatprep.subr.mxu0 0.0
        %2362 = vmatpush1.msra.mxu0 %v1607
        %2363 = vmatprep.subr.mxu0 0.0
        %2364 = vmatpush1.msra.mxu0 %v1606
        %2365 = vmatprep.subr.mxu0 0.0
        %2366 = vmatpush1.msra.mxu0 %v1605
        %2367 = vmatprep.subr.mxu0 0.0
        %2368 = vmatpush2.msra.mxu0 0.0
        %2369 = vmatprep.subr.mxu0 0.0
        %2370 = vmatpush2.msra.mxu0 0.0
        %2371 = vmatprep.subr.mxu0 0.0
        %2372 = vmatpush2.msra.mxu0 0.0
        %2373 = vmatprep.subr.mxu0 0.0
        %2374 = vmatpush2.msra.mxu0 0.0
        %2375 = vmatprep.subr.mxu0 0.0
        %2376 = vmatpush2.msra.mxu0 0.0
        %2377 = vmatprep.subr.mxu0 0.0
        %2378 = vmatpush2.msra.mxu0 0.0
        %2379 = vmatprep.subr.mxu0 0.0
        %2380 = vmatpush2.msra.mxu0 0.0
        %2381 = vmatprep.subr.mxu0 0.0
        %2382 = vmatpush2.msra.mxu0 0.0
        %2383 = vmatprep.subr.mxu0 0.0
        %2384 = vmatpush2.msra.mxu0 0.0
        %2385 = vmatprep.subr.mxu0 0.0
        %2386 = vmatpush2.msra.mxu0 0.0
        %2387 = vmatprep.subr.mxu0 0.0
        %2388 = vmatpush2.msra.mxu0 0.0
        %2389 = vmatprep.subr.mxu0 0.0
        %2390 = vmatpush2.msra.mxu0 0.0
        %2391 = vmatprep.subr.mxu0 0.0
        %2392 = vmatpush2.msra.mxu0 0.0
        %2393 = vmatprep.subr.mxu0 0.0
        %2394 = vmatpush2.msra.mxu0 0.0
        %2395 = vmatprep.subr.mxu0 0.0
        %2396 = vmatpush2.msra.mxu0 0.0
        %2397 = vmatprep.subr.mxu0 0.0
        %2398 = vmatpush2.msra.mxu0 0.0
        %2399 = vmatprep.mubr.f32.mxu0 0.0
        %2400 = vmatmul.mubr.f32.gmra.mxu0 %v2333
        %v2401 = vpop.f32.mrf.mxu0
        %v2402 = vadd.f32 0.0, %v2401
        %v2403 = vpop.f32.mrf.mxu0
        %2404 = vdwg.mxu0
        %v2405 = vadd.f32 %v2329, %v2402
        %v2406 = vxor.u32 %v2405, 2147483648
        %v2407 = vmul.f32 %v2406, 1.442695
        %v2408 = vpow.pop %v2407
        %v2409 = vadd.f32 %v2408, 1.0
        %v2410 = vrcp.pop %v2409
        %v2411 = vmul.f32 1.0, %v2410
        %v2412 = vtanh.pop %v2405
        %v2413 = vsel %vm591, %v2411, %v2412
        %v2414 = vmul.f32 %v2413, %v2322
        %2416 = vrot.lane.b32.xlu0 %v2413, 32
        %v2417 = vpop.permute.xlu0 %2416
        %v2419 = vmul.f32 %v2413, %v2417
        %2421 = vrot.lane.b32.xlu0 %v2419, 32
        %v2422 = vpop.permute.xlu0 %2421
        %v2424 = vadd.f32 %v2414, %v2422
        %v2425 = vtanh.pop %v2424
        %2427 = vrot.lane.b32.xlu0 %v2425, 32
        %v2428 = vpop.permute.xlu0 %2427
        %v2430 = vmul.f32 %v2413, %v2428
        %2432 = vrot.lane.b32.xlu0 %v2430, 64
        %v2433 = vpop.permute.xlu0 %2432
        %s2435 = scalar_lea.vmem %s577, 8 [#allocation8]
        %2436 = vst.msk [vmem:[%s2435] sm:$0xff] %vm599, %v2433
        %2438 = vrot.lane.b32.xlu0 %v2424, 96
        %v2439 = vpop.permute.xlu0 %2438
        %s2441 = scalar_lea.vmem %s584, 8 [#allocation10]
        %2442 = vst.msk [vmem:[%s2441] sm:$0xff] %vm599, %v2439
        %v2443 = vld [vmem:[%s7] sm:$0x1]
        %v2445 = vlaneseq
        %v2446 = vshrl.u32 %v2445, 7
        %v2447 = vsub.s32 0, %v2446
        %v2448 = vrot.slane %v2443, %v2447
        %2449 = vrot.lane.b32.xlu0 %v2448, 64
        %v2450 = vpop.permute.xlu0 %2449
        %v2452 = vmul.f32 %v2430, %v2450
        %2454 = vrot.lane.b32.xlu0 %v2452, 64
        %v2455 = vpop.permute.xlu0 %2454
        %v2457 = vsel %vm599, %v2455, 0.0
        %2458 = vadd.xlane.f32.xlu0 %v2457
        %v2459 = vpop.xlane.xlu0 %2458
        %v2460 = vld [vmem:[#allocation4] sm:$0x1]
        %v2462 = vlaneseq
        %v2463 = vshrl.u32 %v2462, 7
        %v2464 = vsub.s32 0, %v2463
        %v2465 = vrot.slane %v2460, %v2464
        %v2467 = vadd.f32 %v2459, %v2465
        %v2468 = vxor.u32 %v2467, 2147483648
        %v2469 = vmul.f32 %v2468, 1.442695
        %v2470 = vpow.pop %v2469
        %v2471 = vadd.f32 %v2470, 1.0
        %v2472 = vrcp.pop %v2471
        %v2473 = vmul.f32 1.0, %v2472
        %vm2474 = vcmask 7168
        %2475 = vst.msk [vmem:[%s588] sm:$0xff] %vm2474, %v2473
        %p2476 = scmp.lt.s32.totalorder %s31, 1
        %s2477 = scalar_select %p2476, %s31, 1
        %s2478 = smul.addr %s2477, 8
        %s2479 = scalar_lea.vmem %s9, %s2478
        %s2480 = sand.u32 %s269, 1
        %s2481 = scalar_lea.sflag [#allocation9], %s2480
        %s2482 = sand.u32 %s269, 1
        %s2483 = smul.addr %s2482, 16
        %s2484 = scalar_lea.vmem [#allocation8], %s2483
        %s2485 = sand.u32 %s295, 1
        %s2486 = scalar_lea.sflag [#allocation11], %s2485
        %s2487 = sand.u32 %s295, 1
        %s2488 = smul.addr %s2487, 16
        %s2489 = scalar_lea.vmem [#allocation10], %s2488
        // Predicated region
        $region171: #{sentiment_rnn_forward.1} parent=157 // pred_check
          %p2490 = pneg %p253
        $region172: #{sentiment_rnn_forward.1} parent=157 // pred_check_branch
          %2492 = sbr.rel (%p2490) target = $region174
        $region173: #{sentiment_rnn_forward.1} parent=157 // pred_region
          _
        $region174: #{sentiment_rnn_forward.1} parent=157 // pred_fallthru
          _
        // Predicated region
        $region175: #{sentiment_rnn_forward.1} parent=157 // pred_check
          %p2493 = pneg %p279
        $region176: #{sentiment_rnn_forward.1} parent=157 // pred_check_branch
          %2495 = sbr.rel (%p2493) target = $region178
        $region177: #{sentiment_rnn_forward.1} parent=157 // pred_region
          %s2497 = ssub.s32 256, 256
          %2498 = vsyncadd %s2481, %s2497
          %s2499 = smul.addr %s31, 128
          %s2500 = scalar_lea.hbm %s10, %s2499
          %s2501 = sshll.u32 %s2484, 4
          %s2502 = int_to_ptr.vmem [resolvable:$true] %s2501
          %2507 = dma.vmem_to_hbm [thread:$0]  %s2502, 256, %s2500, %s2481, 128, 256, 8
        $region178: #{sentiment_rnn_forward.1} parent=157 // pred_fallthru
          _
        // Predicated region
        $region179: #{sentiment_rnn_forward.1} parent=157 // pred_check
          %p2508 = pneg %p305
        $region180: #{sentiment_rnn_forward.1} parent=157 // pred_check_branch
          %2510 = sbr.rel (%p2508) target = $region182
        $region181: #{sentiment_rnn_forward.1} parent=157 // pred_region
          %s2512 = ssub.s32 256, 256
          %2513 = vsyncadd %s2486, %s2512
          %s2514 = smul.addr %s31, 128
          %s2515 = scalar_lea.hbm %s11, %s2514
          %s2516 = sshll.u32 %s2489, 4
          %s2517 = int_to_ptr.vmem [resolvable:$true] %s2516
          %2522 = dma.vmem_to_hbm [thread:$0]  %s2517, 256, %s2515, %s2486, 128, 256, 8
        $region182: #{sentiment_rnn_forward.1} parent=157 // pred_fallthru
          _
      $region158: #{sentiment_rnn_forward.1} parent=5 // pred_fallthru
        _
      %p2523 = scmp.le.s32.totalorder 2, %s26
      // Predicated region
      $region183: #{sentiment_rnn_forward.1} parent=5 // pred_check
        %p2524 = pneg %p2523
      $region184: #{sentiment_rnn_forward.1} parent=5 // pred_check_branch
        %2526 = sbr.rel (%p2524) target = $region186
      $region185: #{sentiment_rnn_forward.1} parent=5 // pred_region
        %s2527 = ssub.s32 %s26, 2
        // Predicated region
        $region187: #{sentiment_rnn_forward.1} parent=185 // pred_check
          %p2528 = pneg %p259
        $region188: #{sentiment_rnn_forward.1} parent=185 // pred_check_branch
          %2530 = sbr.rel (%p2528) target = $region190
        $region189: #{sentiment_rnn_forward.1} parent=185 // pred_region
          %p2531 = scmp.lt.s32.totalorder %s32, 1
          %s2532 = scalar_select %p2531, %s32, 1
          %s2533 = smul.addr %s2532, 8
          %s2534 = scalar_lea.vmem %s9, %s2533
        $region190: #{sentiment_rnn_forward.1} parent=185 // pred_fallthru
          _
        // Predicated region
        $region191: #{sentiment_rnn_forward.1} parent=185 // pred_check
          %p2535 = pneg %p285
        $region192: #{sentiment_rnn_forward.1} parent=185 // pred_check_branch
          %2537 = sbr.rel (%p2535) target = $region194
        $region193: #{sentiment_rnn_forward.1} parent=185 // pred_region
          %s2538 = sand.u32 %s270, 1
          %s2539 = scalar_lea.sflag [#allocation9], %s2538
          %s2540 = sand.u32 %s270, 1
          %s2541 = smul.addr %s2540, 16
          %s2542 = scalar_lea.vmem [#allocation8], %s2541
          %2543 = dma.done %s2539, 256
        $region194: #{sentiment_rnn_forward.1} parent=185 // pred_fallthru
          _
        // Predicated region
        $region195: #{sentiment_rnn_forward.1} parent=185 // pred_check
          %p2544 = pneg %p311
        $region196: #{sentiment_rnn_forward.1} parent=185 // pred_check_branch
          %2546 = sbr.rel (%p2544) target = $region198
        $region197: #{sentiment_rnn_forward.1} parent=185 // pred_region
          %s2547 = sand.u32 %s296, 1
          %s2548 = scalar_lea.sflag [#allocation11], %s2547
          %s2549 = sand.u32 %s296, 1
          %s2550 = smul.addr %s2549, 16
          %s2551 = scalar_lea.vmem [#allocation10], %s2550
          %2552 = dma.done %s2548, 256
        $region198: #{sentiment_rnn_forward.1} parent=185 // pred_fallthru
          _
      $region186: #{sentiment_rnn_forward.1} parent=5 // pred_fallthru
        _
    $region6: #{sentiment_rnn_forward.1} parent=1 // loop_footer
      %s30 = sadd.s32 1, %s26
    $region7: #{sentiment_rnn_forward.1} parent=1 // loop_footer_branch
      %25 = sbr.rel target = $region3
    $region8: #{sentiment_rnn_forward.1} parent=1 // loop_exit
      _
    %2553 = vsyncpa [#allocation9], 1
    %s2554 = scalar_lea.sflag [#allocation9], 1
    %2555 = vsyncpa %s2554, 1
    %2556 = vsyncpa [#allocation11], 1
    %s2557 = scalar_lea.sflag [#allocation11], 1
    %2558 = vsyncpa %s2557, 1

</llo_original>
